<compile_context>
chip_gen: v7x
topology: tpu7x:2x2x1
jax: 0.10.0
libtpu: 0.0.40
codegen_flags: <defaults>
</compile_context>

<pallas_src>
import functools

import numpy as np
import jax
import jax.numpy as jnp
from jax.experimental import pallas as pl
from jax.experimental.pallas import tpu as pltpu

LEAKY_SLOPE = 0.01   # nn.LeakyReLU() default
BN_EPS = 1e-5        # nn.BatchNorm2d default


# ---------------------------------------------------------------------------
# Constant "shifted gather" matrices (built once at trace time, host-side).
# ---------------------------------------------------------------------------
def _gather_mats(h, w, k=3, stride=2, pad=1):
    """0/1 matrices G[t]: [H*W, OH*OW], one per 3x3 tap t = kh*3 + kw.

    (A @ G[t])[:, oh*OW+ow] == A[:, (s*oh+kh-pad)*W + (s*ow+kw-pad)], and 0
    where the tap lands in the zero-padding region, so the stride-2 conv
    becomes plain matmuls with the padding folded in.
    """
    oh = (h + 2 * pad - k) // stride + 1
    ow = (w + 2 * pad - k) // stride + 1
    g = np.zeros((k * k, h * w, oh * ow), np.float32)
    for kh in range(k):
        for kw in range(k):
            t = kh * k + kw
            for o_r in range(oh):
                src_r = stride * o_r + kh - pad
                if src_r < 0 or src_r >= h:
                    continue
                for o_c in range(ow):
                    src_c = stride * o_c + kw - pad
                    if src_c < 0 or src_c >= w:
                        continue
                    g[t, src_r * w + src_c, o_r * ow + o_c] = 1.0
    # G is exactly 0/1 -> bf16 is lossless; native MXU dtype on v5e/v6e/v7x.
    return jnp.asarray(g, jnp.bfloat16), oh, ow


# ---------------------------------------------------------------------------
# The single fused Pallas kernel: all conv blocks + linear head.
# ---------------------------------------------------------------------------
def _cnn_kernel(*refs, n_layers, batch, n_classes, layer_dims):
    """refs = [x, (G, Wcat, shift) * n_layers, Wl, b, out, tcat_scratch].

    Activation layout throughout: rows = (channel, batch), lanes = H*W.
    layer_dims[layer] = (Cin*N, OH*OW) for that layer (static).
    """
    x_ref = refs[0]
    wl_ref = refs[1 + 3 * n_layers]      # [C_last, S_last, n_classes] bf16
    b_ref = refs[2 + 3 * n_layers]       # [1, n_classes] f32
    out_ref = refs[3 + 3 * n_layers]     # [batch, n_classes] f32
    tcat_ref = refs[4 + 3 * n_layers]    # VMEM scratch [max(9*CinN), max(OHOW)] f32

    a = x_ref[...]                                           # [(c,n), H*W] f32
    for layer in range(n_layers):
        g_ref = refs[1 + 3 * layer]                          # [9, HW, OHOW] bf16
        wcat_ref = refs[2 + 3 * layer]                       # [CoutN, 9*CinN] bf16
        shift_ref = refs[3 + 3 * layer]                      # [CoutN, 1] f32
        cin_n, ohow = layer_dims[layer]

        a_b = a.astype(jnp.bfloat16)                         # bf16 at the MXU input
        # Stage 1: 9 tap-gather matmuls (G is 0/1 -> exact), each writes a
        # static row slab of the Tcat scratch.
        for t in range(9):                                   # unrolled
            tap = jnp.dot(a_b, g_ref[t], preferred_element_type=jnp.float32)
            tcat_ref[t * cin_n:(t + 1) * cin_n, 0:ohow] = tap
        # Stage 2: ONE big-K matmul per layer (K = 9*Cin*N) instead of 9
        # tiny-K pushes.
        tcat = tcat_ref[0:9 * cin_n, 0:ohow].astype(jnp.bfloat16)
        y = jnp.dot(wcat_ref[...], tcat, preferred_element_type=jnp.float32)

        # Epilogue in f32 (folded BatchNorm shift + LeakyReLU).
        z = y + shift_ref[...]
        a = jnp.maximum(z, LEAKY_SLOPE * z)

    # Linear head.  NCHW flatten == contiguous per-channel row blocks of `a`.
    c_last = wl_ref.shape[0]
    acc = jnp.zeros((batch, n_classes), jnp.float32)
    for c in range(c_last):
        rows = a[c * batch:(c + 1) * batch, :].astype(jnp.bfloat16)
        acc = acc + jnp.dot(rows, wl_ref[c], preferred_element_type=jnp.float32)
    out_ref[...] = (acc + b_ref[...]).astype(out_ref.dtype)


# ---------------------------------------------------------------------------
# Wrapper: fold BN, build constant gather/weight matrices, launch ONE
# pallas_call with whole-array VMEM specs (no grid, no double-buffering).
# ---------------------------------------------------------------------------
# TODO(synk): BatchNorm2d is implemented in inference mode (running stats are
# folded into a per-channel affine); training-mode batch statistics are not
# reproduced.
def cnn_forward(x, params):
    n, c_in, h, w = x.shape
    n_layers = len(params["convs"])
    eye_n = jnp.eye(n, dtype=jnp.float32)

    # Input laid out rows=(channel, batch), lanes=H*W.
    args = [jnp.asarray(x, jnp.float32).transpose(1, 0, 2, 3).reshape(c_in * n, h * w)]
    layer_dims = []
    max_rows, max_cols = 1, 1

    for p in params["convs"]:
        c_out = p["w"].shape[0]
        scale = p["gamma"] * jax.lax.rsqrt(p["var"] + BN_EPS)            # BN fold
        shift = p["beta"] - p["mean"] * scale
        w_fold = p["w"] * scale[:, None, None, None]                     # scale into weights
        w_taps = w_fold.transpose(2, 3, 0, 1).reshape(9, c_out, c_in)    # [t, co, ci]
        w_blk = jnp.einsum("tab,ij->taibj", w_taps, eye_n)               # kron(W_t, I_N)
        w_blk = w_blk.reshape(9, c_out * n, c_in * n)
        # Concatenate the 9 taps along the contraction dim -> one big-K matmul
        # in-kernel.  Column order (t, ci, n) matches the Tcat scratch rows.
        w_cat = w_blk.transpose(1, 0, 2).reshape(c_out * n, 9 * c_in * n)

        g, h, w = _gather_mats(h, w)
        layer_dims.append((c_in * n, h * w))
        max_rows = max(max_rows, 9 * c_in * n)
        max_cols = max(max_cols, h * w)

        args += [g,                                                      # bf16
                 w_cat.astype(jnp.bfloat16),                             # bf16
                 jnp.repeat(shift, n)[:, None].astype(jnp.float32)]      # f32 shift per (co, n)
        c_in = c_out

    s_last = h * w
    k_cls = params["proj_w"].shape[0]
    w_lin = params["proj_w"].reshape(k_cls, c_in, s_last).transpose(1, 2, 0)  # [c, s, k]
    args += [w_lin.astype(jnp.bfloat16), params["proj_b"][None, :].astype(jnp.float32)]

    kernel = functools.partial(_cnn_kernel, n_layers=n_layers, batch=n,
                               n_classes=k_cls, layer_dims=tuple(layer_dims))
    return pl.pallas_call(
        kernel,
        out_shape=jax.ShapeDtypeStruct((n, k_cls), jnp.float32),
        # No grid: whole (tiny) network in one invocation, everything resident
        # in VMEM, single-buffered (no pointless double-buffering).
        in_specs=[pl.BlockSpec(memory_space=pltpu.MemorySpace.VMEM) for _ in args],
        out_specs=pl.BlockSpec(memory_space=pltpu.MemorySpace.VMEM),
        scratch_shapes=[pltpu.VMEM((max_rows, max_cols), jnp.float32)],  # Tcat
    )(*args)


# ---------------------------------------------------------------------------
# Params / reference / test harness
# ---------------------------------------------------------------------------
def init_params(key, img_hw, n_classes, n_layers, n_channels):
    hw = img_hw
    convs = []
    c_in = 1
    for _ in range(n_layers):
        key, k1, k2, k3, k4, k5 = jax.random.split(key, 6)
        convs.append({
            "w": jax.random.normal(k1, (n_channels, c_in, 3, 3), jnp.float32) * 0.3,
            "gamma": jax.random.uniform(k2, (n_channels,), jnp.float32, 0.5, 1.5),
            "beta": jax.random.normal(k3, (n_channels,), jnp.float32) * 0.1,
            "mean": jax.random.normal(k4, (n_channels,), jnp.float32) * 0.1,
            "var": jax.random.uniform(k5, (n_channels,), jnp.float32, 0.5, 1.5),
        })
        c_in = n_channels
        hw = (hw + 2 - 3) // 2 + 1
    # True flattened size (equals the torch formula int(img_hw/2**n_layers*n_channels*2)
    # for this test config).
    hidden_size = hw * hw * n_channels
    key, kw, kb = jax.random.split(key, 3)
    params = {
        "convs": convs,
        "proj_w": jax.random.normal(kw, (n_classes, hidden_size), jnp.float32) * 0.1,
        "proj_b": jax.random.normal(kb, (n_classes,), jnp.float32) * 0.1,
    }
    return params, hidden_size


def _reference_forward(x, params):
    a = x
    for p in params["convs"]:
        scale = p["gamma"] / jnp.sqrt(p["var"] + BN_EPS)
        shift = p["beta"] - p["mean"] * scale
        a = jax.lax.conv_general_dilated(
            a, p["w"], window_strides=(2, 2), padding=((1, 1), (1, 1)),
            dimension_numbers=("NCHW", "OIHW", "NCHW"))
        a = a * scale[None, :, None, None] + shift[None, :, None, None]
        a = jnp.where(a >= 0, a, LEAKY_SLOPE * a)
    flat = a.reshape(a.shape[0], -1)
    return flat @ params["proj_w"].T + params["proj_b"]


if __name__ == "__main__":
    # img_hw=16, n_layers=3 -> final spatial 2x2, hidden_size = 2*2*4 = 16
    img_hw, n_classes, n_layers, n_channels = 16, 10, 3, 4
    key = jax.random.PRNGKey(0)
    key, kx = jax.random.split(key)
    params, hidden_size = init_params(key, img_hw, n_classes, n_layers, n_channels)

    x = jax.random.normal(kx, (2, 1, img_hw, img_hw), jnp.float32)  # NCHW

    fwd = jax.jit(lambda xx: cnn_forward(xx, params))
    y = fwd(x)
    jax.block_until_ready(y)

    assert y.shape == (2, n_classes), y.shape
    assert y.dtype == jnp.float32

    # Sanity check vs a plain-JAX reference.  Tolerance accounts for the bf16
    # MXU inputs in the kernel and the TPU's default-precision reference
    # conv/dot passes.
    y_ref = _reference_forward(x, params)
    np.testing.assert_allclose(np.asarray(y), np.asarray(y_ref), rtol=1e-1, atol=1e-1)

    print("KERNEL_OK")
</pallas_src>

<mosaic_0001>
module attributes {stable_mosaic.version = 11 : i64} {
  func.func @_cnn_kernel(%arg0: memref<2x256xf32, #tpu.memory_space<vmem>>, %arg1: memref<9x256x64xbf16, #tpu.memory_space<vmem>>, %arg2: memref<8x18xbf16, #tpu.memory_space<vmem>>, %arg3: memref<8x1xf32, #tpu.memory_space<vmem>>, %arg4: memref<9x64x16xbf16, #tpu.memory_space<vmem>>, %arg5: memref<8x72xbf16, #tpu.memory_space<vmem>>, %arg6: memref<8x1xf32, #tpu.memory_space<vmem>>, %arg7: memref<9x16x4xbf16, #tpu.memory_space<vmem>>, %arg8: memref<8x72xbf16, #tpu.memory_space<vmem>>, %arg9: memref<8x1xf32, #tpu.memory_space<vmem>>, %arg10: memref<4x4x10xbf16, #tpu.memory_space<vmem>>, %arg11: memref<1x10xf32, #tpu.memory_space<vmem>>, %arg12: memref<2x10xf32, #tpu.memory_space<vmem>>, %arg13: memref<72x64xf32, #tpu.memory_space<vmem>>) attributes {dimension_semantics = [], scalar_prefetch = 0 : i64, scratch_operands = 1 : i64, tpu.core_type = #tpu.core_type<tc>} {
    %c0 = arith.constant 0 : index
    %c0_0 = arith.constant 0 : index
    %0 = vector.load %arg0[%c0, %c0_0] : memref<2x256xf32, #tpu.memory_space<vmem>>, vector<2x256xf32>
    %1 = arith.truncf %0 : vector<2x256xf32> to vector<2x256xbf16>
    %c0_1 = arith.constant 0 : index
    %c0_2 = arith.constant 0 : index
    %c0_3 = arith.constant 0 : index
    %2 = vector.load %arg1[%c0_1, %c0_2, %c0_3] : memref<9x256x64xbf16, #tpu.memory_space<vmem>>, vector<1x256x64xbf16>
    %3 = vector.shape_cast %2 : vector<1x256x64xbf16> to vector<256x64xbf16>
    %cst = arith.constant dense<0.000000e+00> : vector<2x64xf32>
    %4 = tpu.matmul %1, %3, %cst {dimension_numbers = #tpu.dot_dimension_numbers<[1], [0], [0], [1], [0, 0, 1, 1], [], []>} : vector<2x256xbf16>, vector<256x64xbf16>, vector<2x64xf32> -> vector<2x64xf32>
    %c0_4 = arith.constant 0 : index
    %c0_5 = arith.constant 0 : index
    %5 = vector.load %arg13[%c0_4, %c0_5] : memref<72x64xf32, #tpu.memory_space<vmem>>, vector<2x64xf32>
    tpu.vector_store %arg13[%c0_4, %c0_5], %4 {strides = array<i32>} : memref<72x64xf32, #tpu.memory_space<vmem>>, vector<2x64xf32>,
    %c1 = arith.constant 1 : index
    %c0_6 = arith.constant 0 : index
    %c0_7 = arith.constant 0 : index
    %6 = vector.load %arg1[%c1, %c0_6, %c0_7] : memref<9x256x64xbf16, #tpu.memory_space<vmem>>, vector<1x256x64xbf16>
    %7 = vector.shape_cast %6 : vector<1x256x64xbf16> to vector<256x64xbf16>
    %cst_8 = arith.constant dense<0.000000e+00> : vector<2x64xf32>
    %8 = tpu.matmul %1, %7, %cst_8 {dimension_numbers = #tpu.dot_dimension_numbers<[1], [0], [0], [1], [0, 0, 1, 1], [], []>} : vector<2x256xbf16>, vector<256x64xbf16>, vector<2x64xf32> -> vector<2x64xf32>
    %c2 = arith.constant 2 : index
    %c0_9 = arith.constant 0 : index
    %9 = vector.load %arg13[%c2, %c0_9] : memref<72x64xf32, #tpu.memory_space<vmem>>, vector<2x64xf32>
    tpu.vector_store %arg13[%c2, %c0_9], %8 {strides = array<i32>} : memref<72x64xf32, #tpu.memory_space<vmem>>, vector<2x64xf32>,
    %c2_10 = arith.constant 2 : index
    %c0_11 = arith.constant 0 : index
    %c0_12 = arith.constant 0 : index
    %10 = vector.load %arg1[%c2_10, %c0_11, %c0_12] : memref<9x256x64xbf16, #tpu.memory_space<vmem>>, vector<1x256x64xbf16>
    %11 = vector.shape_cast %10 : vector<1x256x64xbf16> to vector<256x64xbf16>
    %cst_13 = arith.constant dense<0.000000e+00> : vector<2x64xf32>
    %12 = tpu.matmul %1, %11, %cst_13 {dimension_numbers = #tpu.dot_dimension_numbers<[1], [0], [0], [1], [0, 0, 1, 1], [], []>} : vector<2x256xbf16>, vector<256x64xbf16>, vector<2x64xf32> -> vector<2x64xf32>
    %c4 = arith.constant 4 : index
    %c0_14 = arith.constant 0 : index
    %13 = vector.load %arg13[%c4, %c0_14] : memref<72x64xf32, #tpu.memory_space<vmem>>, vector<2x64xf32>
    tpu.vector_store %arg13[%c4, %c0_14], %12 {strides = array<i32>} : memref<72x64xf32, #tpu.memory_space<vmem>>, vector<2x64xf32>,
    %c3 = arith.constant 3 : index
    %c0_15 = arith.constant 0 : index
    %c0_16 = arith.constant 0 : index
    %14 = vector.load %arg1[%c3, %c0_15, %c0_16] : memref<9x256x64xbf16, #tpu.memory_space<vmem>>, vector<1x256x64xbf16>
    %15 = vector.shape_cast %14 : vector<1x256x64xbf16> to vector<256x64xbf16>
    %cst_17 = arith.constant dense<0.000000e+00> : vector<2x64xf32>
    %16 = tpu.matmul %1, %15, %cst_17 {dimension_numbers = #tpu.dot_dimension_numbers<[1], [0], [0], [1], [0, 0, 1, 1], [], []>} : vector<2x256xbf16>, vector<256x64xbf16>, vector<2x64xf32> -> vector<2x64xf32>
    %c6 = arith.constant 6 : index
    %c0_18 = arith.constant 0 : index
    %17 = vector.load %arg13[%c6, %c0_18] : memref<72x64xf32, #tpu.memory_space<vmem>>, vector<2x64xf32>
    tpu.vector_store %arg13[%c6, %c0_18], %16 {strides = array<i32>} : memref<72x64xf32, #tpu.memory_space<vmem>>, vector<2x64xf32>,
    %c4_19 = arith.constant 4 : index
    %c0_20 = arith.constant 0 : index
    %c0_21 = arith.constant 0 : index
    %18 = vector.load %arg1[%c4_19, %c0_20, %c0_21] : memref<9x256x64xbf16, #tpu.memory_space<vmem>>, vector<1x256x64xbf16>
    %19 = vector.shape_cast %18 : vector<1x256x64xbf16> to vector<256x64xbf16>
    %cst_22 = arith.constant dense<0.000000e+00> : vector<2x64xf32>
    %20 = tpu.matmul %1, %19, %cst_22 {dimension_numbers = #tpu.dot_dimension_numbers<[1], [0], [0], [1], [0, 0, 1, 1], [], []>} : vector<2x256xbf16>, vector<256x64xbf16>, vector<2x64xf32> -> vector<2x64xf32>
    %c8 = arith.constant 8 : index
    %c0_23 = arith.constant 0 : index
    %21 = vector.load %arg13[%c8, %c0_23] : memref<72x64xf32, #tpu.memory_space<vmem>>, vector<2x64xf32>
    tpu.vector_store %arg13[%c8, %c0_23], %20 {strides = array<i32>} : memref<72x64xf32, #tpu.memory_space<vmem>>, vector<2x64xf32>,
    %c5 = arith.constant 5 : index
    %c0_24 = arith.constant 0 : index
    %c0_25 = arith.constant 0 : index
    %22 = vector.load %arg1[%c5, %c0_24, %c0_25] : memref<9x256x64xbf16, #tpu.memory_space<vmem>>, vector<1x256x64xbf16>
    %23 = vector.shape_cast %22 : vector<1x256x64xbf16> to vector<256x64xbf16>
    %cst_26 = arith.constant dense<0.000000e+00> : vector<2x64xf32>
    %24 = tpu.matmul %1, %23, %cst_26 {dimension_numbers = #tpu.dot_dimension_numbers<[1], [0], [0], [1], [0, 0, 1, 1], [], []>} : vector<2x256xbf16>, vector<256x64xbf16>, vector<2x64xf32> -> vector<2x64xf32>
    %c10 = arith.constant 10 : index
    %c0_27 = arith.constant 0 : index
    %25 = vector.load %arg13[%c10, %c0_27] : memref<72x64xf32, #tpu.memory_space<vmem>>, vector<2x64xf32>
    tpu.vector_store %arg13[%c10, %c0_27], %24 {strides = array<i32>} : memref<72x64xf32, #tpu.memory_space<vmem>>, vector<2x64xf32>,
    %c6_28 = arith.constant 6 : index
    %c0_29 = arith.constant 0 : index
    %c0_30 = arith.constant 0 : index
    %26 = vector.load %arg1[%c6_28, %c0_29, %c0_30] : memref<9x256x64xbf16, #tpu.memory_space<vmem>>, vector<1x256x64xbf16>
    %27 = vector.shape_cast %26 : vector<1x256x64xbf16> to vector<256x64xbf16>
    %cst_31 = arith.constant dense<0.000000e+00> : vector<2x64xf32>
    %28 = tpu.matmul %1, %27, %cst_31 {dimension_numbers = #tpu.dot_dimension_numbers<[1], [0], [0], [1], [0, 0, 1, 1], [], []>} : vector<2x256xbf16>, vector<256x64xbf16>, vector<2x64xf32> -> vector<2x64xf32>
    %c12 = arith.constant 12 : index
    %c0_32 = arith.constant 0 : index
    %29 = vector.load %arg13[%c12, %c0_32] : memref<72x64xf32, #tpu.memory_space<vmem>>, vector<2x64xf32>
    tpu.vector_store %arg13[%c12, %c0_32], %28 {strides = array<i32>} : memref<72x64xf32, #tpu.memory_space<vmem>>, vector<2x64xf32>,
    %c7 = arith.constant 7 : index
    %c0_33 = arith.constant 0 : index
    %c0_34 = arith.constant 0 : index
    %30 = vector.load %arg1[%c7, %c0_33, %c0_34] : memref<9x256x64xbf16, #tpu.memory_space<vmem>>, vector<1x256x64xbf16>
    %31 = vector.shape_cast %30 : vector<1x256x64xbf16> to vector<256x64xbf16>
    %cst_35 = arith.constant dense<0.000000e+00> : vector<2x64xf32>
    %32 = tpu.matmul %1, %31, %cst_35 {dimension_numbers = #tpu.dot_dimension_numbers<[1], [0], [0], [1], [0, 0, 1, 1], [], []>} : vector<2x256xbf16>, vector<256x64xbf16>, vector<2x64xf32> -> vector<2x64xf32>
    %c14 = arith.constant 14 : index
    %c0_36 = arith.constant 0 : index
    %33 = vector.load %arg13[%c14, %c0_36] : memref<72x64xf32, #tpu.memory_space<vmem>>, vector<2x64xf32>
    tpu.vector_store %arg13[%c14, %c0_36], %32 {strides = array<i32>} : memref<72x64xf32, #tpu.memory_space<vmem>>, vector<2x64xf32>,
    %c8_37 = arith.constant 8 : index
    %c0_38 = arith.constant 0 : index
    %c0_39 = arith.constant 0 : index
    %34 = vector.load %arg1[%c8_37, %c0_38, %c0_39] : memref<9x256x64xbf16, #tpu.memory_space<vmem>>, vector<1x256x64xbf16>
    %35 = vector.shape_cast %34 : vector<1x256x64xbf16> to vector<256x64xbf16>
    %cst_40 = arith.constant dense<0.000000e+00> : vector<2x64xf32>
    %36 = tpu.matmul %1, %35, %cst_40 {dimension_numbers = #tpu.dot_dimension_numbers<[1], [0], [0], [1], [0, 0, 1, 1], [], []>} : vector<2x256xbf16>, vector<256x64xbf16>, vector<2x64xf32> -> vector<2x64xf32>
    %c16 = arith.constant 16 : index
    %c0_41 = arith.constant 0 : index
    %37 = vector.load %arg13[%c16, %c0_41] : memref<72x64xf32, #tpu.memory_space<vmem>>, vector<2x64xf32>
    tpu.vector_store %arg13[%c16, %c0_41], %36 {strides = array<i32>} : memref<72x64xf32, #tpu.memory_space<vmem>>, vector<2x64xf32>,
    %c0_42 = arith.constant 0 : index
    %c0_43 = arith.constant 0 : index
    %38 = vector.load %arg13[%c0_42, %c0_43] : memref<72x64xf32, #tpu.memory_space<vmem>>, vector<18x64xf32>
    %39 = arith.truncf %38 : vector<18x64xf32> to vector<18x64xbf16>
    %c0_44 = arith.constant 0 : index
    %c0_45 = arith.constant 0 : index
    %40 = vector.load %arg2[%c0_44, %c0_45] : memref<8x18xbf16, #tpu.memory_space<vmem>>, vector<8x18xbf16>
    %cst_46 = arith.constant dense<0.000000e+00> : vector<8x64xf32>
    %41 = tpu.matmul %40, %39, %cst_46 {dimension_numbers = #tpu.dot_dimension_numbers<[1], [0], [0], [1], [0, 0, 1, 1], [], []>} : vector<8x18xbf16>, vector<18x64xbf16>, vector<8x64xf32> -> vector<8x64xf32>
    %c0_47 = arith.constant 0 : index
    %c0_48 = arith.constant 0 : index
    %42 = vector.load %arg3[%c0_47, %c0_48] : memref<8x1xf32, #tpu.memory_space<vmem>>, vector<8x1xf32>
    %43 = vector.broadcast %42 : vector<8x1xf32> to vector<8x64xf32>
    %44 = arith.addf %41, %43 : vector<8x64xf32>
    %cst_49 = arith.constant 0.00999999977 : f32
    %45 = vector.broadcast %cst_49 : f32 to vector<8x64xf32>
    %46 = arith.mulf %45, %44 : vector<8x64xf32>
    %47 = arith.maximumf %44, %46 : vector<8x64xf32>
    %48 = arith.truncf %47 : vector<8x64xf32> to vector<8x64xbf16>
    %c0_50 = arith.constant 0 : index
    %c0_51 = arith.constant 0 : index
    %c0_52 = arith.constant 0 : index
    %49 = vector.load %arg4[%c0_50, %c0_51, %c0_52] : memref<9x64x16xbf16, #tpu.memory_space<vmem>>, vector<1x64x16xbf16>
    %50 = vector.shape_cast %49 : vector<1x64x16xbf16> to vector<64x16xbf16>
    %cst_53 = arith.constant dense<0.000000e+00> : vector<8x16xf32>
    %51 = tpu.matmul %48, %50, %cst_53 {dimension_numbers = #tpu.dot_dimension_numbers<[1], [0], [0], [1], [0, 0, 1, 1], [], []>} : vector<8x64xbf16>, vector<64x16xbf16>, vector<8x16xf32> -> vector<8x16xf32>
    %c0_54 = arith.constant 0 : index
    %c0_55 = arith.constant 0 : index
    %52 = vector.load %arg13[%c0_54, %c0_55] : memref<72x64xf32, #tpu.memory_space<vmem>>, vector<8x16xf32>
    tpu.vector_store %arg13[%c0_54, %c0_55], %51 {strides = array<i32>} : memref<72x64xf32, #tpu.memory_space<vmem>>, vector<8x16xf32>,
    %c1_56 = arith.constant 1 : index
    %c0_57 = arith.constant 0 : index
    %c0_58 = arith.constant 0 : index
    %53 = vector.load %arg4[%c1_56, %c0_57, %c0_58] : memref<9x64x16xbf16, #tpu.memory_space<vmem>>, vector<1x64x16xbf16>
    %54 = vector.shape_cast %53 : vector<1x64x16xbf16> to vector<64x16xbf16>
    %cst_59 = arith.constant dense<0.000000e+00> : vector<8x16xf32>
    %55 = tpu.matmul %48, %54, %cst_59 {dimension_numbers = #tpu.dot_dimension_numbers<[1], [0], [0], [1], [0, 0, 1, 1], [], []>} : vector<8x64xbf16>, vector<64x16xbf16>, vector<8x16xf32> -> vector<8x16xf32>
    %c8_60 = arith.constant 8 : index
    %c0_61 = arith.constant 0 : index
    %56 = vector.load %arg13[%c8_60, %c0_61] : memref<72x64xf32, #tpu.memory_space<vmem>>, vector<8x16xf32>
    tpu.vector_store %arg13[%c8_60, %c0_61], %55 {strides = array<i32>} : memref<72x64xf32, #tpu.memory_space<vmem>>, vector<8x16xf32>,
    %c2_62 = arith.constant 2 : index
    %c0_63 = arith.constant 0 : index
    %c0_64 = arith.constant 0 : index
    %57 = vector.load %arg4[%c2_62, %c0_63, %c0_64] : memref<9x64x16xbf16, #tpu.memory_space<vmem>>, vector<1x64x16xbf16>
    %58 = vector.shape_cast %57 : vector<1x64x16xbf16> to vector<64x16xbf16>
    %cst_65 = arith.constant dense<0.000000e+00> : vector<8x16xf32>
    %59 = tpu.matmul %48, %58, %cst_65 {dimension_numbers = #tpu.dot_dimension_numbers<[1], [0], [0], [1], [0, 0, 1, 1], [], []>} : vector<8x64xbf16>, vector<64x16xbf16>, vector<8x16xf32> -> vector<8x16xf32>
    %c16_66 = arith.constant 16 : index
    %c0_67 = arith.constant 0 : index
    %60 = vector.load %arg13[%c16_66, %c0_67] : memref<72x64xf32, #tpu.memory_space<vmem>>, vector<8x16xf32>
    tpu.vector_store %arg13[%c16_66, %c0_67], %59 {strides = array<i32>} : memref<72x64xf32, #tpu.memory_space<vmem>>, vector<8x16xf32>,
    %c3_68 = arith.constant 3 : index
    %c0_69 = arith.constant 0 : index
    %c0_70 = arith.constant 0 : index
    %61 = vector.load %arg4[%c3_68, %c0_69, %c0_70] : memref<9x64x16xbf16, #tpu.memory_space<vmem>>, vector<1x64x16xbf16>
    %62 = vector.shape_cast %61 : vector<1x64x16xbf16> to vector<64x16xbf16>
    %cst_71 = arith.constant dense<0.000000e+00> : vector<8x16xf32>
    %63 = tpu.matmul %48, %62, %cst_71 {dimension_numbers = #tpu.dot_dimension_numbers<[1], [0], [0], [1], [0, 0, 1, 1], [], []>} : vector<8x64xbf16>, vector<64x16xbf16>, vector<8x16xf32> -> vector<8x16xf32>
    %c24 = arith.constant 24 : index
    %c0_72 = arith.constant 0 : index
    %64 = vector.load %arg13[%c24, %c0_72] : memref<72x64xf32, #tpu.memory_space<vmem>>, vector<8x16xf32>
    tpu.vector_store %arg13[%c24, %c0_72], %63 {strides = array<i32>} : memref<72x64xf32, #tpu.memory_space<vmem>>, vector<8x16xf32>,
    %c4_73 = arith.constant 4 : index
    %c0_74 = arith.constant 0 : index
    %c0_75 = arith.constant 0 : index
    %65 = vector.load %arg4[%c4_73, %c0_74, %c0_75] : memref<9x64x16xbf16, #tpu.memory_space<vmem>>, vector<1x64x16xbf16>
    %66 = vector.shape_cast %65 : vector<1x64x16xbf16> to vector<64x16xbf16>
    %cst_76 = arith.constant dense<0.000000e+00> : vector<8x16xf32>
    %67 = tpu.matmul %48, %66, %cst_76 {dimension_numbers = #tpu.dot_dimension_numbers<[1], [0], [0], [1], [0, 0, 1, 1], [], []>} : vector<8x64xbf16>, vector<64x16xbf16>, vector<8x16xf32> -> vector<8x16xf32>
    %c32 = arith.constant 32 : index
    %c0_77 = arith.constant 0 : index
    %68 = vector.load %arg13[%c32, %c0_77] : memref<72x64xf32, #tpu.memory_space<vmem>>, vector<8x16xf32>
    tpu.vector_store %arg13[%c32, %c0_77], %67 {strides = array<i32>} : memref<72x64xf32, #tpu.memory_space<vmem>>, vector<8x16xf32>,
    %c5_78 = arith.constant 5 : index
    %c0_79 = arith.constant 0 : index
    %c0_80 = arith.constant 0 : index
    %69 = vector.load %arg4[%c5_78, %c0_79, %c0_80] : memref<9x64x16xbf16, #tpu.memory_space<vmem>>, vector<1x64x16xbf16>
    %70 = vector.shape_cast %69 : vector<1x64x16xbf16> to vector<64x16xbf16>
    %cst_81 = arith.constant dense<0.000000e+00> : vector<8x16xf32>
    %71 = tpu.matmul %48, %70, %cst_81 {dimension_numbers = #tpu.dot_dimension_numbers<[1], [0], [0], [1], [0, 0, 1, 1], [], []>} : vector<8x64xbf16>, vector<64x16xbf16>, vector<8x16xf32> -> vector<8x16xf32>
    %c40 = arith.constant 40 : index
    %c0_82 = arith.constant 0 : index
    %72 = vector.load %arg13[%c40, %c0_82] : memref<72x64xf32, #tpu.memory_space<vmem>>, vector<8x16xf32>
    tpu.vector_store %arg13[%c40, %c0_82], %71 {strides = array<i32>} : memref<72x64xf32, #tpu.memory_space<vmem>>, vector<8x16xf32>,
    %c6_83 = arith.constant 6 : index
    %c0_84 = arith.constant 0 : index
    %c0_85 = arith.constant 0 : index
    %73 = vector.load %arg4[%c6_83, %c0_84, %c0_85] : memref<9x64x16xbf16, #tpu.memory_space<vmem>>, vector<1x64x16xbf16>
    %74 = vector.shape_cast %73 : vector<1x64x16xbf16> to vector<64x16xbf16>
    %cst_86 = arith.constant dense<0.000000e+00> : vector<8x16xf32>
    %75 = tpu.matmul %48, %74, %cst_86 {dimension_numbers = #tpu.dot_dimension_numbers<[1], [0], [0], [1], [0, 0, 1, 1], [], []>} : vector<8x64xbf16>, vector<64x16xbf16>, vector<8x16xf32> -> vector<8x16xf32>
    %c48 = arith.constant 48 : index
    %c0_87 = arith.constant 0 : index
    %76 = vector.load %arg13[%c48, %c0_87] : memref<72x64xf32, #tpu.memory_space<vmem>>, vector<8x16xf32>
    tpu.vector_store %arg13[%c48, %c0_87], %75 {strides = array<i32>} : memref<72x64xf32, #tpu.memory_space<vmem>>, vector<8x16xf32>,
    %c7_88 = arith.constant 7 : index
    %c0_89 = arith.constant 0 : index
    %c0_90 = arith.constant 0 : index
    %77 = vector.load %arg4[%c7_88, %c0_89, %c0_90] : memref<9x64x16xbf16, #tpu.memory_space<vmem>>, vector<1x64x16xbf16>
    %78 = vector.shape_cast %77 : vector<1x64x16xbf16> to vector<64x16xbf16>
    %cst_91 = arith.constant dense<0.000000e+00> : vector<8x16xf32>
    %79 = tpu.matmul %48, %78, %cst_91 {dimension_numbers = #tpu.dot_dimension_numbers<[1], [0], [0], [1], [0, 0, 1, 1], [], []>} : vector<8x64xbf16>, vector<64x16xbf16>, vector<8x16xf32> -> vector<8x16xf32>
    %c56 = arith.constant 56 : index
    %c0_92 = arith.constant 0 : index
    %80 = vector.load %arg13[%c56, %c0_92] : memref<72x64xf32, #tpu.memory_space<vmem>>, vector<8x16xf32>
    tpu.vector_store %arg13[%c56, %c0_92], %79 {strides = array<i32>} : memref<72x64xf32, #tpu.memory_space<vmem>>, vector<8x16xf32>,
    %c8_93 = arith.constant 8 : index
    %c0_94 = arith.constant 0 : index
    %c0_95 = arith.constant 0 : index
    %81 = vector.load %arg4[%c8_93, %c0_94, %c0_95] : memref<9x64x16xbf16, #tpu.memory_space<vmem>>, vector<1x64x16xbf16>
    %82 = vector.shape_cast %81 : vector<1x64x16xbf16> to vector<64x16xbf16>
    %cst_96 = arith.constant dense<0.000000e+00> : vector<8x16xf32>
    %83 = tpu.matmul %48, %82, %cst_96 {dimension_numbers = #tpu.dot_dimension_numbers<[1], [0], [0], [1], [0, 0, 1, 1], [], []>} : vector<8x64xbf16>, vector<64x16xbf16>, vector<8x16xf32> -> vector<8x16xf32>
    %c64 = arith.constant 64 : index
    %c0_97 = arith.constant 0 : index
    %84 = vector.load %arg13[%c64, %c0_97] : memref<72x64xf32, #tpu.memory_space<vmem>>, vector<8x16xf32>
    tpu.vector_store %arg13[%c64, %c0_97], %83 {strides = array<i32>} : memref<72x64xf32, #tpu.memory_space<vmem>>, vector<8x16xf32>,
    %c0_98 = arith.constant 0 : index
    %c0_99 = arith.constant 0 : index
    %85 = vector.load %arg13[%c0_98, %c0_99] : memref<72x64xf32, #tpu.memory_space<vmem>>, vector<72x16xf32>
    %86 = arith.truncf %85 : vector<72x16xf32> to vector<72x16xbf16>
    %c0_100 = arith.constant 0 : index
    %c0_101 = arith.constant 0 : index
    %87 = vector.load %arg5[%c0_100, %c0_101] : memref<8x72xbf16, #tpu.memory_space<vmem>>, vector<8x72xbf16>
    %cst_102 = arith.constant dense<0.000000e+00> : vector<8x16xf32>
    %88 = tpu.matmul %87, %86, %cst_102 {dimension_numbers = #tpu.dot_dimension_numbers<[1], [0], [0], [1], [0, 0, 1, 1], [], []>} : vector<8x72xbf16>, vector<72x16xbf16>, vector<8x16xf32> -> vector<8x16xf32>
    %c0_103 = arith.constant 0 : index
    %c0_104 = arith.constant 0 : index
    %89 = vector.load %arg6[%c0_103, %c0_104] : memref<8x1xf32, #tpu.memory_space<vmem>>, vector<8x1xf32>
    %90 = vector.broadcast %89 : vector<8x1xf32> to vector<8x16xf32>
    %91 = arith.addf %88, %90 : vector<8x16xf32>
    %cst_105 = arith.constant 0.00999999977 : f32
    %92 = vector.broadcast %cst_105 : f32 to vector<8x16xf32>
    %93 = arith.mulf %92, %91 : vector<8x16xf32>
    %94 = arith.maximumf %91, %93 : vector<8x16xf32>
    %95 = arith.truncf %94 : vector<8x16xf32> to vector<8x16xbf16>
    %c0_106 = arith.constant 0 : index
    %c0_107 = arith.constant 0 : index
    %c0_108 = arith.constant 0 : index
    %96 = vector.load %arg7[%c0_106, %c0_107, %c0_108] : memref<9x16x4xbf16, #tpu.memory_space<vmem>>, vector<1x16x4xbf16>
    %97 = vector.shape_cast %96 : vector<1x16x4xbf16> to vector<16x4xbf16>
    %cst_109 = arith.constant dense<0.000000e+00> : vector<8x4xf32>
    %98 = tpu.matmul %95, %97, %cst_109 {dimension_numbers = #tpu.dot_dimension_numbers<[1], [0], [0], [1], [0, 0, 1, 1], [], []>} : vector<8x16xbf16>, vector<16x4xbf16>, vector<8x4xf32> -> vector<8x4xf32>
    %c0_110 = arith.constant 0 : index
    %c0_111 = arith.constant 0 : index
    %99 = vector.load %arg13[%c0_110, %c0_111] : memref<72x64xf32, #tpu.memory_space<vmem>>, vector<8x4xf32>
    tpu.vector_store %arg13[%c0_110, %c0_111], %98 {strides = array<i32>} : memref<72x64xf32, #tpu.memory_space<vmem>>, vector<8x4xf32>,
    %c1_112 = arith.constant 1 : index
    %c0_113 = arith.constant 0 : index
    %c0_114 = arith.constant 0 : index
    %100 = vector.load %arg7[%c1_112, %c0_113, %c0_114] : memref<9x16x4xbf16, #tpu.memory_space<vmem>>, vector<1x16x4xbf16>
    %101 = vector.shape_cast %100 : vector<1x16x4xbf16> to vector<16x4xbf16>
    %cst_115 = arith.constant dense<0.000000e+00> : vector<8x4xf32>
    %102 = tpu.matmul %95, %101, %cst_115 {dimension_numbers = #tpu.dot_dimension_numbers<[1], [0], [0], [1], [0, 0, 1, 1], [], []>} : vector<8x16xbf16>, vector<16x4xbf16>, vector<8x4xf32> -> vector<8x4xf32>
    %c8_116 = arith.constant 8 : index
    %c0_117 = arith.constant 0 : index
    %103 = vector.load %arg13[%c8_116, %c0_117] : memref<72x64xf32, #tpu.memory_space<vmem>>, vector<8x4xf32>
    tpu.vector_store %arg13[%c8_116, %c0_117], %102 {strides = array<i32>} : memref<72x64xf32, #tpu.memory_space<vmem>>, vector<8x4xf32>,
    %c2_118 = arith.constant 2 : index
    %c0_119 = arith.constant 0 : index
    %c0_120 = arith.constant 0 : index
    %104 = vector.load %arg7[%c2_118, %c0_119, %c0_120] : memref<9x16x4xbf16, #tpu.memory_space<vmem>>, vector<1x16x4xbf16>
    %105 = vector.shape_cast %104 : vector<1x16x4xbf16> to vector<16x4xbf16>
    %cst_121 = arith.constant dense<0.000000e+00> : vector<8x4xf32>
    %106 = tpu.matmul %95, %105, %cst_121 {dimension_numbers = #tpu.dot_dimension_numbers<[1], [0], [0], [1], [0, 0, 1, 1], [], []>} : vector<8x16xbf16>, vector<16x4xbf16>, vector<8x4xf32> -> vector<8x4xf32>
    %c16_122 = arith.constant 16 : index
    %c0_123 = arith.constant 0 : index
    %107 = vector.load %arg13[%c16_122, %c0_123] : memref<72x64xf32, #tpu.memory_space<vmem>>, vector<8x4xf32>
    tpu.vector_store %arg13[%c16_122, %c0_123], %106 {strides = array<i32>} : memref<72x64xf32, #tpu.memory_space<vmem>>, vector<8x4xf32>,
    %c3_124 = arith.constant 3 : index
    %c0_125 = arith.constant 0 : index
    %c0_126 = arith.constant 0 : index
    %108 = vector.load %arg7[%c3_124, %c0_125, %c0_126] : memref<9x16x4xbf16, #tpu.memory_space<vmem>>, vector<1x16x4xbf16>
    %109 = vector.shape_cast %108 : vector<1x16x4xbf16> to vector<16x4xbf16>
    %cst_127 = arith.constant dense<0.000000e+00> : vector<8x4xf32>
    %110 = tpu.matmul %95, %109, %cst_127 {dimension_numbers = #tpu.dot_dimension_numbers<[1], [0], [0], [1], [0, 0, 1, 1], [], []>} : vector<8x16xbf16>, vector<16x4xbf16>, vector<8x4xf32> -> vector<8x4xf32>
    %c24_128 = arith.constant 24 : index
    %c0_129 = arith.constant 0 : index
    %111 = vector.load %arg13[%c24_128, %c0_129] : memref<72x64xf32, #tpu.memory_space<vmem>>, vector<8x4xf32>
    tpu.vector_store %arg13[%c24_128, %c0_129], %110 {strides = array<i32>} : memref<72x64xf32, #tpu.memory_space<vmem>>, vector<8x4xf32>,
    %c4_130 = arith.constant 4 : index
    %c0_131 = arith.constant 0 : index
    %c0_132 = arith.constant 0 : index
    %112 = vector.load %arg7[%c4_130, %c0_131, %c0_132] : memref<9x16x4xbf16, #tpu.memory_space<vmem>>, vector<1x16x4xbf16>
    %113 = vector.shape_cast %112 : vector<1x16x4xbf16> to vector<16x4xbf16>
    %cst_133 = arith.constant dense<0.000000e+00> : vector<8x4xf32>
    %114 = tpu.matmul %95, %113, %cst_133 {dimension_numbers = #tpu.dot_dimension_numbers<[1], [0], [0], [1], [0, 0, 1, 1], [], []>} : vector<8x16xbf16>, vector<16x4xbf16>, vector<8x4xf32> -> vector<8x4xf32>
    %c32_134 = arith.constant 32 : index
    %c0_135 = arith.constant 0 : index
    %115 = vector.load %arg13[%c32_134, %c0_135] : memref<72x64xf32, #tpu.memory_space<vmem>>, vector<8x4xf32>
    tpu.vector_store %arg13[%c32_134, %c0_135], %114 {strides = array<i32>} : memref<72x64xf32, #tpu.memory_space<vmem>>, vector<8x4xf32>,
    %c5_136 = arith.constant 5 : index
    %c0_137 = arith.constant 0 : index
    %c0_138 = arith.constant 0 : index
    %116 = vector.load %arg7[%c5_136, %c0_137, %c0_138] : memref<9x16x4xbf16, #tpu.memory_space<vmem>>, vector<1x16x4xbf16>
    %117 = vector.shape_cast %116 : vector<1x16x4xbf16> to vector<16x4xbf16>
    %cst_139 = arith.constant dense<0.000000e+00> : vector<8x4xf32>
    %118 = tpu.matmul %95, %117, %cst_139 {dimension_numbers = #tpu.dot_dimension_numbers<[1], [0], [0], [1], [0, 0, 1, 1], [], []>} : vector<8x16xbf16>, vector<16x4xbf16>, vector<8x4xf32> -> vector<8x4xf32>
    %c40_140 = arith.constant 40 : index
    %c0_141 = arith.constant 0 : index
    %119 = vector.load %arg13[%c40_140, %c0_141] : memref<72x64xf32, #tpu.memory_space<vmem>>, vector<8x4xf32>
    tpu.vector_store %arg13[%c40_140, %c0_141], %118 {strides = array<i32>} : memref<72x64xf32, #tpu.memory_space<vmem>>, vector<8x4xf32>,
    %c6_142 = arith.constant 6 : index
    %c0_143 = arith.constant 0 : index
    %c0_144 = arith.constant 0 : index
    %120 = vector.load %arg7[%c6_142, %c0_143, %c0_144] : memref<9x16x4xbf16, #tpu.memory_space<vmem>>, vector<1x16x4xbf16>
    %121 = vector.shape_cast %120 : vector<1x16x4xbf16> to vector<16x4xbf16>
    %cst_145 = arith.constant dense<0.000000e+00> : vector<8x4xf32>
    %122 = tpu.matmul %95, %121, %cst_145 {dimension_numbers = #tpu.dot_dimension_numbers<[1], [0], [0], [1], [0, 0, 1, 1], [], []>} : vector<8x16xbf16>, vector<16x4xbf16>, vector<8x4xf32> -> vector<8x4xf32>
    %c48_146 = arith.constant 48 : index
    %c0_147 = arith.constant 0 : index
    %123 = vector.load %arg13[%c48_146, %c0_147] : memref<72x64xf32, #tpu.memory_space<vmem>>, vector<8x4xf32>
    tpu.vector_store %arg13[%c48_146, %c0_147], %122 {strides = array<i32>} : memref<72x64xf32, #tpu.memory_space<vmem>>, vector<8x4xf32>,
    %c7_148 = arith.constant 7 : index
    %c0_149 = arith.constant 0 : index
    %c0_150 = arith.constant 0 : index
    %124 = vector.load %arg7[%c7_148, %c0_149, %c0_150] : memref<9x16x4xbf16, #tpu.memory_space<vmem>>, vector<1x16x4xbf16>
    %125 = vector.shape_cast %124 : vector<1x16x4xbf16> to vector<16x4xbf16>
    %cst_151 = arith.constant dense<0.000000e+00> : vector<8x4xf32>
    %126 = tpu.matmul %95, %125, %cst_151 {dimension_numbers = #tpu.dot_dimension_numbers<[1], [0], [0], [1], [0, 0, 1, 1], [], []>} : vector<8x16xbf16>, vector<16x4xbf16>, vector<8x4xf32> -> vector<8x4xf32>
    %c56_152 = arith.constant 56 : index
    %c0_153 = arith.constant 0 : index
    %127 = vector.load %arg13[%c56_152, %c0_153] : memref<72x64xf32, #tpu.memory_space<vmem>>, vector<8x4xf32>
    tpu.vector_store %arg13[%c56_152, %c0_153], %126 {strides = array<i32>} : memref<72x64xf32, #tpu.memory_space<vmem>>, vector<8x4xf32>,
    %c8_154 = arith.constant 8 : index
    %c0_155 = arith.constant 0 : index
    %c0_156 = arith.constant 0 : index
    %128 = vector.load %arg7[%c8_154, %c0_155, %c0_156] : memref<9x16x4xbf16, #tpu.memory_space<vmem>>, vector<1x16x4xbf16>
    %129 = vector.shape_cast %128 : vector<1x16x4xbf16> to vector<16x4xbf16>
    %cst_157 = arith.constant dense<0.000000e+00> : vector<8x4xf32>
    %130 = tpu.matmul %95, %129, %cst_157 {dimension_numbers = #tpu.dot_dimension_numbers<[1], [0], [0], [1], [0, 0, 1, 1], [], []>} : vector<8x16xbf16>, vector<16x4xbf16>, vector<8x4xf32> -> vector<8x4xf32>
    %c64_158 = arith.constant 64 : index
    %c0_159 = arith.constant 0 : index
    %131 = vector.load %arg13[%c64_158, %c0_159] : memref<72x64xf32, #tpu.memory_space<vmem>>, vector<8x4xf32>
    tpu.vector_store %arg13[%c64_158, %c0_159], %130 {strides = array<i32>} : memref<72x64xf32, #tpu.memory_space<vmem>>, vector<8x4xf32>,
    %c0_160 = arith.constant 0 : index
    %c0_161 = arith.constant 0 : index
    %132 = vector.load %arg13[%c0_160, %c0_161] : memref<72x64xf32, #tpu.memory_space<vmem>>, vector<72x4xf32>
    %133 = arith.truncf %132 : vector<72x4xf32> to vector<72x4xbf16>
    %c0_162 = arith.constant 0 : index
    %c0_163 = arith.constant 0 : index
    %134 = vector.load %arg8[%c0_162, %c0_163] : memref<8x72xbf16, #tpu.memory_space<vmem>>, vector<8x72xbf16>
    %cst_164 = arith.constant dense<0.000000e+00> : vector<8x4xf32>
    %135 = tpu.matmul %134, %133, %cst_164 {dimension_numbers = #tpu.dot_dimension_numbers<[1], [0], [0], [1], [0, 0, 1, 1], [], []>} : vector<8x72xbf16>, vector<72x4xbf16>, vector<8x4xf32> -> vector<8x4xf32>
    %c0_165 = arith.constant 0 : index
    %c0_166 = arith.constant 0 : index
    %136 = vector.load %arg9[%c0_165, %c0_166] : memref<8x1xf32, #tpu.memory_space<vmem>>, vector<8x1xf32>
    %137 = vector.broadcast %136 : vector<8x1xf32> to vector<8x4xf32>
    %138 = arith.addf %135, %137 : vector<8x4xf32>
    %cst_167 = arith.constant 0.00999999977 : f32
    %139 = vector.broadcast %cst_167 : f32 to vector<8x4xf32>
    %140 = arith.mulf %139, %138 : vector<8x4xf32>
    %141 = arith.maximumf %138, %140 : vector<8x4xf32>
    %cst_168 = arith.constant 0.000000e+00 : f32
    %142 = vector.broadcast %cst_168 : f32 to vector<2x10xf32>
    %143 = vector.extract_strided_slice %141 {offsets = [0, 0], sizes = [2, 4], strides = [1, 1]} : vector<8x4xf32> to vector<2x4xf32>
    %144 = arith.truncf %143 : vector<2x4xf32> to vector<2x4xbf16>
    %c0_169 = arith.constant 0 : index
    %c0_170 = arith.constant 0 : index
    %c0_171 = arith.constant 0 : index
    %145 = vector.load %arg10[%c0_169, %c0_170, %c0_171] : memref<4x4x10xbf16, #tpu.memory_space<vmem>>, vector<1x4x10xbf16>
    %146 = vector.shape_cast %145 : vector<1x4x10xbf16> to vector<4x10xbf16>
    %cst_172 = arith.constant dense<0.000000e+00> : vector<2x10xf32>
    %147 = tpu.matmul %144, %146, %cst_172 {dimension_numbers = #tpu.dot_dimension_numbers<[1], [0], [0], [1], [0, 0, 1, 1], [], []>} : vector<2x4xbf16>, vector<4x10xbf16>, vector<2x10xf32> -> vector<2x10xf32>
    %148 = arith.addf %142, %147 : vector<2x10xf32>
    %149 = vector.extract_strided_slice %141 {offsets = [2, 0], sizes = [2, 4], strides = [1, 1]} : vector<8x4xf32> to vector<2x4xf32>
    %150 = arith.truncf %149 : vector<2x4xf32> to vector<2x4xbf16>
    %c1_173 = arith.constant 1 : index
    %c0_174 = arith.constant 0 : index
    %c0_175 = arith.constant 0 : index
    %151 = vector.load %arg10[%c1_173, %c0_174, %c0_175] : memref<4x4x10xbf16, #tpu.memory_space<vmem>>, vector<1x4x10xbf16>
    %152 = vector.shape_cast %151 : vector<1x4x10xbf16> to vector<4x10xbf16>
    %cst_176 = arith.constant dense<0.000000e+00> : vector<2x10xf32>
    %153 = tpu.matmul %150, %152, %cst_176 {dimension_numbers = #tpu.dot_dimension_numbers<[1], [0], [0], [1], [0, 0, 1, 1], [], []>} : vector<2x4xbf16>, vector<4x10xbf16>, vector<2x10xf32> -> vector<2x10xf32>
    %154 = arith.addf %148, %153 : vector<2x10xf32>
    %155 = vector.extract_strided_slice %141 {offsets = [4, 0], sizes = [2, 4], strides = [1, 1]} : vector<8x4xf32> to vector<2x4xf32>
    %156 = arith.truncf %155 : vector<2x4xf32> to vector<2x4xbf16>
    %c2_177 = arith.constant 2 : index
    %c0_178 = arith.constant 0 : index
    %c0_179 = arith.constant 0 : index
    %157 = vector.load %arg10[%c2_177, %c0_178, %c0_179] : memref<4x4x10xbf16, #tpu.memory_space<vmem>>, vector<1x4x10xbf16>
    %158 = vector.shape_cast %157 : vector<1x4x10xbf16> to vector<4x10xbf16>
    %cst_180 = arith.constant dense<0.000000e+00> : vector<2x10xf32>
    %159 = tpu.matmul %156, %158, %cst_180 {dimension_numbers = #tpu.dot_dimension_numbers<[1], [0], [0], [1], [0, 0, 1, 1], [], []>} : vector<2x4xbf16>, vector<4x10xbf16>, vector<2x10xf32> -> vector<2x10xf32>
    %160 = arith.addf %154, %159 : vector<2x10xf32>
    %161 = vector.extract_strided_slice %141 {offsets = [6, 0], sizes = [2, 4], strides = [1, 1]} : vector<8x4xf32> to vector<2x4xf32>
    %162 = arith.truncf %161 : vector<2x4xf32> to vector<2x4xbf16>
    %c3_181 = arith.constant 3 : index
    %c0_182 = arith.constant 0 : index
    %c0_183 = arith.constant 0 : index
    %163 = vector.load %arg10[%c3_181, %c0_182, %c0_183] : memref<4x4x10xbf16, #tpu.memory_space<vmem>>, vector<1x4x10xbf16>
    %164 = vector.shape_cast %163 : vector<1x4x10xbf16> to vector<4x10xbf16>
    %cst_184 = arith.constant dense<0.000000e+00> : vector<2x10xf32>
    %165 = tpu.matmul %162, %164, %cst_184 {dimension_numbers = #tpu.dot_dimension_numbers<[1], [0], [0], [1], [0, 0, 1, 1], [], []>} : vector<2x4xbf16>, vector<4x10xbf16>, vector<2x10xf32> -> vector<2x10xf32>
    %166 = arith.addf %160, %165 : vector<2x10xf32>
    %c0_185 = arith.constant 0 : index
    %c0_186 = arith.constant 0 : index
    %167 = vector.load %arg11[%c0_185, %c0_186] : memref<1x10xf32, #tpu.memory_space<vmem>>, vector<1x10xf32>
    %168 = vector.broadcast %167 : vector<1x10xf32> to vector<2x10xf32>
    %169 = arith.addf %166, %168 : vector<2x10xf32>
    %c0_187 = arith.constant 0 : index
    %c0_188 = arith.constant 0 : index
    %170 = vector.load %arg12[%c0_187, %c0_188] : memref<2x10xf32, #tpu.memory_space<vmem>>, vector<2x10xf32>
    tpu.vector_store %arg12[%c0_187, %c0_188], %169 {strides = array<i32>} : memref<2x10xf32, #tpu.memory_space<vmem>>, vector<2x10xf32>,
    return
  }
}

</mosaic_0001>

<llo_original>
// kernel: _lambda_.1
$region0: #{_lambda_.1}
  #allocation0 [shape = 'u32[]', space=smem, size = 0x4, offset = 0x4, fixed_abs, tag = 'smem constant byte address 0x4 - core index']
  #allocation1 [shape = 'u32[144,128]{1,0:T(1,128)}', space=vmem, size = 0x12000, scoped, tag = 'internal scratch']
  #allocation2 [shape = 'f32[72,64]{1,0:T(8,128)}', space=vmem, size = 0x9000, scoped, tag = 'scratch operand']
  %s0 = inlined_call_operand.vmem [shape: f32[2,256], index: 0, kind: input, shape index: {}]
  %s1 = inlined_call_operand.hbm [shape: bf16[9,256,64], index: 1, kind: input, shape index: {}]
  %s2 = inlined_call_operand.vmem [shape: bf16[8,18], index: 2, kind: input, shape index: {}]
  %s3 = inlined_call_operand.vmem [shape: f32[8,1], index: 3, kind: input, shape index: {}]
  %s4 = inlined_call_operand.vmem [shape: bf16[9,64,16], index: 4, kind: input, shape index: {}]
  %s5 = inlined_call_operand.vmem [shape: bf16[8,72], index: 5, kind: input, shape index: {}]
  %s6 = inlined_call_operand.vmem [shape: f32[8,1], index: 6, kind: input, shape index: {}]
  %s7 = inlined_call_operand.vmem [shape: bf16[9,16,4], index: 7, kind: input, shape index: {}]
  %s8 = inlined_call_operand.vmem [shape: bf16[8,72], index: 8, kind: input, shape index: {}]
  %s9 = inlined_call_operand.vmem [shape: f32[8,1], index: 9, kind: input, shape index: {}]
  %s10 = inlined_call_operand.vmem [shape: bf16[4,4,10], index: 10, kind: input, shape index: {}]
  %s11 = inlined_call_operand.vmem [shape: f32[1,10], index: 11, kind: input, shape index: {}]
  %s12 = inlined_call_operand.hbm [shape: f32[2,10], index: 12, kind: output, shape index: {}]
  %s13 = sld [smem:[#allocation0]]
  $region62: #{_lambda_.1} parent=0
    _
  %s15 = ssub.s32 1, %s13
  %s16 = scalar_select 0, %s15, %s13
  $region1: #{_lambda_.1} parent=0
    #allocation3 [shape = 'u8[589824]{0}', space=vmem, size = 0x90000, scoped, tag = 'input window, operand 1, single buffered']
    #allocation4 [shape = 's32[1]{0}', space=sflag, size = 0x4, scoped, tag = 'scoped memory for _lambda_.1']
    #allocation5 [shape = 's32[1]{0}', space=sflag, size = 0x4, scoped, tag = 'scoped memory for _lambda_.1']
    #allocation6 [shape = 'u8[1024]{0}', space=vmem, size = 0x400, scoped, tag = 'output window, operand 0, single buffered']
    %17 = vsyncpa [#allocation4], 0
    %18 = vsyncpa [#allocation5], 0
    // Predicated region
    $region2: #{_lambda_.1} parent=1 // pred_check
      _
    $region3: #{_lambda_.1} parent=1 // pred_check_branch
      %20 = sbr.rel (0) target = $region5
    $region4: #{_lambda_.1} parent=1 // pred_region
      _
    $region5: #{_lambda_.1} parent=1 // pred_fallthru
      _
    // Predicated region
    $region6: #{_lambda_.1} parent=1 // pred_check
      _
    $region7: #{_lambda_.1} parent=1 // pred_check_branch
      %22 = sbr.rel (0) target = $region9
    $region8: #{_lambda_.1} parent=1 // pred_region
      %s24 = ssub.s32 18432, 18432
      %25 = vsyncadd [#allocation4], %s24
      %s26 = sshll.u32 [#allocation3], 4
      %s27 = int_to_ptr.vmem [resolvable:$true] %s26
      %32 = dma.hbm_to_vmem [thread:$0]  %s1, 18432, %s27, [#allocation4], 64, 64, 4
    $region9: #{_lambda_.1} parent=1 // pred_fallthru
      _
    // Predicated region
    $region10: #{_lambda_.1} parent=1 // pred_check
      _
    $region11: #{_lambda_.1} parent=1 // pred_check_branch
      %34 = sbr.rel (0) target = $region13
    $region12: #{_lambda_.1} parent=1 // pred_region
      _
    $region13: #{_lambda_.1} parent=1 // pred_fallthru
      _
    // Predicated region
    $region14: #{_lambda_.1} parent=1 // pred_check
      _
    $region15: #{_lambda_.1} parent=1 // pred_check_branch
      %36 = sbr.rel (0) target = $region17
    $region16: #{_lambda_.1} parent=1 // pred_region
      _
    $region17: #{_lambda_.1} parent=1 // pred_fallthru
      _
    // Predicated region
    $region18: #{_lambda_.1} parent=1 // pred_check
      _
    $region19: #{_lambda_.1} parent=1 // pred_check_branch
      %38 = sbr.rel (0) target = $region21
    $region20: #{_lambda_.1} parent=1 // pred_region
      _
    $region21: #{_lambda_.1} parent=1 // pred_fallthru
      _
    // Predicated region
    $region22: #{_lambda_.1} parent=1 // pred_check
      _
    $region23: #{_lambda_.1} parent=1 // pred_check_branch
      %40 = sbr.rel (0) target = $region25
    $region24: #{_lambda_.1} parent=1 // pred_region
      _
    $region25: #{_lambda_.1} parent=1 // pred_fallthru
      _
    // Predicated region
    $region26: #{_lambda_.1} parent=1 // pred_check
      _
    $region27: #{_lambda_.1} parent=1 // pred_check_branch
      %42 = sbr.rel (0) target = $region29
    $region28: #{_lambda_.1} parent=1 // pred_region
      _
    $region29: #{_lambda_.1} parent=1 // pred_fallthru
      _
    // Predicated region
    $region30: #{_lambda_.1} parent=1 // pred_check
      _
    $region31: #{_lambda_.1} parent=1 // pred_check_branch
      %44 = sbr.rel (0) target = $region33
    $region32: #{_lambda_.1} parent=1 // pred_region
      _
    $region33: #{_lambda_.1} parent=1 // pred_fallthru
      _
    // Predicated region
    $region34: #{_lambda_.1} parent=1 // pred_check
      _
    $region35: #{_lambda_.1} parent=1 // pred_check_branch
      %46 = sbr.rel (0) target = $region37
    $region36: #{_lambda_.1} parent=1 // pred_region
      _
    $region37: #{_lambda_.1} parent=1 // pred_fallthru
      _
    // Predicated region
    $region38: #{_lambda_.1} parent=1 // pred_check
      _
    $region39: #{_lambda_.1} parent=1 // pred_check_branch
      %48 = sbr.rel (0) target = $region41
    $region40: #{_lambda_.1} parent=1 // pred_region
      _
    $region41: #{_lambda_.1} parent=1 // pred_fallthru
      _
    // Predicated region
    $region42: #{_lambda_.1} parent=1 // pred_check
      _
    $region43: #{_lambda_.1} parent=1 // pred_check_branch
      %50 = sbr.rel (0) target = $region45
    $region44: #{_lambda_.1} parent=1 // pred_region
      _
    $region45: #{_lambda_.1} parent=1 // pred_fallthru
      _
    // Predicated region
    $region46: #{_lambda_.1} parent=1 // pred_check
      _
    $region47: #{_lambda_.1} parent=1 // pred_check_branch
      %52 = sbr.rel (0) target = $region49
    $region48: #{_lambda_.1} parent=1 // pred_region
      _
    $region49: #{_lambda_.1} parent=1 // pred_fallthru
      _
    // Predicated region
    $region50: #{_lambda_.1} parent=1 // pred_check
      _
    $region51: #{_lambda_.1} parent=1 // pred_check_branch
      %54 = sbr.rel (0) target = $region53
    $region52: #{_lambda_.1} parent=1 // pred_region
      %55 = dma.done [#allocation4], 18432
    $region53: #{_lambda_.1} parent=1 // pred_fallthru
      _
    %v57 = vld [vmem:[%s0] sm:$0xf]
    %v60 = vunpack.c.l.s4 1983009808
    %v61 = vunpack.c.0.s8 %v60
    %v62 = vlaneseq
    %v63 = vshrl.u32 %v62, 7
    %v64 = vsub.s32 %v61, %v63
    %v65 = vrot.slane %v57, %v64
    %v66 = vcombine.high %v65, %v65
    %v69 = vpack.c.bf16 %v65, %v65
    %v70 = vpack.c.bf16 %v66, %v66
    %v71 = vld [vmem:[#allocation3] sm:$0xf]
    %v72 = vld [vmem:[#allocation3 + $0x4] sm:$0xf]
    %v73 = vld [vmem:[#allocation3 + $0x8] sm:$0xf]
    %v74 = vld [vmem:[#allocation3 + $0xc] sm:$0xf]
    %v75 = vld [vmem:[#allocation3 + $0x10] sm:$0xf]
    %v76 = vld [vmem:[#allocation3 + $0x14] sm:$0xf]
    %v77 = vld [vmem:[#allocation3 + $0x18] sm:$0xf]
    %v78 = vld [vmem:[#allocation3 + $0x1c] sm:$0xf]
    %v79 = vld [vmem:[#allocation3 + $0x20] sm:$0xf]
    %v80 = vld [vmem:[#allocation3 + $0x24] sm:$0xf]
    %v81 = vld [vmem:[#allocation3 + $0x28] sm:$0xf]
    %v82 = vld [vmem:[#allocation3 + $0x2c] sm:$0xf]
    %v83 = vld [vmem:[#allocation3 + $0x30] sm:$0xf]
    %v84 = vld [vmem:[#allocation3 + $0x34] sm:$0xf]
    %v85 = vld [vmem:[#allocation3 + $0x38] sm:$0xf]
    %v86 = vld [vmem:[#allocation3 + $0x3c] sm:$0xf]
    %v87 = vld [vmem:[#allocation3 + $0x40] sm:$0xf]
    %v88 = vld [vmem:[#allocation3 + $0x44] sm:$0xf]
    %v89 = vld [vmem:[#allocation3 + $0x48] sm:$0xf]
    %v90 = vld [vmem:[#allocation3 + $0x4c] sm:$0xf]
    %v91 = vld [vmem:[#allocation3 + $0x50] sm:$0xf]
    %v92 = vld [vmem:[#allocation3 + $0x54] sm:$0xf]
    %v93 = vld [vmem:[#allocation3 + $0x58] sm:$0xf]
    %v94 = vld [vmem:[#allocation3 + $0x5c] sm:$0xf]
    %v95 = vld [vmem:[#allocation3 + $0x60] sm:$0xf]
    %v96 = vld [vmem:[#allocation3 + $0x64] sm:$0xf]
    %v97 = vld [vmem:[#allocation3 + $0x68] sm:$0xf]
    %v98 = vld [vmem:[#allocation3 + $0x6c] sm:$0xf]
    %v99 = vld [vmem:[#allocation3 + $0x70] sm:$0xf]
    %v100 = vld [vmem:[#allocation3 + $0x74] sm:$0xf]
    %v101 = vld [vmem:[#allocation3 + $0x78] sm:$0xf]
    %v102 = vld [vmem:[#allocation3 + $0x7c] sm:$0xf]
    %v135 = vunpack.c.l.b16 %v71
    %v136 = vunpack.c.l.b16 %v72
    %v137 = vunpack.c.l.b16 %v73
    %v138 = vunpack.c.l.b16 %v74
    %v139 = vunpack.c.l.b16 %v75
    %v140 = vunpack.c.l.b16 %v76
    %v141 = vunpack.c.l.b16 %v77
    %v142 = vunpack.c.l.b16 %v78
    %v143 = vunpack.c.l.b16 %v79
    %v144 = vunpack.c.l.b16 %v80
    %v145 = vunpack.c.l.b16 %v81
    %v146 = vunpack.c.l.b16 %v82
    %v147 = vunpack.c.l.b16 %v83
    %v148 = vunpack.c.l.b16 %v84
    %v149 = vunpack.c.l.b16 %v85
    %v150 = vunpack.c.l.b16 %v86
    %v151 = vunpack.c.l.b16 %v87
    %v152 = vunpack.c.l.b16 %v88
    %v153 = vunpack.c.l.b16 %v89
    %v154 = vunpack.c.l.b16 %v90
    %v155 = vunpack.c.l.b16 %v91
    %v156 = vunpack.c.l.b16 %v92
    %v157 = vunpack.c.l.b16 %v93
    %v158 = vunpack.c.l.b16 %v94
    %v159 = vunpack.c.l.b16 %v95
    %v160 = vunpack.c.l.b16 %v96
    %v161 = vunpack.c.l.b16 %v97
    %v162 = vunpack.c.l.b16 %v98
    %v163 = vunpack.c.l.b16 %v99
    %v164 = vunpack.c.l.b16 %v100
    %v165 = vunpack.c.l.b16 %v101
    %v166 = vunpack.c.l.b16 %v102
    %v167 = vpack.c.b16 %v136, %v135
    %v168 = vpack.c.b16 %v138, %v137
    %v169 = vpack.c.b16 %v140, %v139
    %v170 = vpack.c.b16 %v142, %v141
    %v171 = vpack.c.b16 %v144, %v143
    %v172 = vpack.c.b16 %v146, %v145
    %v173 = vpack.c.b16 %v148, %v147
    %v174 = vpack.c.b16 %v150, %v149
    %v175 = vpack.c.b16 %v152, %v151
    %v176 = vpack.c.b16 %v154, %v153
    %v177 = vpack.c.b16 %v156, %v155
    %v178 = vpack.c.b16 %v158, %v157
    %v179 = vpack.c.b16 %v160, %v159
    %v180 = vpack.c.b16 %v162, %v161
    %v181 = vpack.c.b16 %v164, %v163
    %v182 = vpack.c.b16 %v166, %v165
    %199 = vmatprep.subr.bf16.mxu0 0
    %200 = vmatpush1.bf16.msra.mxu0 %v167
    %201 = vmatprep.subr.bf16.mxu0 0
    %202 = vmatpush1.bf16.msra.mxu0 %v168
    %203 = vmatprep.subr.bf16.mxu0 0
    %204 = vmatpush1.bf16.msra.mxu0 %v169
    %205 = vmatprep.subr.bf16.mxu0 0
    %206 = vmatpush1.bf16.msra.mxu0 %v170
    %207 = vmatprep.subr.bf16.mxu0 0
    %208 = vmatpush1.bf16.msra.mxu0 %v171
    %209 = vmatprep.subr.bf16.mxu0 0
    %210 = vmatpush1.bf16.msra.mxu0 %v172
    %211 = vmatprep.subr.bf16.mxu0 0
    %212 = vmatpush1.bf16.msra.mxu0 %v173
    %213 = vmatprep.subr.bf16.mxu0 0
    %214 = vmatpush1.bf16.msra.mxu0 %v174
    %215 = vmatprep.subr.bf16.mxu0 0
    %216 = vmatpush1.bf16.msra.mxu0 %v175
    %217 = vmatprep.subr.bf16.mxu0 0
    %218 = vmatpush1.bf16.msra.mxu0 %v176
    %219 = vmatprep.subr.bf16.mxu0 0
    %220 = vmatpush1.bf16.msra.mxu0 %v177
    %221 = vmatprep.subr.bf16.mxu0 0
    %222 = vmatpush1.bf16.msra.mxu0 %v178
    %223 = vmatprep.subr.bf16.mxu0 0
    %224 = vmatpush1.bf16.msra.mxu0 %v179
    %225 = vmatprep.subr.bf16.mxu0 0
    %226 = vmatpush1.bf16.msra.mxu0 %v180
    %227 = vmatprep.subr.bf16.mxu0 0
    %228 = vmatpush1.bf16.msra.mxu0 %v181
    %229 = vmatprep.subr.bf16.mxu0 0
    %230 = vmatpush1.bf16.msra.mxu0 %v182
    %231 = vmatprep.mubr.bf16.mxu0 %v70
    %232 = vmatmul.mubr.bf16.gmra.mrb[0].mxu0 %v69
    %v233 = vpop.f32.mrb[0].mxu0
    %v234 = vadd.f32 0.0, %v233
    %v235 = vpop.f32.mrb[0].mxu0
    %v236 = vpop.f32.mrb[0].mxu0
    %v237 = vpop.f32.mrb[0].mxu0
    %238 = vdwg.mxu0
    %vm239 = vcmask 517120
    %240 = vst.msk [vmem:[#allocation2] sm:$0x3] %vm239, %v234
    %s241 = scalar_lea.vmem [#allocation3], 128
    %v242 = vld [vmem:[%s241] sm:$0xf]
    %v243 = vld [vmem:[%s241 + $0x4] sm:$0xf]
    %v244 = vld [vmem:[%s241 + $0x8] sm:$0xf]
    %v245 = vld [vmem:[%s241 + $0xc] sm:$0xf]
    %v246 = vld [vmem:[%s241 + $0x10] sm:$0xf]
    %v247 = vld [vmem:[%s241 + $0x14] sm:$0xf]
    %v248 = vld [vmem:[%s241 + $0x18] sm:$0xf]
    %v249 = vld [vmem:[%s241 + $0x1c] sm:$0xf]
    %v250 = vld [vmem:[%s241 + $0x20] sm:$0xf]
    %v251 = vld [vmem:[%s241 + $0x24] sm:$0xf]
    %v252 = vld [vmem:[%s241 + $0x28] sm:$0xf]
    %v253 = vld [vmem:[%s241 + $0x2c] sm:$0xf]
    %v254 = vld [vmem:[%s241 + $0x30] sm:$0xf]
    %v255 = vld [vmem:[%s241 + $0x34] sm:$0xf]
    %v256 = vld [vmem:[%s241 + $0x38] sm:$0xf]
    %v257 = vld [vmem:[%s241 + $0x3c] sm:$0xf]
    %v258 = vld [vmem:[%s241 + $0x40] sm:$0xf]
    %v259 = vld [vmem:[%s241 + $0x44] sm:$0xf]
    %v260 = vld [vmem:[%s241 + $0x48] sm:$0xf]
    %v261 = vld [vmem:[%s241 + $0x4c] sm:$0xf]
    %v262 = vld [vmem:[%s241 + $0x50] sm:$0xf]
    %v263 = vld [vmem:[%s241 + $0x54] sm:$0xf]
    %v264 = vld [vmem:[%s241 + $0x58] sm:$0xf]
    %v265 = vld [vmem:[%s241 + $0x5c] sm:$0xf]
    %v266 = vld [vmem:[%s241 + $0x60] sm:$0xf]
    %v267 = vld [vmem:[%s241 + $0x64] sm:$0xf]
    %v268 = vld [vmem:[%s241 + $0x68] sm:$0xf]
    %v269 = vld [vmem:[%s241 + $0x6c] sm:$0xf]
    %v270 = vld [vmem:[%s241 + $0x70] sm:$0xf]
    %v271 = vld [vmem:[%s241 + $0x74] sm:$0xf]
    %v272 = vld [vmem:[%s241 + $0x78] sm:$0xf]
    %v273 = vld [vmem:[%s241 + $0x7c] sm:$0xf]
    %v306 = vunpack.c.l.b16 %v242
    %v307 = vunpack.c.l.b16 %v243
    %v308 = vunpack.c.l.b16 %v244
    %v309 = vunpack.c.l.b16 %v245
    %v310 = vunpack.c.l.b16 %v246
    %v311 = vunpack.c.l.b16 %v247
    %v312 = vunpack.c.l.b16 %v248
    %v313 = vunpack.c.l.b16 %v249
    %v314 = vunpack.c.l.b16 %v250
    %v315 = vunpack.c.l.b16 %v251
    %v316 = vunpack.c.l.b16 %v252
    %v317 = vunpack.c.l.b16 %v253
    %v318 = vunpack.c.l.b16 %v254
    %v319 = vunpack.c.l.b16 %v255
    %v320 = vunpack.c.l.b16 %v256
    %v321 = vunpack.c.l.b16 %v257
    %v322 = vunpack.c.l.b16 %v258
    %v323 = vunpack.c.l.b16 %v259
    %v324 = vunpack.c.l.b16 %v260
    %v325 = vunpack.c.l.b16 %v261
    %v326 = vunpack.c.l.b16 %v262
    %v327 = vunpack.c.l.b16 %v263
    %v328 = vunpack.c.l.b16 %v264
    %v329 = vunpack.c.l.b16 %v265
    %v330 = vunpack.c.l.b16 %v266
    %v331 = vunpack.c.l.b16 %v267
    %v332 = vunpack.c.l.b16 %v268
    %v333 = vunpack.c.l.b16 %v269
    %v334 = vunpack.c.l.b16 %v270
    %v335 = vunpack.c.l.b16 %v271
    %v336 = vunpack.c.l.b16 %v272
    %v337 = vunpack.c.l.b16 %v273
    %v338 = vpack.c.b16 %v307, %v306
    %v339 = vpack.c.b16 %v309, %v308
    %v340 = vpack.c.b16 %v311, %v310
    %v341 = vpack.c.b16 %v313, %v312
    %v342 = vpack.c.b16 %v315, %v314
    %v343 = vpack.c.b16 %v317, %v316
    %v344 = vpack.c.b16 %v319, %v318
    %v345 = vpack.c.b16 %v321, %v320
    %v346 = vpack.c.b16 %v323, %v322
    %v347 = vpack.c.b16 %v325, %v324
    %v348 = vpack.c.b16 %v327, %v326
    %v349 = vpack.c.b16 %v329, %v328
    %v350 = vpack.c.b16 %v331, %v330
    %v351 = vpack.c.b16 %v333, %v332
    %v352 = vpack.c.b16 %v335, %v334
    %v353 = vpack.c.b16 %v337, %v336
    %370 = vmatprep.subr.bf16.mxu0 0
    %371 = vmatpush1.bf16.msra.mxu0 %v338
    %372 = vmatprep.subr.bf16.mxu0 0
    %373 = vmatpush1.bf16.msra.mxu0 %v339
    %374 = vmatprep.subr.bf16.mxu0 0
    %375 = vmatpush1.bf16.msra.mxu0 %v340
    %376 = vmatprep.subr.bf16.mxu0 0
    %377 = vmatpush1.bf16.msra.mxu0 %v341
    %378 = vmatprep.subr.bf16.mxu0 0
    %379 = vmatpush1.bf16.msra.mxu0 %v342
    %380 = vmatprep.subr.bf16.mxu0 0
    %381 = vmatpush1.bf16.msra.mxu0 %v343
    %382 = vmatprep.subr.bf16.mxu0 0
    %383 = vmatpush1.bf16.msra.mxu0 %v344
    %384 = vmatprep.subr.bf16.mxu0 0
    %385 = vmatpush1.bf16.msra.mxu0 %v345
    %386 = vmatprep.subr.bf16.mxu0 0
    %387 = vmatpush1.bf16.msra.mxu0 %v346
    %388 = vmatprep.subr.bf16.mxu0 0
    %389 = vmatpush1.bf16.msra.mxu0 %v347
    %390 = vmatprep.subr.bf16.mxu0 0
    %391 = vmatpush1.bf16.msra.mxu0 %v348
    %392 = vmatprep.subr.bf16.mxu0 0
    %393 = vmatpush1.bf16.msra.mxu0 %v349
    %394 = vmatprep.subr.bf16.mxu0 0
    %395 = vmatpush1.bf16.msra.mxu0 %v350
    %396 = vmatprep.subr.bf16.mxu0 0
    %397 = vmatpush1.bf16.msra.mxu0 %v351
    %398 = vmatprep.subr.bf16.mxu0 0
    %399 = vmatpush1.bf16.msra.mxu0 %v352
    %400 = vmatprep.subr.bf16.mxu0 0
    %401 = vmatpush1.bf16.msra.mxu0 %v353
    %402 = vmatprep.mubr.bf16.mxu0 %v70
    %403 = vmatmul.mubr.bf16.gmra.mrb[0].mxu0 %v69
    %v404 = vpop.f32.mrb[0].mxu0
    %v405 = vadd.f32 0.0, %v404
    %v406 = vpop.f32.mrb[0].mxu0
    %v407 = vpop.f32.mrb[0].mxu0
    %v408 = vpop.f32.mrb[0].mxu0
    %409 = vdwg.mxu0
    %410 = vst.msk [vmem:[#allocation2 + $0x2] sm:$0x3] %vm239, %v405
    %s411 = scalar_lea.vmem [#allocation3], 256
    %v412 = vld [vmem:[%s411] sm:$0xf]
    %v413 = vld [vmem:[%s411 + $0x4] sm:$0xf]
    %v414 = vld [vmem:[%s411 + $0x8] sm:$0xf]
    %v415 = vld [vmem:[%s411 + $0xc] sm:$0xf]
    %v416 = vld [vmem:[%s411 + $0x10] sm:$0xf]
    %v417 = vld [vmem:[%s411 + $0x14] sm:$0xf]
    %v418 = vld [vmem:[%s411 + $0x18] sm:$0xf]
    %v419 = vld [vmem:[%s411 + $0x1c] sm:$0xf]
    %v420 = vld [vmem:[%s411 + $0x20] sm:$0xf]
    %v421 = vld [vmem:[%s411 + $0x24] sm:$0xf]
    %v422 = vld [vmem:[%s411 + $0x28] sm:$0xf]
    %v423 = vld [vmem:[%s411 + $0x2c] sm:$0xf]
    %v424 = vld [vmem:[%s411 + $0x30] sm:$0xf]
    %v425 = vld [vmem:[%s411 + $0x34] sm:$0xf]
    %v426 = vld [vmem:[%s411 + $0x38] sm:$0xf]
    %v427 = vld [vmem:[%s411 + $0x3c] sm:$0xf]
    %v428 = vld [vmem:[%s411 + $0x40] sm:$0xf]
    %v429 = vld [vmem:[%s411 + $0x44] sm:$0xf]
    %v430 = vld [vmem:[%s411 + $0x48] sm:$0xf]
    %v431 = vld [vmem:[%s411 + $0x4c] sm:$0xf]
    %v432 = vld [vmem:[%s411 + $0x50] sm:$0xf]
    %v433 = vld [vmem:[%s411 + $0x54] sm:$0xf]
    %v434 = vld [vmem:[%s411 + $0x58] sm:$0xf]
    %v435 = vld [vmem:[%s411 + $0x5c] sm:$0xf]
    %v436 = vld [vmem:[%s411 + $0x60] sm:$0xf]
    %v437 = vld [vmem:[%s411 + $0x64] sm:$0xf]
    %v438 = vld [vmem:[%s411 + $0x68] sm:$0xf]
    %v439 = vld [vmem:[%s411 + $0x6c] sm:$0xf]
    %v440 = vld [vmem:[%s411 + $0x70] sm:$0xf]
    %v441 = vld [vmem:[%s411 + $0x74] sm:$0xf]
    %v442 = vld [vmem:[%s411 + $0x78] sm:$0xf]
    %v443 = vld [vmem:[%s411 + $0x7c] sm:$0xf]
    %v476 = vunpack.c.l.b16 %v412
    %v477 = vunpack.c.l.b16 %v413
    %v478 = vunpack.c.l.b16 %v414
    %v479 = vunpack.c.l.b16 %v415
    %v480 = vunpack.c.l.b16 %v416
    %v481 = vunpack.c.l.b16 %v417
    %v482 = vunpack.c.l.b16 %v418
    %v483 = vunpack.c.l.b16 %v419
    %v484 = vunpack.c.l.b16 %v420
    %v485 = vunpack.c.l.b16 %v421
    %v486 = vunpack.c.l.b16 %v422
    %v487 = vunpack.c.l.b16 %v423
    %v488 = vunpack.c.l.b16 %v424
    %v489 = vunpack.c.l.b16 %v425
    %v490 = vunpack.c.l.b16 %v426
    %v491 = vunpack.c.l.b16 %v427
    %v492 = vunpack.c.l.b16 %v428
    %v493 = vunpack.c.l.b16 %v429
    %v494 = vunpack.c.l.b16 %v430
    %v495 = vunpack.c.l.b16 %v431
    %v496 = vunpack.c.l.b16 %v432
    %v497 = vunpack.c.l.b16 %v433
    %v498 = vunpack.c.l.b16 %v434
    %v499 = vunpack.c.l.b16 %v435
    %v500 = vunpack.c.l.b16 %v436
    %v501 = vunpack.c.l.b16 %v437
    %v502 = vunpack.c.l.b16 %v438
    %v503 = vunpack.c.l.b16 %v439
    %v504 = vunpack.c.l.b16 %v440
    %v505 = vunpack.c.l.b16 %v441
    %v506 = vunpack.c.l.b16 %v442
    %v507 = vunpack.c.l.b16 %v443
    %v508 = vpack.c.b16 %v477, %v476
    %v509 = vpack.c.b16 %v479, %v478
    %v510 = vpack.c.b16 %v481, %v480
    %v511 = vpack.c.b16 %v483, %v482
    %v512 = vpack.c.b16 %v485, %v484
    %v513 = vpack.c.b16 %v487, %v486
    %v514 = vpack.c.b16 %v489, %v488
    %v515 = vpack.c.b16 %v491, %v490
    %v516 = vpack.c.b16 %v493, %v492
    %v517 = vpack.c.b16 %v495, %v494
    %v518 = vpack.c.b16 %v497, %v496
    %v519 = vpack.c.b16 %v499, %v498
    %v520 = vpack.c.b16 %v501, %v500
    %v521 = vpack.c.b16 %v503, %v502
    %v522 = vpack.c.b16 %v505, %v504
    %v523 = vpack.c.b16 %v507, %v506
    %540 = vmatprep.subr.bf16.mxu0 0
    %541 = vmatpush1.bf16.msra.mxu0 %v508
    %542 = vmatprep.subr.bf16.mxu0 0
    %543 = vmatpush1.bf16.msra.mxu0 %v509
    %544 = vmatprep.subr.bf16.mxu0 0
    %545 = vmatpush1.bf16.msra.mxu0 %v510
    %546 = vmatprep.subr.bf16.mxu0 0
    %547 = vmatpush1.bf16.msra.mxu0 %v511
    %548 = vmatprep.subr.bf16.mxu0 0
    %549 = vmatpush1.bf16.msra.mxu0 %v512
    %550 = vmatprep.subr.bf16.mxu0 0
    %551 = vmatpush1.bf16.msra.mxu0 %v513
    %552 = vmatprep.subr.bf16.mxu0 0
    %553 = vmatpush1.bf16.msra.mxu0 %v514
    %554 = vmatprep.subr.bf16.mxu0 0
    %555 = vmatpush1.bf16.msra.mxu0 %v515
    %556 = vmatprep.subr.bf16.mxu0 0
    %557 = vmatpush1.bf16.msra.mxu0 %v516
    %558 = vmatprep.subr.bf16.mxu0 0
    %559 = vmatpush1.bf16.msra.mxu0 %v517
    %560 = vmatprep.subr.bf16.mxu0 0
    %561 = vmatpush1.bf16.msra.mxu0 %v518
    %562 = vmatprep.subr.bf16.mxu0 0
    %563 = vmatpush1.bf16.msra.mxu0 %v519
    %564 = vmatprep.subr.bf16.mxu0 0
    %565 = vmatpush1.bf16.msra.mxu0 %v520
    %566 = vmatprep.subr.bf16.mxu0 0
    %567 = vmatpush1.bf16.msra.mxu0 %v521
    %568 = vmatprep.subr.bf16.mxu0 0
    %569 = vmatpush1.bf16.msra.mxu0 %v522
    %570 = vmatprep.subr.bf16.mxu0 0
    %571 = vmatpush1.bf16.msra.mxu0 %v523
    %572 = vmatprep.mubr.bf16.mxu0 %v70
    %573 = vmatmul.mubr.bf16.gmra.mrb[0].mxu0 %v69
    %v574 = vpop.f32.mrb[0].mxu0
    %v575 = vadd.f32 0.0, %v574
    %v576 = vpop.f32.mrb[0].mxu0
    %v577 = vpop.f32.mrb[0].mxu0
    %v578 = vpop.f32.mrb[0].mxu0
    %579 = vdwg.mxu0
    %580 = vst.msk [vmem:[#allocation2 + $0x4] sm:$0x3] %vm239, %v575
    %s581 = scalar_lea.vmem [#allocation3], 384
    %v582 = vld [vmem:[%s581] sm:$0xf]
    %v583 = vld [vmem:[%s581 + $0x4] sm:$0xf]
    %v584 = vld [vmem:[%s581 + $0x8] sm:$0xf]
    %v585 = vld [vmem:[%s581 + $0xc] sm:$0xf]
    %v586 = vld [vmem:[%s581 + $0x10] sm:$0xf]
    %v587 = vld [vmem:[%s581 + $0x14] sm:$0xf]
    %v588 = vld [vmem:[%s581 + $0x18] sm:$0xf]
    %v589 = vld [vmem:[%s581 + $0x1c] sm:$0xf]
    %v590 = vld [vmem:[%s581 + $0x20] sm:$0xf]
    %v591 = vld [vmem:[%s581 + $0x24] sm:$0xf]
    %v592 = vld [vmem:[%s581 + $0x28] sm:$0xf]
    %v593 = vld [vmem:[%s581 + $0x2c] sm:$0xf]
    %v594 = vld [vmem:[%s581 + $0x30] sm:$0xf]
    %v595 = vld [vmem:[%s581 + $0x34] sm:$0xf]
    %v596 = vld [vmem:[%s581 + $0x38] sm:$0xf]
    %v597 = vld [vmem:[%s581 + $0x3c] sm:$0xf]
    %v598 = vld [vmem:[%s581 + $0x40] sm:$0xf]
    %v599 = vld [vmem:[%s581 + $0x44] sm:$0xf]
    %v600 = vld [vmem:[%s581 + $0x48] sm:$0xf]
    %v601 = vld [vmem:[%s581 + $0x4c] sm:$0xf]
    %v602 = vld [vmem:[%s581 + $0x50] sm:$0xf]
    %v603 = vld [vmem:[%s581 + $0x54] sm:$0xf]
    %v604 = vld [vmem:[%s581 + $0x58] sm:$0xf]
    %v605 = vld [vmem:[%s581 + $0x5c] sm:$0xf]
    %v606 = vld [vmem:[%s581 + $0x60] sm:$0xf]
    %v607 = vld [vmem:[%s581 + $0x64] sm:$0xf]
    %v608 = vld [vmem:[%s581 + $0x68] sm:$0xf]
    %v609 = vld [vmem:[%s581 + $0x6c] sm:$0xf]
    %v610 = vld [vmem:[%s581 + $0x70] sm:$0xf]
    %v611 = vld [vmem:[%s581 + $0x74] sm:$0xf]
    %v612 = vld [vmem:[%s581 + $0x78] sm:$0xf]
    %v613 = vld [vmem:[%s581 + $0x7c] sm:$0xf]
    %v646 = vunpack.c.l.b16 %v582
    %v647 = vunpack.c.l.b16 %v583
    %v648 = vunpack.c.l.b16 %v584
    %v649 = vunpack.c.l.b16 %v585
    %v650 = vunpack.c.l.b16 %v586
    %v651 = vunpack.c.l.b16 %v587
    %v652 = vunpack.c.l.b16 %v588
    %v653 = vunpack.c.l.b16 %v589
    %v654 = vunpack.c.l.b16 %v590
    %v655 = vunpack.c.l.b16 %v591
    %v656 = vunpack.c.l.b16 %v592
    %v657 = vunpack.c.l.b16 %v593
    %v658 = vunpack.c.l.b16 %v594
    %v659 = vunpack.c.l.b16 %v595
    %v660 = vunpack.c.l.b16 %v596
    %v661 = vunpack.c.l.b16 %v597
    %v662 = vunpack.c.l.b16 %v598
    %v663 = vunpack.c.l.b16 %v599
    %v664 = vunpack.c.l.b16 %v600
    %v665 = vunpack.c.l.b16 %v601
    %v666 = vunpack.c.l.b16 %v602
    %v667 = vunpack.c.l.b16 %v603
    %v668 = vunpack.c.l.b16 %v604
    %v669 = vunpack.c.l.b16 %v605
    %v670 = vunpack.c.l.b16 %v606
    %v671 = vunpack.c.l.b16 %v607
    %v672 = vunpack.c.l.b16 %v608
    %v673 = vunpack.c.l.b16 %v609
    %v674 = vunpack.c.l.b16 %v610
    %v675 = vunpack.c.l.b16 %v611
    %v676 = vunpack.c.l.b16 %v612
    %v677 = vunpack.c.l.b16 %v613
    %v678 = vpack.c.b16 %v647, %v646
    %v679 = vpack.c.b16 %v649, %v648
    %v680 = vpack.c.b16 %v651, %v650
    %v681 = vpack.c.b16 %v653, %v652
    %v682 = vpack.c.b16 %v655, %v654
    %v683 = vpack.c.b16 %v657, %v656
    %v684 = vpack.c.b16 %v659, %v658
    %v685 = vpack.c.b16 %v661, %v660
    %v686 = vpack.c.b16 %v663, %v662
    %v687 = vpack.c.b16 %v665, %v664
    %v688 = vpack.c.b16 %v667, %v666
    %v689 = vpack.c.b16 %v669, %v668
    %v690 = vpack.c.b16 %v671, %v670
    %v691 = vpack.c.b16 %v673, %v672
    %v692 = vpack.c.b16 %v675, %v674
    %v693 = vpack.c.b16 %v677, %v676
    %710 = vmatprep.subr.bf16.mxu0 0
    %711 = vmatpush1.bf16.msra.mxu0 %v678
    %712 = vmatprep.subr.bf16.mxu0 0
    %713 = vmatpush1.bf16.msra.mxu0 %v679
    %714 = vmatprep.subr.bf16.mxu0 0
    %715 = vmatpush1.bf16.msra.mxu0 %v680
    %716 = vmatprep.subr.bf16.mxu0 0
    %717 = vmatpush1.bf16.msra.mxu0 %v681
    %718 = vmatprep.subr.bf16.mxu0 0
    %719 = vmatpush1.bf16.msra.mxu0 %v682
    %720 = vmatprep.subr.bf16.mxu0 0
    %721 = vmatpush1.bf16.msra.mxu0 %v683
    %722 = vmatprep.subr.bf16.mxu0 0
    %723 = vmatpush1.bf16.msra.mxu0 %v684
    %724 = vmatprep.subr.bf16.mxu0 0
    %725 = vmatpush1.bf16.msra.mxu0 %v685
    %726 = vmatprep.subr.bf16.mxu0 0
    %727 = vmatpush1.bf16.msra.mxu0 %v686
    %728 = vmatprep.subr.bf16.mxu0 0
    %729 = vmatpush1.bf16.msra.mxu0 %v687
    %730 = vmatprep.subr.bf16.mxu0 0
    %731 = vmatpush1.bf16.msra.mxu0 %v688
    %732 = vmatprep.subr.bf16.mxu0 0
    %733 = vmatpush1.bf16.msra.mxu0 %v689
    %734 = vmatprep.subr.bf16.mxu0 0
    %735 = vmatpush1.bf16.msra.mxu0 %v690
    %736 = vmatprep.subr.bf16.mxu0 0
    %737 = vmatpush1.bf16.msra.mxu0 %v691
    %738 = vmatprep.subr.bf16.mxu0 0
    %739 = vmatpush1.bf16.msra.mxu0 %v692
    %740 = vmatprep.subr.bf16.mxu0 0
    %741 = vmatpush1.bf16.msra.mxu0 %v693
    %742 = vmatprep.mubr.bf16.mxu0 %v70
    %743 = vmatmul.mubr.bf16.gmra.mrb[0].mxu0 %v69
    %v744 = vpop.f32.mrb[0].mxu0
    %v745 = vadd.f32 0.0, %v744
    %v746 = vpop.f32.mrb[0].mxu0
    %v747 = vpop.f32.mrb[0].mxu0
    %v748 = vpop.f32.mrb[0].mxu0
    %749 = vdwg.mxu0
    %750 = vst.msk [vmem:[#allocation2 + $0x6] sm:$0x3] %vm239, %v745
    %s751 = scalar_lea.vmem [#allocation3], 512
    %v752 = vld [vmem:[%s751] sm:$0xf]
    %v753 = vld [vmem:[%s751 + $0x4] sm:$0xf]
    %v754 = vld [vmem:[%s751 + $0x8] sm:$0xf]
    %v755 = vld [vmem:[%s751 + $0xc] sm:$0xf]
    %v756 = vld [vmem:[%s751 + $0x10] sm:$0xf]
    %v757 = vld [vmem:[%s751 + $0x14] sm:$0xf]
    %v758 = vld [vmem:[%s751 + $0x18] sm:$0xf]
    %v759 = vld [vmem:[%s751 + $0x1c] sm:$0xf]
    %v760 = vld [vmem:[%s751 + $0x20] sm:$0xf]
    %v761 = vld [vmem:[%s751 + $0x24] sm:$0xf]
    %v762 = vld [vmem:[%s751 + $0x28] sm:$0xf]
    %v763 = vld [vmem:[%s751 + $0x2c] sm:$0xf]
    %v764 = vld [vmem:[%s751 + $0x30] sm:$0xf]
    %v765 = vld [vmem:[%s751 + $0x34] sm:$0xf]
    %v766 = vld [vmem:[%s751 + $0x38] sm:$0xf]
    %v767 = vld [vmem:[%s751 + $0x3c] sm:$0xf]
    %v768 = vld [vmem:[%s751 + $0x40] sm:$0xf]
    %v769 = vld [vmem:[%s751 + $0x44] sm:$0xf]
    %v770 = vld [vmem:[%s751 + $0x48] sm:$0xf]
    %v771 = vld [vmem:[%s751 + $0x4c] sm:$0xf]
    %v772 = vld [vmem:[%s751 + $0x50] sm:$0xf]
    %v773 = vld [vmem:[%s751 + $0x54] sm:$0xf]
    %v774 = vld [vmem:[%s751 + $0x58] sm:$0xf]
    %v775 = vld [vmem:[%s751 + $0x5c] sm:$0xf]
    %v776 = vld [vmem:[%s751 + $0x60] sm:$0xf]
    %v777 = vld [vmem:[%s751 + $0x64] sm:$0xf]
    %v778 = vld [vmem:[%s751 + $0x68] sm:$0xf]
    %v779 = vld [vmem:[%s751 + $0x6c] sm:$0xf]
    %v780 = vld [vmem:[%s751 + $0x70] sm:$0xf]
    %v781 = vld [vmem:[%s751 + $0x74] sm:$0xf]
    %v782 = vld [vmem:[%s751 + $0x78] sm:$0xf]
    %v783 = vld [vmem:[%s751 + $0x7c] sm:$0xf]
    %v816 = vunpack.c.l.b16 %v752
    %v817 = vunpack.c.l.b16 %v753
    %v818 = vunpack.c.l.b16 %v754
    %v819 = vunpack.c.l.b16 %v755
    %v820 = vunpack.c.l.b16 %v756
    %v821 = vunpack.c.l.b16 %v757
    %v822 = vunpack.c.l.b16 %v758
    %v823 = vunpack.c.l.b16 %v759
    %v824 = vunpack.c.l.b16 %v760
    %v825 = vunpack.c.l.b16 %v761
    %v826 = vunpack.c.l.b16 %v762
    %v827 = vunpack.c.l.b16 %v763
    %v828 = vunpack.c.l.b16 %v764
    %v829 = vunpack.c.l.b16 %v765
    %v830 = vunpack.c.l.b16 %v766
    %v831 = vunpack.c.l.b16 %v767
    %v832 = vunpack.c.l.b16 %v768
    %v833 = vunpack.c.l.b16 %v769
    %v834 = vunpack.c.l.b16 %v770
    %v835 = vunpack.c.l.b16 %v771
    %v836 = vunpack.c.l.b16 %v772
    %v837 = vunpack.c.l.b16 %v773
    %v838 = vunpack.c.l.b16 %v774
    %v839 = vunpack.c.l.b16 %v775
    %v840 = vunpack.c.l.b16 %v776
    %v841 = vunpack.c.l.b16 %v777
    %v842 = vunpack.c.l.b16 %v778
    %v843 = vunpack.c.l.b16 %v779
    %v844 = vunpack.c.l.b16 %v780
    %v845 = vunpack.c.l.b16 %v781
    %v846 = vunpack.c.l.b16 %v782
    %v847 = vunpack.c.l.b16 %v783
    %v848 = vpack.c.b16 %v817, %v816
    %v849 = vpack.c.b16 %v819, %v818
    %v850 = vpack.c.b16 %v821, %v820
    %v851 = vpack.c.b16 %v823, %v822
    %v852 = vpack.c.b16 %v825, %v824
    %v853 = vpack.c.b16 %v827, %v826
    %v854 = vpack.c.b16 %v829, %v828
    %v855 = vpack.c.b16 %v831, %v830
    %v856 = vpack.c.b16 %v833, %v832
    %v857 = vpack.c.b16 %v835, %v834
    %v858 = vpack.c.b16 %v837, %v836
    %v859 = vpack.c.b16 %v839, %v838
    %v860 = vpack.c.b16 %v841, %v840
    %v861 = vpack.c.b16 %v843, %v842
    %v862 = vpack.c.b16 %v845, %v844
    %v863 = vpack.c.b16 %v847, %v846
    %880 = vmatprep.subr.bf16.mxu0 0
    %881 = vmatpush1.bf16.msra.mxu0 %v848
    %882 = vmatprep.subr.bf16.mxu0 0
    %883 = vmatpush1.bf16.msra.mxu0 %v849
    %884 = vmatprep.subr.bf16.mxu0 0
    %885 = vmatpush1.bf16.msra.mxu0 %v850
    %886 = vmatprep.subr.bf16.mxu0 0
    %887 = vmatpush1.bf16.msra.mxu0 %v851
    %888 = vmatprep.subr.bf16.mxu0 0
    %889 = vmatpush1.bf16.msra.mxu0 %v852
    %890 = vmatprep.subr.bf16.mxu0 0
    %891 = vmatpush1.bf16.msra.mxu0 %v853
    %892 = vmatprep.subr.bf16.mxu0 0
    %893 = vmatpush1.bf16.msra.mxu0 %v854
    %894 = vmatprep.subr.bf16.mxu0 0
    %895 = vmatpush1.bf16.msra.mxu0 %v855
    %896 = vmatprep.subr.bf16.mxu0 0
    %897 = vmatpush1.bf16.msra.mxu0 %v856
    %898 = vmatprep.subr.bf16.mxu0 0
    %899 = vmatpush1.bf16.msra.mxu0 %v857
    %900 = vmatprep.subr.bf16.mxu0 0
    %901 = vmatpush1.bf16.msra.mxu0 %v858
    %902 = vmatprep.subr.bf16.mxu0 0
    %903 = vmatpush1.bf16.msra.mxu0 %v859
    %904 = vmatprep.subr.bf16.mxu0 0
    %905 = vmatpush1.bf16.msra.mxu0 %v860
    %906 = vmatprep.subr.bf16.mxu0 0
    %907 = vmatpush1.bf16.msra.mxu0 %v861
    %908 = vmatprep.subr.bf16.mxu0 0
    %909 = vmatpush1.bf16.msra.mxu0 %v862
    %910 = vmatprep.subr.bf16.mxu0 0
    %911 = vmatpush1.bf16.msra.mxu0 %v863
    %912 = vmatprep.mubr.bf16.mxu0 %v70
    %913 = vmatmul.mubr.bf16.gmra.mrb[0].mxu0 %v69
    %v914 = vpop.f32.mrb[0].mxu0
    %v915 = vadd.f32 0.0, %v914
    %v916 = vpop.f32.mrb[0].mxu0
    %v917 = vpop.f32.mrb[0].mxu0
    %v918 = vpop.f32.mrb[0].mxu0
    %919 = vdwg.mxu0
    %920 = vst.msk [vmem:[#allocation2 + $0x8] sm:$0x3] %vm239, %v915
    %s921 = scalar_lea.vmem [#allocation3], 640
    %v922 = vld [vmem:[%s921] sm:$0xf]
    %v923 = vld [vmem:[%s921 + $0x4] sm:$0xf]
    %v924 = vld [vmem:[%s921 + $0x8] sm:$0xf]
    %v925 = vld [vmem:[%s921 + $0xc] sm:$0xf]
    %v926 = vld [vmem:[%s921 + $0x10] sm:$0xf]
    %v927 = vld [vmem:[%s921 + $0x14] sm:$0xf]
    %v928 = vld [vmem:[%s921 + $0x18] sm:$0xf]
    %v929 = vld [vmem:[%s921 + $0x1c] sm:$0xf]
    %v930 = vld [vmem:[%s921 + $0x20] sm:$0xf]
    %v931 = vld [vmem:[%s921 + $0x24] sm:$0xf]
    %v932 = vld [vmem:[%s921 + $0x28] sm:$0xf]
    %v933 = vld [vmem:[%s921 + $0x2c] sm:$0xf]
    %v934 = vld [vmem:[%s921 + $0x30] sm:$0xf]
    %v935 = vld [vmem:[%s921 + $0x34] sm:$0xf]
    %v936 = vld [vmem:[%s921 + $0x38] sm:$0xf]
    %v937 = vld [vmem:[%s921 + $0x3c] sm:$0xf]
    %v938 = vld [vmem:[%s921 + $0x40] sm:$0xf]
    %v939 = vld [vmem:[%s921 + $0x44] sm:$0xf]
    %v940 = vld [vmem:[%s921 + $0x48] sm:$0xf]
    %v941 = vld [vmem:[%s921 + $0x4c] sm:$0xf]
    %v942 = vld [vmem:[%s921 + $0x50] sm:$0xf]
    %v943 = vld [vmem:[%s921 + $0x54] sm:$0xf]
    %v944 = vld [vmem:[%s921 + $0x58] sm:$0xf]
    %v945 = vld [vmem:[%s921 + $0x5c] sm:$0xf]
    %v946 = vld [vmem:[%s921 + $0x60] sm:$0xf]
    %v947 = vld [vmem:[%s921 + $0x64] sm:$0xf]
    %v948 = vld [vmem:[%s921 + $0x68] sm:$0xf]
    %v949 = vld [vmem:[%s921 + $0x6c] sm:$0xf]
    %v950 = vld [vmem:[%s921 + $0x70] sm:$0xf]
    %v951 = vld [vmem:[%s921 + $0x74] sm:$0xf]
    %v952 = vld [vmem:[%s921 + $0x78] sm:$0xf]
    %v953 = vld [vmem:[%s921 + $0x7c] sm:$0xf]
    %v986 = vunpack.c.l.b16 %v922
    %v987 = vunpack.c.l.b16 %v923
    %v988 = vunpack.c.l.b16 %v924
    %v989 = vunpack.c.l.b16 %v925
    %v990 = vunpack.c.l.b16 %v926
    %v991 = vunpack.c.l.b16 %v927
    %v992 = vunpack.c.l.b16 %v928
    %v993 = vunpack.c.l.b16 %v929
    %v994 = vunpack.c.l.b16 %v930
    %v995 = vunpack.c.l.b16 %v931
    %v996 = vunpack.c.l.b16 %v932
    %v997 = vunpack.c.l.b16 %v933
    %v998 = vunpack.c.l.b16 %v934
    %v999 = vunpack.c.l.b16 %v935
    %v1000 = vunpack.c.l.b16 %v936
    %v1001 = vunpack.c.l.b16 %v937
    %v1002 = vunpack.c.l.b16 %v938
    %v1003 = vunpack.c.l.b16 %v939
    %v1004 = vunpack.c.l.b16 %v940
    %v1005 = vunpack.c.l.b16 %v941
    %v1006 = vunpack.c.l.b16 %v942
    %v1007 = vunpack.c.l.b16 %v943
    %v1008 = vunpack.c.l.b16 %v944
    %v1009 = vunpack.c.l.b16 %v945
    %v1010 = vunpack.c.l.b16 %v946
    %v1011 = vunpack.c.l.b16 %v947
    %v1012 = vunpack.c.l.b16 %v948
    %v1013 = vunpack.c.l.b16 %v949
    %v1014 = vunpack.c.l.b16 %v950
    %v1015 = vunpack.c.l.b16 %v951
    %v1016 = vunpack.c.l.b16 %v952
    %v1017 = vunpack.c.l.b16 %v953
    %v1018 = vpack.c.b16 %v987, %v986
    %v1019 = vpack.c.b16 %v989, %v988
    %v1020 = vpack.c.b16 %v991, %v990
    %v1021 = vpack.c.b16 %v993, %v992
    %v1022 = vpack.c.b16 %v995, %v994
    %v1023 = vpack.c.b16 %v997, %v996
    %v1024 = vpack.c.b16 %v999, %v998
    %v1025 = vpack.c.b16 %v1001, %v1000
    %v1026 = vpack.c.b16 %v1003, %v1002
    %v1027 = vpack.c.b16 %v1005, %v1004
    %v1028 = vpack.c.b16 %v1007, %v1006
    %v1029 = vpack.c.b16 %v1009, %v1008
    %v1030 = vpack.c.b16 %v1011, %v1010
    %v1031 = vpack.c.b16 %v1013, %v1012
    %v1032 = vpack.c.b16 %v1015, %v1014
    %v1033 = vpack.c.b16 %v1017, %v1016
    %1050 = vmatprep.subr.bf16.mxu0 0
    %1051 = vmatpush1.bf16.msra.mxu0 %v1018
    %1052 = vmatprep.subr.bf16.mxu0 0
    %1053 = vmatpush1.bf16.msra.mxu0 %v1019
    %1054 = vmatprep.subr.bf16.mxu0 0
    %1055 = vmatpush1.bf16.msra.mxu0 %v1020
    %1056 = vmatprep.subr.bf16.mxu0 0
    %1057 = vmatpush1.bf16.msra.mxu0 %v1021
    %1058 = vmatprep.subr.bf16.mxu0 0
    %1059 = vmatpush1.bf16.msra.mxu0 %v1022
    %1060 = vmatprep.subr.bf16.mxu0 0
    %1061 = vmatpush1.bf16.msra.mxu0 %v1023
    %1062 = vmatprep.subr.bf16.mxu0 0
    %1063 = vmatpush1.bf16.msra.mxu0 %v1024
    %1064 = vmatprep.subr.bf16.mxu0 0
    %1065 = vmatpush1.bf16.msra.mxu0 %v1025
    %1066 = vmatprep.subr.bf16.mxu0 0
    %1067 = vmatpush1.bf16.msra.mxu0 %v1026
    %1068 = vmatprep.subr.bf16.mxu0 0
    %1069 = vmatpush1.bf16.msra.mxu0 %v1027
    %1070 = vmatprep.subr.bf16.mxu0 0
    %1071 = vmatpush1.bf16.msra.mxu0 %v1028
    %1072 = vmatprep.subr.bf16.mxu0 0
    %1073 = vmatpush1.bf16.msra.mxu0 %v1029
    %1074 = vmatprep.subr.bf16.mxu0 0
    %1075 = vmatpush1.bf16.msra.mxu0 %v1030
    %1076 = vmatprep.subr.bf16.mxu0 0
    %1077 = vmatpush1.bf16.msra.mxu0 %v1031
    %1078 = vmatprep.subr.bf16.mxu0 0
    %1079 = vmatpush1.bf16.msra.mxu0 %v1032
    %1080 = vmatprep.subr.bf16.mxu0 0
    %1081 = vmatpush1.bf16.msra.mxu0 %v1033
    %1082 = vmatprep.mubr.bf16.mxu0 %v70
    %1083 = vmatmul.mubr.bf16.gmra.mrb[0].mxu0 %v69
    %v1084 = vpop.f32.mrb[0].mxu0
    %v1085 = vadd.f32 0.0, %v1084
    %v1086 = vpop.f32.mrb[0].mxu0
    %v1087 = vpop.f32.mrb[0].mxu0
    %v1088 = vpop.f32.mrb[0].mxu0
    %1089 = vdwg.mxu0
    %1090 = vst.msk [vmem:[#allocation2 + $0xa] sm:$0x3] %vm239, %v1085
    %s1091 = scalar_lea.vmem [#allocation3], 768
    %v1092 = vld [vmem:[%s1091] sm:$0xf]
    %v1093 = vld [vmem:[%s1091 + $0x4] sm:$0xf]
    %v1094 = vld [vmem:[%s1091 + $0x8] sm:$0xf]
    %v1095 = vld [vmem:[%s1091 + $0xc] sm:$0xf]
    %v1096 = vld [vmem:[%s1091 + $0x10] sm:$0xf]
    %v1097 = vld [vmem:[%s1091 + $0x14] sm:$0xf]
    %v1098 = vld [vmem:[%s1091 + $0x18] sm:$0xf]
    %v1099 = vld [vmem:[%s1091 + $0x1c] sm:$0xf]
    %v1100 = vld [vmem:[%s1091 + $0x20] sm:$0xf]
    %v1101 = vld [vmem:[%s1091 + $0x24] sm:$0xf]
    %v1102 = vld [vmem:[%s1091 + $0x28] sm:$0xf]
    %v1103 = vld [vmem:[%s1091 + $0x2c] sm:$0xf]
    %v1104 = vld [vmem:[%s1091 + $0x30] sm:$0xf]
    %v1105 = vld [vmem:[%s1091 + $0x34] sm:$0xf]
    %v1106 = vld [vmem:[%s1091 + $0x38] sm:$0xf]
    %v1107 = vld [vmem:[%s1091 + $0x3c] sm:$0xf]
    %v1108 = vld [vmem:[%s1091 + $0x40] sm:$0xf]
    %v1109 = vld [vmem:[%s1091 + $0x44] sm:$0xf]
    %v1110 = vld [vmem:[%s1091 + $0x48] sm:$0xf]
    %v1111 = vld [vmem:[%s1091 + $0x4c] sm:$0xf]
    %v1112 = vld [vmem:[%s1091 + $0x50] sm:$0xf]
    %v1113 = vld [vmem:[%s1091 + $0x54] sm:$0xf]
    %v1114 = vld [vmem:[%s1091 + $0x58] sm:$0xf]
    %v1115 = vld [vmem:[%s1091 + $0x5c] sm:$0xf]
    %v1116 = vld [vmem:[%s1091 + $0x60] sm:$0xf]
    %v1117 = vld [vmem:[%s1091 + $0x64] sm:$0xf]
    %v1118 = vld [vmem:[%s1091 + $0x68] sm:$0xf]
    %v1119 = vld [vmem:[%s1091 + $0x6c] sm:$0xf]
    %v1120 = vld [vmem:[%s1091 + $0x70] sm:$0xf]
    %v1121 = vld [vmem:[%s1091 + $0x74] sm:$0xf]
    %v1122 = vld [vmem:[%s1091 + $0x78] sm:$0xf]
    %v1123 = vld [vmem:[%s1091 + $0x7c] sm:$0xf]
    %v1156 = vunpack.c.l.b16 %v1092
    %v1157 = vunpack.c.l.b16 %v1093
    %v1158 = vunpack.c.l.b16 %v1094
    %v1159 = vunpack.c.l.b16 %v1095
    %v1160 = vunpack.c.l.b16 %v1096
    %v1161 = vunpack.c.l.b16 %v1097
    %v1162 = vunpack.c.l.b16 %v1098
    %v1163 = vunpack.c.l.b16 %v1099
    %v1164 = vunpack.c.l.b16 %v1100
    %v1165 = vunpack.c.l.b16 %v1101
    %v1166 = vunpack.c.l.b16 %v1102
    %v1167 = vunpack.c.l.b16 %v1103
    %v1168 = vunpack.c.l.b16 %v1104
    %v1169 = vunpack.c.l.b16 %v1105
    %v1170 = vunpack.c.l.b16 %v1106
    %v1171 = vunpack.c.l.b16 %v1107
    %v1172 = vunpack.c.l.b16 %v1108
    %v1173 = vunpack.c.l.b16 %v1109
    %v1174 = vunpack.c.l.b16 %v1110
    %v1175 = vunpack.c.l.b16 %v1111
    %v1176 = vunpack.c.l.b16 %v1112
    %v1177 = vunpack.c.l.b16 %v1113
    %v1178 = vunpack.c.l.b16 %v1114
    %v1179 = vunpack.c.l.b16 %v1115
    %v1180 = vunpack.c.l.b16 %v1116
    %v1181 = vunpack.c.l.b16 %v1117
    %v1182 = vunpack.c.l.b16 %v1118
    %v1183 = vunpack.c.l.b16 %v1119
    %v1184 = vunpack.c.l.b16 %v1120
    %v1185 = vunpack.c.l.b16 %v1121
    %v1186 = vunpack.c.l.b16 %v1122
    %v1187 = vunpack.c.l.b16 %v1123
    %v1188 = vpack.c.b16 %v1157, %v1156
    %v1189 = vpack.c.b16 %v1159, %v1158
    %v1190 = vpack.c.b16 %v1161, %v1160
    %v1191 = vpack.c.b16 %v1163, %v1162
    %v1192 = vpack.c.b16 %v1165, %v1164
    %v1193 = vpack.c.b16 %v1167, %v1166
    %v1194 = vpack.c.b16 %v1169, %v1168
    %v1195 = vpack.c.b16 %v1171, %v1170
    %v1196 = vpack.c.b16 %v1173, %v1172
    %v1197 = vpack.c.b16 %v1175, %v1174
    %v1198 = vpack.c.b16 %v1177, %v1176
    %v1199 = vpack.c.b16 %v1179, %v1178
    %v1200 = vpack.c.b16 %v1181, %v1180
    %v1201 = vpack.c.b16 %v1183, %v1182
    %v1202 = vpack.c.b16 %v1185, %v1184
    %v1203 = vpack.c.b16 %v1187, %v1186
    %1220 = vmatprep.subr.bf16.mxu0 0
    %1221 = vmatpush1.bf16.msra.mxu0 %v1188
    %1222 = vmatprep.subr.bf16.mxu0 0
    %1223 = vmatpush1.bf16.msra.mxu0 %v1189
    %1224 = vmatprep.subr.bf16.mxu0 0
    %1225 = vmatpush1.bf16.msra.mxu0 %v1190
    %1226 = vmatprep.subr.bf16.mxu0 0
    %1227 = vmatpush1.bf16.msra.mxu0 %v1191
    %1228 = vmatprep.subr.bf16.mxu0 0
    %1229 = vmatpush1.bf16.msra.mxu0 %v1192
    %1230 = vmatprep.subr.bf16.mxu0 0
    %1231 = vmatpush1.bf16.msra.mxu0 %v1193
    %1232 = vmatprep.subr.bf16.mxu0 0
    %1233 = vmatpush1.bf16.msra.mxu0 %v1194
    %1234 = vmatprep.subr.bf16.mxu0 0
    %1235 = vmatpush1.bf16.msra.mxu0 %v1195
    %1236 = vmatprep.subr.bf16.mxu0 0
    %1237 = vmatpush1.bf16.msra.mxu0 %v1196
    %1238 = vmatprep.subr.bf16.mxu0 0
    %1239 = vmatpush1.bf16.msra.mxu0 %v1197
    %1240 = vmatprep.subr.bf16.mxu0 0
    %1241 = vmatpush1.bf16.msra.mxu0 %v1198
    %1242 = vmatprep.subr.bf16.mxu0 0
    %1243 = vmatpush1.bf16.msra.mxu0 %v1199
    %1244 = vmatprep.subr.bf16.mxu0 0
    %1245 = vmatpush1.bf16.msra.mxu0 %v1200
    %1246 = vmatprep.subr.bf16.mxu0 0
    %1247 = vmatpush1.bf16.msra.mxu0 %v1201
    %1248 = vmatprep.subr.bf16.mxu0 0
    %1249 = vmatpush1.bf16.msra.mxu0 %v1202
    %1250 = vmatprep.subr.bf16.mxu0 0
    %1251 = vmatpush1.bf16.msra.mxu0 %v1203
    %1252 = vmatprep.mubr.bf16.mxu0 %v70
    %1253 = vmatmul.mubr.bf16.gmra.mrb[0].mxu0 %v69
    %v1254 = vpop.f32.mrb[0].mxu0
    %v1255 = vadd.f32 0.0, %v1254
    %v1256 = vpop.f32.mrb[0].mxu0
    %v1257 = vpop.f32.mrb[0].mxu0
    %v1258 = vpop.f32.mrb[0].mxu0
    %1259 = vdwg.mxu0
    %1260 = vst.msk [vmem:[#allocation2 + $0xc] sm:$0x3] %vm239, %v1255
    %s1261 = scalar_lea.vmem [#allocation3], 896
    %v1262 = vld [vmem:[%s1261] sm:$0xf]
    %v1263 = vld [vmem:[%s1261 + $0x4] sm:$0xf]
    %v1264 = vld [vmem:[%s1261 + $0x8] sm:$0xf]
    %v1265 = vld [vmem:[%s1261 + $0xc] sm:$0xf]
    %v1266 = vld [vmem:[%s1261 + $0x10] sm:$0xf]
    %v1267 = vld [vmem:[%s1261 + $0x14] sm:$0xf]
    %v1268 = vld [vmem:[%s1261 + $0x18] sm:$0xf]
    %v1269 = vld [vmem:[%s1261 + $0x1c] sm:$0xf]
    %v1270 = vld [vmem:[%s1261 + $0x20] sm:$0xf]
    %v1271 = vld [vmem:[%s1261 + $0x24] sm:$0xf]
    %v1272 = vld [vmem:[%s1261 + $0x28] sm:$0xf]
    %v1273 = vld [vmem:[%s1261 + $0x2c] sm:$0xf]
    %v1274 = vld [vmem:[%s1261 + $0x30] sm:$0xf]
    %v1275 = vld [vmem:[%s1261 + $0x34] sm:$0xf]
    %v1276 = vld [vmem:[%s1261 + $0x38] sm:$0xf]
    %v1277 = vld [vmem:[%s1261 + $0x3c] sm:$0xf]
    %v1278 = vld [vmem:[%s1261 + $0x40] sm:$0xf]
    %v1279 = vld [vmem:[%s1261 + $0x44] sm:$0xf]
    %v1280 = vld [vmem:[%s1261 + $0x48] sm:$0xf]
    %v1281 = vld [vmem:[%s1261 + $0x4c] sm:$0xf]
    %v1282 = vld [vmem:[%s1261 + $0x50] sm:$0xf]
    %v1283 = vld [vmem:[%s1261 + $0x54] sm:$0xf]
    %v1284 = vld [vmem:[%s1261 + $0x58] sm:$0xf]
    %v1285 = vld [vmem:[%s1261 + $0x5c] sm:$0xf]
    %v1286 = vld [vmem:[%s1261 + $0x60] sm:$0xf]
    %v1287 = vld [vmem:[%s1261 + $0x64] sm:$0xf]
    %v1288 = vld [vmem:[%s1261 + $0x68] sm:$0xf]
    %v1289 = vld [vmem:[%s1261 + $0x6c] sm:$0xf]
    %v1290 = vld [vmem:[%s1261 + $0x70] sm:$0xf]
    %v1291 = vld [vmem:[%s1261 + $0x74] sm:$0xf]
    %v1292 = vld [vmem:[%s1261 + $0x78] sm:$0xf]
    %v1293 = vld [vmem:[%s1261 + $0x7c] sm:$0xf]
    %v1326 = vunpack.c.l.b16 %v1262
    %v1327 = vunpack.c.l.b16 %v1263
    %v1328 = vunpack.c.l.b16 %v1264
    %v1329 = vunpack.c.l.b16 %v1265
    %v1330 = vunpack.c.l.b16 %v1266
    %v1331 = vunpack.c.l.b16 %v1267
    %v1332 = vunpack.c.l.b16 %v1268
    %v1333 = vunpack.c.l.b16 %v1269
    %v1334 = vunpack.c.l.b16 %v1270
    %v1335 = vunpack.c.l.b16 %v1271
    %v1336 = vunpack.c.l.b16 %v1272
    %v1337 = vunpack.c.l.b16 %v1273
    %v1338 = vunpack.c.l.b16 %v1274
    %v1339 = vunpack.c.l.b16 %v1275
    %v1340 = vunpack.c.l.b16 %v1276
    %v1341 = vunpack.c.l.b16 %v1277
    %v1342 = vunpack.c.l.b16 %v1278
    %v1343 = vunpack.c.l.b16 %v1279
    %v1344 = vunpack.c.l.b16 %v1280
    %v1345 = vunpack.c.l.b16 %v1281
    %v1346 = vunpack.c.l.b16 %v1282
    %v1347 = vunpack.c.l.b16 %v1283
    %v1348 = vunpack.c.l.b16 %v1284
    %v1349 = vunpack.c.l.b16 %v1285
    %v1350 = vunpack.c.l.b16 %v1286
    %v1351 = vunpack.c.l.b16 %v1287
    %v1352 = vunpack.c.l.b16 %v1288
    %v1353 = vunpack.c.l.b16 %v1289
    %v1354 = vunpack.c.l.b16 %v1290
    %v1355 = vunpack.c.l.b16 %v1291
    %v1356 = vunpack.c.l.b16 %v1292
    %v1357 = vunpack.c.l.b16 %v1293
    %v1358 = vpack.c.b16 %v1327, %v1326
    %v1359 = vpack.c.b16 %v1329, %v1328
    %v1360 = vpack.c.b16 %v1331, %v1330
    %v1361 = vpack.c.b16 %v1333, %v1332
    %v1362 = vpack.c.b16 %v1335, %v1334
    %v1363 = vpack.c.b16 %v1337, %v1336
    %v1364 = vpack.c.b16 %v1339, %v1338
    %v1365 = vpack.c.b16 %v1341, %v1340
    %v1366 = vpack.c.b16 %v1343, %v1342
    %v1367 = vpack.c.b16 %v1345, %v1344
    %v1368 = vpack.c.b16 %v1347, %v1346
    %v1369 = vpack.c.b16 %v1349, %v1348
    %v1370 = vpack.c.b16 %v1351, %v1350
    %v1371 = vpack.c.b16 %v1353, %v1352
    %v1372 = vpack.c.b16 %v1355, %v1354
    %v1373 = vpack.c.b16 %v1357, %v1356
    %1390 = vmatprep.subr.bf16.mxu0 0
    %1391 = vmatpush1.bf16.msra.mxu0 %v1358
    %1392 = vmatprep.subr.bf16.mxu0 0
    %1393 = vmatpush1.bf16.msra.mxu0 %v1359
    %1394 = vmatprep.subr.bf16.mxu0 0
    %1395 = vmatpush1.bf16.msra.mxu0 %v1360
    %1396 = vmatprep.subr.bf16.mxu0 0
    %1397 = vmatpush1.bf16.msra.mxu0 %v1361
    %1398 = vmatprep.subr.bf16.mxu0 0
    %1399 = vmatpush1.bf16.msra.mxu0 %v1362
    %1400 = vmatprep.subr.bf16.mxu0 0
    %1401 = vmatpush1.bf16.msra.mxu0 %v1363
    %1402 = vmatprep.subr.bf16.mxu0 0
    %1403 = vmatpush1.bf16.msra.mxu0 %v1364
    %1404 = vmatprep.subr.bf16.mxu0 0
    %1405 = vmatpush1.bf16.msra.mxu0 %v1365
    %1406 = vmatprep.subr.bf16.mxu0 0
    %1407 = vmatpush1.bf16.msra.mxu0 %v1366
    %1408 = vmatprep.subr.bf16.mxu0 0
    %1409 = vmatpush1.bf16.msra.mxu0 %v1367
    %1410 = vmatprep.subr.bf16.mxu0 0
    %1411 = vmatpush1.bf16.msra.mxu0 %v1368
    %1412 = vmatprep.subr.bf16.mxu0 0
    %1413 = vmatpush1.bf16.msra.mxu0 %v1369
    %1414 = vmatprep.subr.bf16.mxu0 0
    %1415 = vmatpush1.bf16.msra.mxu0 %v1370
    %1416 = vmatprep.subr.bf16.mxu0 0
    %1417 = vmatpush1.bf16.msra.mxu0 %v1371
    %1418 = vmatprep.subr.bf16.mxu0 0
    %1419 = vmatpush1.bf16.msra.mxu0 %v1372
    %1420 = vmatprep.subr.bf16.mxu0 0
    %1421 = vmatpush1.bf16.msra.mxu0 %v1373
    %1422 = vmatprep.mubr.bf16.mxu0 %v70
    %1423 = vmatmul.mubr.bf16.gmra.mrb[0].mxu0 %v69
    %v1424 = vpop.f32.mrb[0].mxu0
    %v1425 = vadd.f32 0.0, %v1424
    %v1426 = vpop.f32.mrb[0].mxu0
    %v1427 = vpop.f32.mrb[0].mxu0
    %v1428 = vpop.f32.mrb[0].mxu0
    %1429 = vdwg.mxu0
    %1430 = vst.msk [vmem:[#allocation2 + $0xe] sm:$0x3] %vm239, %v1425
    %s1431 = scalar_lea.vmem [#allocation3], 1024
    %v1432 = vld [vmem:[%s1431] sm:$0xf]
    %v1433 = vld [vmem:[%s1431 + $0x4] sm:$0xf]
    %v1434 = vld [vmem:[%s1431 + $0x8] sm:$0xf]
    %v1435 = vld [vmem:[%s1431 + $0xc] sm:$0xf]
    %v1436 = vld [vmem:[%s1431 + $0x10] sm:$0xf]
    %v1437 = vld [vmem:[%s1431 + $0x14] sm:$0xf]
    %v1438 = vld [vmem:[%s1431 + $0x18] sm:$0xf]
    %v1439 = vld [vmem:[%s1431 + $0x1c] sm:$0xf]
    %v1440 = vld [vmem:[%s1431 + $0x20] sm:$0xf]
    %v1441 = vld [vmem:[%s1431 + $0x24] sm:$0xf]
    %v1442 = vld [vmem:[%s1431 + $0x28] sm:$0xf]
    %v1443 = vld [vmem:[%s1431 + $0x2c] sm:$0xf]
    %v1444 = vld [vmem:[%s1431 + $0x30] sm:$0xf]
    %v1445 = vld [vmem:[%s1431 + $0x34] sm:$0xf]
    %v1446 = vld [vmem:[%s1431 + $0x38] sm:$0xf]
    %v1447 = vld [vmem:[%s1431 + $0x3c] sm:$0xf]
    %v1448 = vld [vmem:[%s1431 + $0x40] sm:$0xf]
    %v1449 = vld [vmem:[%s1431 + $0x44] sm:$0xf]
    %v1450 = vld [vmem:[%s1431 + $0x48] sm:$0xf]
    %v1451 = vld [vmem:[%s1431 + $0x4c] sm:$0xf]
    %v1452 = vld [vmem:[%s1431 + $0x50] sm:$0xf]
    %v1453 = vld [vmem:[%s1431 + $0x54] sm:$0xf]
    %v1454 = vld [vmem:[%s1431 + $0x58] sm:$0xf]
    %v1455 = vld [vmem:[%s1431 + $0x5c] sm:$0xf]
    %v1456 = vld [vmem:[%s1431 + $0x60] sm:$0xf]
    %v1457 = vld [vmem:[%s1431 + $0x64] sm:$0xf]
    %v1458 = vld [vmem:[%s1431 + $0x68] sm:$0xf]
    %v1459 = vld [vmem:[%s1431 + $0x6c] sm:$0xf]
    %v1460 = vld [vmem:[%s1431 + $0x70] sm:$0xf]
    %v1461 = vld [vmem:[%s1431 + $0x74] sm:$0xf]
    %v1462 = vld [vmem:[%s1431 + $0x78] sm:$0xf]
    %v1463 = vld [vmem:[%s1431 + $0x7c] sm:$0xf]
    %v1496 = vunpack.c.l.b16 %v1432
    %v1497 = vunpack.c.l.b16 %v1433
    %v1498 = vunpack.c.l.b16 %v1434
    %v1499 = vunpack.c.l.b16 %v1435
    %v1500 = vunpack.c.l.b16 %v1436
    %v1501 = vunpack.c.l.b16 %v1437
    %v1502 = vunpack.c.l.b16 %v1438
    %v1503 = vunpack.c.l.b16 %v1439
    %v1504 = vunpack.c.l.b16 %v1440
    %v1505 = vunpack.c.l.b16 %v1441
    %v1506 = vunpack.c.l.b16 %v1442
    %v1507 = vunpack.c.l.b16 %v1443
    %v1508 = vunpack.c.l.b16 %v1444
    %v1509 = vunpack.c.l.b16 %v1445
    %v1510 = vunpack.c.l.b16 %v1446
    %v1511 = vunpack.c.l.b16 %v1447
    %v1512 = vunpack.c.l.b16 %v1448
    %v1513 = vunpack.c.l.b16 %v1449
    %v1514 = vunpack.c.l.b16 %v1450
    %v1515 = vunpack.c.l.b16 %v1451
    %v1516 = vunpack.c.l.b16 %v1452
    %v1517 = vunpack.c.l.b16 %v1453
    %v1518 = vunpack.c.l.b16 %v1454
    %v1519 = vunpack.c.l.b16 %v1455
    %v1520 = vunpack.c.l.b16 %v1456
    %v1521 = vunpack.c.l.b16 %v1457
    %v1522 = vunpack.c.l.b16 %v1458
    %v1523 = vunpack.c.l.b16 %v1459
    %v1524 = vunpack.c.l.b16 %v1460
    %v1525 = vunpack.c.l.b16 %v1461
    %v1526 = vunpack.c.l.b16 %v1462
    %v1527 = vunpack.c.l.b16 %v1463
    %v1528 = vpack.c.b16 %v1497, %v1496
    %v1529 = vpack.c.b16 %v1499, %v1498
    %v1530 = vpack.c.b16 %v1501, %v1500
    %v1531 = vpack.c.b16 %v1503, %v1502
    %v1532 = vpack.c.b16 %v1505, %v1504
    %v1533 = vpack.c.b16 %v1507, %v1506
    %v1534 = vpack.c.b16 %v1509, %v1508
    %v1535 = vpack.c.b16 %v1511, %v1510
    %v1536 = vpack.c.b16 %v1513, %v1512
    %v1537 = vpack.c.b16 %v1515, %v1514
    %v1538 = vpack.c.b16 %v1517, %v1516
    %v1539 = vpack.c.b16 %v1519, %v1518
    %v1540 = vpack.c.b16 %v1521, %v1520
    %v1541 = vpack.c.b16 %v1523, %v1522
    %v1542 = vpack.c.b16 %v1525, %v1524
    %v1543 = vpack.c.b16 %v1527, %v1526
    %1560 = vmatprep.subr.bf16.mxu0 0
    %1561 = vmatpush1.bf16.msra.mxu0 %v1528
    %1562 = vmatprep.subr.bf16.mxu0 0
    %1563 = vmatpush1.bf16.msra.mxu0 %v1529
    %1564 = vmatprep.subr.bf16.mxu0 0
    %1565 = vmatpush1.bf16.msra.mxu0 %v1530
    %1566 = vmatprep.subr.bf16.mxu0 0
    %1567 = vmatpush1.bf16.msra.mxu0 %v1531
    %1568 = vmatprep.subr.bf16.mxu0 0
    %1569 = vmatpush1.bf16.msra.mxu0 %v1532
    %1570 = vmatprep.subr.bf16.mxu0 0
    %1571 = vmatpush1.bf16.msra.mxu0 %v1533
    %1572 = vmatprep.subr.bf16.mxu0 0
    %1573 = vmatpush1.bf16.msra.mxu0 %v1534
    %1574 = vmatprep.subr.bf16.mxu0 0
    %1575 = vmatpush1.bf16.msra.mxu0 %v1535
    %1576 = vmatprep.subr.bf16.mxu0 0
    %1577 = vmatpush1.bf16.msra.mxu0 %v1536
    %1578 = vmatprep.subr.bf16.mxu0 0
    %1579 = vmatpush1.bf16.msra.mxu0 %v1537
    %1580 = vmatprep.subr.bf16.mxu0 0
    %1581 = vmatpush1.bf16.msra.mxu0 %v1538
    %1582 = vmatprep.subr.bf16.mxu0 0
    %1583 = vmatpush1.bf16.msra.mxu0 %v1539
    %1584 = vmatprep.subr.bf16.mxu0 0
    %1585 = vmatpush1.bf16.msra.mxu0 %v1540
    %1586 = vmatprep.subr.bf16.mxu0 0
    %1587 = vmatpush1.bf16.msra.mxu0 %v1541
    %1588 = vmatprep.subr.bf16.mxu0 0
    %1589 = vmatpush1.bf16.msra.mxu0 %v1542
    %1590 = vmatprep.subr.bf16.mxu0 0
    %1591 = vmatpush1.bf16.msra.mxu0 %v1543
    %1592 = vmatprep.mubr.bf16.mxu0 %v70
    %1593 = vmatmul.mubr.bf16.gmra.mrb[0].mxu0 %v69
    %v1594 = vpop.f32.mrb[0].mxu0
    %v1595 = vadd.f32 0.0, %v1594
    %v1596 = vpop.f32.mrb[0].mxu0
    %v1597 = vpop.f32.mrb[0].mxu0
    %v1598 = vpop.f32.mrb[0].mxu0
    %1599 = vdwg.mxu0
    %1600 = vst.msk [vmem:[#allocation2 + $0x10] sm:$0x3] %vm239, %v1595
    %v1601 = vld [vmem:[#allocation2] sm:$0xff]
    %v1602 = vld [vmem:[#allocation2 + $0x8] sm:$0xff]
    %v1603 = vld [vmem:[#allocation2 + $0x10] sm:$0x3]
    %v1604 = vpack.c.bf16 %v1602, %v1601
    %v1605 = vpack.c.bf16 %v1603, %v1603
    %v1606 = vld [vmem:[%s2] sm:$0xf]
    %v1607 = vld [vmem:[%s3] sm:$0xff]
    %1609 = vset.pattern.permute.xlu0 0
    %1610 = vperm.xlu0 %1609, %v1607
    %v1611 = vpop.permute.xlu0 %1610
    %vm1613 = vcmask 146432
    %v1615 = vsel %vm1613, %v1606, 0
    %vm1617 = vcmask 1040384
    %v1619 = vsel %vm1617, %v1605, 0
    %1621 = vmatprep.subr.bf16.mxu0 0
    %1622 = vmatpush1.bf16.msra.mxu0 %v1604
    %1623 = vmatprep.subr.bf16.mxu0 0
    %1624 = vmatpush1.bf16.msra.mxu0 %v1619
    %1625 = vmatprep.subr.bf16.mxu0 0
    %1626 = vmatpush1.bf16.msra.mxu0 0
    %1627 = vmatprep.subr.bf16.mxu0 0
    %1628 = vmatpush1.bf16.msra.mxu0 0
    %1629 = vmatprep.subr.bf16.mxu0 0
    %1630 = vmatpush1.bf16.msra.mxu0 0
    %1631 = vmatprep.subr.bf16.mxu0 0
    %1632 = vmatpush1.bf16.msra.mxu0 0
    %1633 = vmatprep.subr.bf16.mxu0 0
    %1634 = vmatpush1.bf16.msra.mxu0 0
    %1635 = vmatprep.subr.bf16.mxu0 0
    %1636 = vmatpush1.bf16.msra.mxu0 0
    %1637 = vmatprep.subr.bf16.mxu0 0
    %1638 = vmatpush1.bf16.msra.mxu0 0
    %1639 = vmatprep.subr.bf16.mxu0 0
    %1640 = vmatpush1.bf16.msra.mxu0 0
    %1641 = vmatprep.subr.bf16.mxu0 0
    %1642 = vmatpush1.bf16.msra.mxu0 0
    %1643 = vmatprep.subr.bf16.mxu0 0
    %1644 = vmatpush1.bf16.msra.mxu0 0
    %1645 = vmatprep.subr.bf16.mxu0 0
    %1646 = vmatpush1.bf16.msra.mxu0 0
    %1647 = vmatprep.subr.bf16.mxu0 0
    %1648 = vmatpush1.bf16.msra.mxu0 0
    %1649 = vmatprep.subr.bf16.mxu0 0
    %1650 = vmatpush1.bf16.msra.mxu0 0
    %1651 = vmatprep.subr.bf16.mxu0 0
    %1652 = vmatpush1.bf16.msra.mxu0 0
    %1653 = vmatprep.mubr.bf16.mxu0 0
    %1654 = vmatmul.mubr.bf16.gmra.mrb[0].mxu0 %v1615
    %v1655 = vpop.f32.mrb[0].mxu0
    %v1656 = vadd.f32 %v1611, %v1655
    %v1657 = vpop.f32.mrb[0].mxu0
    %v1658 = vpop.f32.mrb[0].mxu0
    %v1659 = vpop.f32.mrb[0].mxu0
    %1660 = vdwg.mxu0
    %v1661 = vmul.f32 %v1656, 0.01
    %v1662 = vmax.f32 %v1656, %v1661
    %v1663 = vpack.c.bf16 %v1662, %v1662
    %v1664 = vld [vmem:[%s4] sm:$0xf]
    %v1665 = vld [vmem:[%s4 + $0x4] sm:$0xf]
    %v1666 = vld [vmem:[%s4 + $0x8] sm:$0xf]
    %v1667 = vld [vmem:[%s4 + $0xc] sm:$0xf]
    %v1668 = vld [vmem:[%s4 + $0x10] sm:$0xf]
    %v1669 = vld [vmem:[%s4 + $0x14] sm:$0xf]
    %v1670 = vld [vmem:[%s4 + $0x18] sm:$0xf]
    %v1671 = vld [vmem:[%s4 + $0x1c] sm:$0xf]
    %v1680 = vunpack.c.l.b16 %v1664
    %v1681 = vunpack.c.l.b16 %v1665
    %v1682 = vunpack.c.l.b16 %v1666
    %v1683 = vunpack.c.l.b16 %v1667
    %v1684 = vunpack.c.l.b16 %v1668
    %v1685 = vunpack.c.l.b16 %v1669
    %v1686 = vunpack.c.l.b16 %v1670
    %v1687 = vunpack.c.l.b16 %v1671
    %v1688 = vpack.c.b16 %v1681, %v1680
    %v1689 = vpack.c.b16 %v1683, %v1682
    %v1690 = vpack.c.b16 %v1685, %v1684
    %v1691 = vpack.c.b16 %v1687, %v1686
    %vm1696 = vcmask 523264
    %v1698 = vsel %vm1696, %v1663, 0
    %1700 = vmatprep.subr.bf16.mxu0 0
    %1701 = vmatpush1.bf16.msra.mxu0 %v1688
    %1702 = vmatprep.subr.bf16.mxu0 0
    %1703 = vmatpush1.bf16.msra.mxu0 %v1689
    %1704 = vmatprep.subr.bf16.mxu0 0
    %1705 = vmatpush1.bf16.msra.mxu0 %v1690
    %1706 = vmatprep.subr.bf16.mxu0 0
    %1707 = vmatpush1.bf16.msra.mxu0 %v1691
    %1708 = vmatprep.subr.bf16.mxu0 0
    %1709 = vmatpush1.bf16.msra.mxu0 0
    %1710 = vmatprep.subr.bf16.mxu0 0
    %1711 = vmatpush1.bf16.msra.mxu0 0
    %1712 = vmatprep.subr.bf16.mxu0 0
    %1713 = vmatpush1.bf16.msra.mxu0 0
    %1714 = vmatprep.subr.bf16.mxu0 0
    %1715 = vmatpush1.bf16.msra.mxu0 0
    %1716 = vmatprep.subr.bf16.mxu0 0
    %1717 = vmatpush1.bf16.msra.mxu0 0
    %1718 = vmatprep.subr.bf16.mxu0 0
    %1719 = vmatpush1.bf16.msra.mxu0 0
    %1720 = vmatprep.subr.bf16.mxu0 0
    %1721 = vmatpush1.bf16.msra.mxu0 0
    %1722 = vmatprep.subr.bf16.mxu0 0
    %1723 = vmatpush1.bf16.msra.mxu0 0
    %1724 = vmatprep.subr.bf16.mxu0 0
    %1725 = vmatpush1.bf16.msra.mxu0 0
    %1726 = vmatprep.subr.bf16.mxu0 0
    %1727 = vmatpush1.bf16.msra.mxu0 0
    %1728 = vmatprep.subr.bf16.mxu0 0
    %1729 = vmatpush1.bf16.msra.mxu0 0
    %1730 = vmatprep.subr.bf16.mxu0 0
    %1731 = vmatpush1.bf16.msra.mxu0 0
    %1732 = vmatprep.mubr.bf16.mxu0 0
    %1733 = vmatmul.mubr.bf16.gmra.mrb[0].mxu0 %v1698
    %v1734 = vpop.f32.mrb[0].mxu0
    %v1735 = vadd.f32 0.0, %v1734
    %v1736 = vpop.f32.mrb[0].mxu0
    %v1737 = vpop.f32.mrb[0].mxu0
    %v1738 = vpop.f32.mrb[0].mxu0
    %1739 = vdwg.mxu0
    %vm1740 = vcmask 130048
    %1741 = vst.msk [vmem:[#allocation2] sm:$0xff] %vm1740, %v1735
    %s1742 = scalar_lea.vmem %s4, 32
    %v1743 = vld [vmem:[%s1742] sm:$0xf]
    %v1744 = vld [vmem:[%s1742 + $0x4] sm:$0xf]
    %v1745 = vld [vmem:[%s1742 + $0x8] sm:$0xf]
    %v1746 = vld [vmem:[%s1742 + $0xc] sm:$0xf]
    %v1747 = vld [vmem:[%s1742 + $0x10] sm:$0xf]
    %v1748 = vld [vmem:[%s1742 + $0x14] sm:$0xf]
    %v1749 = vld [vmem:[%s1742 + $0x18] sm:$0xf]
    %v1750 = vld [vmem:[%s1742 + $0x1c] sm:$0xf]
    %v1759 = vunpack.c.l.b16 %v1743
    %v1760 = vunpack.c.l.b16 %v1744
    %v1761 = vunpack.c.l.b16 %v1745
    %v1762 = vunpack.c.l.b16 %v1746
    %v1763 = vunpack.c.l.b16 %v1747
    %v1764 = vunpack.c.l.b16 %v1748
    %v1765 = vunpack.c.l.b16 %v1749
    %v1766 = vunpack.c.l.b16 %v1750
    %v1767 = vpack.c.b16 %v1760, %v1759
    %v1768 = vpack.c.b16 %v1762, %v1761
    %v1769 = vpack.c.b16 %v1764, %v1763
    %v1770 = vpack.c.b16 %v1766, %v1765
    %1775 = vmatprep.subr.bf16.mxu0 0
    %1776 = vmatpush1.bf16.msra.mxu0 %v1767
    %1777 = vmatprep.subr.bf16.mxu0 0
    %1778 = vmatpush1.bf16.msra.mxu0 %v1768
    %1779 = vmatprep.subr.bf16.mxu0 0
    %1780 = vmatpush1.bf16.msra.mxu0 %v1769
    %1781 = vmatprep.subr.bf16.mxu0 0
    %1782 = vmatpush1.bf16.msra.mxu0 %v1770
    %1783 = vmatprep.subr.bf16.mxu0 0
    %1784 = vmatpush1.bf16.msra.mxu0 0
    %1785 = vmatprep.subr.bf16.mxu0 0
    %1786 = vmatpush1.bf16.msra.mxu0 0
    %1787 = vmatprep.subr.bf16.mxu0 0
    %1788 = vmatpush1.bf16.msra.mxu0 0
    %1789 = vmatprep.subr.bf16.mxu0 0
    %1790 = vmatpush1.bf16.msra.mxu0 0
    %1791 = vmatprep.subr.bf16.mxu0 0
    %1792 = vmatpush1.bf16.msra.mxu0 0
    %1793 = vmatprep.subr.bf16.mxu0 0
    %1794 = vmatpush1.bf16.msra.mxu0 0
    %1795 = vmatprep.subr.bf16.mxu0 0
    %1796 = vmatpush1.bf16.msra.mxu0 0
    %1797 = vmatprep.subr.bf16.mxu0 0
    %1798 = vmatpush1.bf16.msra.mxu0 0
    %1799 = vmatprep.subr.bf16.mxu0 0
    %1800 = vmatpush1.bf16.msra.mxu0 0
    %1801 = vmatprep.subr.bf16.mxu0 0
    %1802 = vmatpush1.bf16.msra.mxu0 0
    %1803 = vmatprep.subr.bf16.mxu0 0
    %1804 = vmatpush1.bf16.msra.mxu0 0
    %1805 = vmatprep.subr.bf16.mxu0 0
    %1806 = vmatpush1.bf16.msra.mxu0 0
    %1807 = vmatprep.mubr.bf16.mxu0 0
    %1808 = vmatmul.mubr.bf16.gmra.mrb[0].mxu0 %v1698
    %v1809 = vpop.f32.mrb[0].mxu0
    %v1810 = vadd.f32 0.0, %v1809
    %v1811 = vpop.f32.mrb[0].mxu0
    %v1812 = vpop.f32.mrb[0].mxu0
    %v1813 = vpop.f32.mrb[0].mxu0
    %1814 = vdwg.mxu0
    %1815 = vst.msk [vmem:[#allocation2 + $0x8] sm:$0xff] %vm1740, %v1810
    %s1816 = scalar_lea.vmem %s4, 64
    %v1817 = vld [vmem:[%s1816] sm:$0xf]
    %v1818 = vld [vmem:[%s1816 + $0x4] sm:$0xf]
    %v1819 = vld [vmem:[%s1816 + $0x8] sm:$0xf]
    %v1820 = vld [vmem:[%s1816 + $0xc] sm:$0xf]
    %v1821 = vld [vmem:[%s1816 + $0x10] sm:$0xf]
    %v1822 = vld [vmem:[%s1816 + $0x14] sm:$0xf]
    %v1823 = vld [vmem:[%s1816 + $0x18] sm:$0xf]
    %v1824 = vld [vmem:[%s1816 + $0x1c] sm:$0xf]
    %v1833 = vunpack.c.l.b16 %v1817
    %v1834 = vunpack.c.l.b16 %v1818
    %v1835 = vunpack.c.l.b16 %v1819
    %v1836 = vunpack.c.l.b16 %v1820
    %v1837 = vunpack.c.l.b16 %v1821
    %v1838 = vunpack.c.l.b16 %v1822
    %v1839 = vunpack.c.l.b16 %v1823
    %v1840 = vunpack.c.l.b16 %v1824
    %v1841 = vpack.c.b16 %v1834, %v1833
    %v1842 = vpack.c.b16 %v1836, %v1835
    %v1843 = vpack.c.b16 %v1838, %v1837
    %v1844 = vpack.c.b16 %v1840, %v1839
    %1849 = vmatprep.subr.bf16.mxu0 0
    %1850 = vmatpush1.bf16.msra.mxu0 %v1841
    %1851 = vmatprep.subr.bf16.mxu0 0
    %1852 = vmatpush1.bf16.msra.mxu0 %v1842
    %1853 = vmatprep.subr.bf16.mxu0 0
    %1854 = vmatpush1.bf16.msra.mxu0 %v1843
    %1855 = vmatprep.subr.bf16.mxu0 0
    %1856 = vmatpush1.bf16.msra.mxu0 %v1844
    %1857 = vmatprep.subr.bf16.mxu0 0
    %1858 = vmatpush1.bf16.msra.mxu0 0
    %1859 = vmatprep.subr.bf16.mxu0 0
    %1860 = vmatpush1.bf16.msra.mxu0 0
    %1861 = vmatprep.subr.bf16.mxu0 0
    %1862 = vmatpush1.bf16.msra.mxu0 0
    %1863 = vmatprep.subr.bf16.mxu0 0
    %1864 = vmatpush1.bf16.msra.mxu0 0
    %1865 = vmatprep.subr.bf16.mxu0 0
    %1866 = vmatpush1.bf16.msra.mxu0 0
    %1867 = vmatprep.subr.bf16.mxu0 0
    %1868 = vmatpush1.bf16.msra.mxu0 0
    %1869 = vmatprep.subr.bf16.mxu0 0
    %1870 = vmatpush1.bf16.msra.mxu0 0
    %1871 = vmatprep.subr.bf16.mxu0 0
    %1872 = vmatpush1.bf16.msra.mxu0 0
    %1873 = vmatprep.subr.bf16.mxu0 0
    %1874 = vmatpush1.bf16.msra.mxu0 0
    %1875 = vmatprep.subr.bf16.mxu0 0
    %1876 = vmatpush1.bf16.msra.mxu0 0
    %1877 = vmatprep.subr.bf16.mxu0 0
    %1878 = vmatpush1.bf16.msra.mxu0 0
    %1879 = vmatprep.subr.bf16.mxu0 0
    %1880 = vmatpush1.bf16.msra.mxu0 0
    %1881 = vmatprep.mubr.bf16.mxu0 0
    %1882 = vmatmul.mubr.bf16.gmra.mrb[0].mxu0 %v1698
    %v1883 = vpop.f32.mrb[0].mxu0
    %v1884 = vadd.f32 0.0, %v1883
    %v1885 = vpop.f32.mrb[0].mxu0
    %v1886 = vpop.f32.mrb[0].mxu0
    %v1887 = vpop.f32.mrb[0].mxu0
    %1888 = vdwg.mxu0
    %1889 = vst.msk [vmem:[#allocation2 + $0x10] sm:$0xff] %vm1740, %v1884
    %s1890 = scalar_lea.vmem %s4, 96
    %v1891 = vld [vmem:[%s1890] sm:$0xf]
    %v1892 = vld [vmem:[%s1890 + $0x4] sm:$0xf]
    %v1893 = vld [vmem:[%s1890 + $0x8] sm:$0xf]
    %v1894 = vld [vmem:[%s1890 + $0xc] sm:$0xf]
    %v1895 = vld [vmem:[%s1890 + $0x10] sm:$0xf]
    %v1896 = vld [vmem:[%s1890 + $0x14] sm:$0xf]
    %v1897 = vld [vmem:[%s1890 + $0x18] sm:$0xf]
    %v1898 = vld [vmem:[%s1890 + $0x1c] sm:$0xf]
    %v1907 = vunpack.c.l.b16 %v1891
    %v1908 = vunpack.c.l.b16 %v1892
    %v1909 = vunpack.c.l.b16 %v1893
    %v1910 = vunpack.c.l.b16 %v1894
    %v1911 = vunpack.c.l.b16 %v1895
    %v1912 = vunpack.c.l.b16 %v1896
    %v1913 = vunpack.c.l.b16 %v1897
    %v1914 = vunpack.c.l.b16 %v1898
    %v1915 = vpack.c.b16 %v1908, %v1907
    %v1916 = vpack.c.b16 %v1910, %v1909
    %v1917 = vpack.c.b16 %v1912, %v1911
    %v1918 = vpack.c.b16 %v1914, %v1913
    %1923 = vmatprep.subr.bf16.mxu0 0
    %1924 = vmatpush1.bf16.msra.mxu0 %v1915
    %1925 = vmatprep.subr.bf16.mxu0 0
    %1926 = vmatpush1.bf16.msra.mxu0 %v1916
    %1927 = vmatprep.subr.bf16.mxu0 0
    %1928 = vmatpush1.bf16.msra.mxu0 %v1917
    %1929 = vmatprep.subr.bf16.mxu0 0
    %1930 = vmatpush1.bf16.msra.mxu0 %v1918
    %1931 = vmatprep.subr.bf16.mxu0 0
    %1932 = vmatpush1.bf16.msra.mxu0 0
    %1933 = vmatprep.subr.bf16.mxu0 0
    %1934 = vmatpush1.bf16.msra.mxu0 0
    %1935 = vmatprep.subr.bf16.mxu0 0
    %1936 = vmatpush1.bf16.msra.mxu0 0
    %1937 = vmatprep.subr.bf16.mxu0 0
    %1938 = vmatpush1.bf16.msra.mxu0 0
    %1939 = vmatprep.subr.bf16.mxu0 0
    %1940 = vmatpush1.bf16.msra.mxu0 0
    %1941 = vmatprep.subr.bf16.mxu0 0
    %1942 = vmatpush1.bf16.msra.mxu0 0
    %1943 = vmatprep.subr.bf16.mxu0 0
    %1944 = vmatpush1.bf16.msra.mxu0 0
    %1945 = vmatprep.subr.bf16.mxu0 0
    %1946 = vmatpush1.bf16.msra.mxu0 0
    %1947 = vmatprep.subr.bf16.mxu0 0
    %1948 = vmatpush1.bf16.msra.mxu0 0
    %1949 = vmatprep.subr.bf16.mxu0 0
    %1950 = vmatpush1.bf16.msra.mxu0 0
    %1951 = vmatprep.subr.bf16.mxu0 0
    %1952 = vmatpush1.bf16.msra.mxu0 0
    %1953 = vmatprep.subr.bf16.mxu0 0
    %1954 = vmatpush1.bf16.msra.mxu0 0
    %1955 = vmatprep.mubr.bf16.mxu0 0
    %1956 = vmatmul.mubr.bf16.gmra.mrb[0].mxu0 %v1698
    %v1957 = vpop.f32.mrb[0].mxu0
    %v1958 = vadd.f32 0.0, %v1957
    %v1959 = vpop.f32.mrb[0].mxu0
    %v1960 = vpop.f32.mrb[0].mxu0
    %v1961 = vpop.f32.mrb[0].mxu0
    %1962 = vdwg.mxu0
    %1963 = vst.msk [vmem:[#allocation2 + $0x18] sm:$0xff] %vm1740, %v1958
    %s1964 = scalar_lea.vmem %s4, 128
    %v1965 = vld [vmem:[%s1964] sm:$0xf]
    %v1966 = vld [vmem:[%s1964 + $0x4] sm:$0xf]
    %v1967 = vld [vmem:[%s1964 + $0x8] sm:$0xf]
    %v1968 = vld [vmem:[%s1964 + $0xc] sm:$0xf]
    %v1969 = vld [vmem:[%s1964 + $0x10] sm:$0xf]
    %v1970 = vld [vmem:[%s1964 + $0x14] sm:$0xf]
    %v1971 = vld [vmem:[%s1964 + $0x18] sm:$0xf]
    %v1972 = vld [vmem:[%s1964 + $0x1c] sm:$0xf]
    %v1981 = vunpack.c.l.b16 %v1965
    %v1982 = vunpack.c.l.b16 %v1966
    %v1983 = vunpack.c.l.b16 %v1967
    %v1984 = vunpack.c.l.b16 %v1968
    %v1985 = vunpack.c.l.b16 %v1969
    %v1986 = vunpack.c.l.b16 %v1970
    %v1987 = vunpack.c.l.b16 %v1971
    %v1988 = vunpack.c.l.b16 %v1972
    %v1989 = vpack.c.b16 %v1982, %v1981
    %v1990 = vpack.c.b16 %v1984, %v1983
    %v1991 = vpack.c.b16 %v1986, %v1985
    %v1992 = vpack.c.b16 %v1988, %v1987
    %1997 = vmatprep.subr.bf16.mxu0 0
    %1998 = vmatpush1.bf16.msra.mxu0 %v1989
    %1999 = vmatprep.subr.bf16.mxu0 0
    %2000 = vmatpush1.bf16.msra.mxu0 %v1990
    %2001 = vmatprep.subr.bf16.mxu0 0
    %2002 = vmatpush1.bf16.msra.mxu0 %v1991
    %2003 = vmatprep.subr.bf16.mxu0 0
    %2004 = vmatpush1.bf16.msra.mxu0 %v1992
    %2005 = vmatprep.subr.bf16.mxu0 0
    %2006 = vmatpush1.bf16.msra.mxu0 0
    %2007 = vmatprep.subr.bf16.mxu0 0
    %2008 = vmatpush1.bf16.msra.mxu0 0
    %2009 = vmatprep.subr.bf16.mxu0 0
    %2010 = vmatpush1.bf16.msra.mxu0 0
    %2011 = vmatprep.subr.bf16.mxu0 0
    %2012 = vmatpush1.bf16.msra.mxu0 0
    %2013 = vmatprep.subr.bf16.mxu0 0
    %2014 = vmatpush1.bf16.msra.mxu0 0
    %2015 = vmatprep.subr.bf16.mxu0 0
    %2016 = vmatpush1.bf16.msra.mxu0 0
    %2017 = vmatprep.subr.bf16.mxu0 0
    %2018 = vmatpush1.bf16.msra.mxu0 0
    %2019 = vmatprep.subr.bf16.mxu0 0
    %2020 = vmatpush1.bf16.msra.mxu0 0
    %2021 = vmatprep.subr.bf16.mxu0 0
    %2022 = vmatpush1.bf16.msra.mxu0 0
    %2023 = vmatprep.subr.bf16.mxu0 0
    %2024 = vmatpush1.bf16.msra.mxu0 0
    %2025 = vmatprep.subr.bf16.mxu0 0
    %2026 = vmatpush1.bf16.msra.mxu0 0
    %2027 = vmatprep.subr.bf16.mxu0 0
    %2028 = vmatpush1.bf16.msra.mxu0 0
    %2029 = vmatprep.mubr.bf16.mxu0 0
    %2030 = vmatmul.mubr.bf16.gmra.mrb[0].mxu0 %v1698
    %v2031 = vpop.f32.mrb[0].mxu0
    %v2032 = vadd.f32 0.0, %v2031
    %v2033 = vpop.f32.mrb[0].mxu0
    %v2034 = vpop.f32.mrb[0].mxu0
    %v2035 = vpop.f32.mrb[0].mxu0
    %2036 = vdwg.mxu0
    %2037 = vst.msk [vmem:[#allocation2 + $0x20] sm:$0xff] %vm1740, %v2032
    %s2038 = scalar_lea.vmem %s4, 160
    %v2039 = vld [vmem:[%s2038] sm:$0xf]
    %v2040 = vld [vmem:[%s2038 + $0x4] sm:$0xf]
    %v2041 = vld [vmem:[%s2038 + $0x8] sm:$0xf]
    %v2042 = vld [vmem:[%s2038 + $0xc] sm:$0xf]
    %v2043 = vld [vmem:[%s2038 + $0x10] sm:$0xf]
    %v2044 = vld [vmem:[%s2038 + $0x14] sm:$0xf]
    %v2045 = vld [vmem:[%s2038 + $0x18] sm:$0xf]
    %v2046 = vld [vmem:[%s2038 + $0x1c] sm:$0xf]
    %v2055 = vunpack.c.l.b16 %v2039
    %v2056 = vunpack.c.l.b16 %v2040
    %v2057 = vunpack.c.l.b16 %v2041
    %v2058 = vunpack.c.l.b16 %v2042
    %v2059 = vunpack.c.l.b16 %v2043
    %v2060 = vunpack.c.l.b16 %v2044
    %v2061 = vunpack.c.l.b16 %v2045
    %v2062 = vunpack.c.l.b16 %v2046
    %v2063 = vpack.c.b16 %v2056, %v2055
    %v2064 = vpack.c.b16 %v2058, %v2057
    %v2065 = vpack.c.b16 %v2060, %v2059
    %v2066 = vpack.c.b16 %v2062, %v2061
    %2071 = vmatprep.subr.bf16.mxu0 0
    %2072 = vmatpush1.bf16.msra.mxu0 %v2063
    %2073 = vmatprep.subr.bf16.mxu0 0
    %2074 = vmatpush1.bf16.msra.mxu0 %v2064
    %2075 = vmatprep.subr.bf16.mxu0 0
    %2076 = vmatpush1.bf16.msra.mxu0 %v2065
    %2077 = vmatprep.subr.bf16.mxu0 0
    %2078 = vmatpush1.bf16.msra.mxu0 %v2066
    %2079 = vmatprep.subr.bf16.mxu0 0
    %2080 = vmatpush1.bf16.msra.mxu0 0
    %2081 = vmatprep.subr.bf16.mxu0 0
    %2082 = vmatpush1.bf16.msra.mxu0 0
    %2083 = vmatprep.subr.bf16.mxu0 0
    %2084 = vmatpush1.bf16.msra.mxu0 0
    %2085 = vmatprep.subr.bf16.mxu0 0
    %2086 = vmatpush1.bf16.msra.mxu0 0
    %2087 = vmatprep.subr.bf16.mxu0 0
    %2088 = vmatpush1.bf16.msra.mxu0 0
    %2089 = vmatprep.subr.bf16.mxu0 0
    %2090 = vmatpush1.bf16.msra.mxu0 0
    %2091 = vmatprep.subr.bf16.mxu0 0
    %2092 = vmatpush1.bf16.msra.mxu0 0
    %2093 = vmatprep.subr.bf16.mxu0 0
    %2094 = vmatpush1.bf16.msra.mxu0 0
    %2095 = vmatprep.subr.bf16.mxu0 0
    %2096 = vmatpush1.bf16.msra.mxu0 0
    %2097 = vmatprep.subr.bf16.mxu0 0
    %2098 = vmatpush1.bf16.msra.mxu0 0
    %2099 = vmatprep.subr.bf16.mxu0 0
    %2100 = vmatpush1.bf16.msra.mxu0 0
    %2101 = vmatprep.subr.bf16.mxu0 0
    %2102 = vmatpush1.bf16.msra.mxu0 0
    %2103 = vmatprep.mubr.bf16.mxu0 0
    %2104 = vmatmul.mubr.bf16.gmra.mrb[0].mxu0 %v1698
    %v2105 = vpop.f32.mrb[0].mxu0
    %v2106 = vadd.f32 0.0, %v2105
    %v2107 = vpop.f32.mrb[0].mxu0
    %v2108 = vpop.f32.mrb[0].mxu0
    %v2109 = vpop.f32.mrb[0].mxu0
    %2110 = vdwg.mxu0
    %2111 = vst.msk [vmem:[#allocation2 + $0x28] sm:$0xff] %vm1740, %v2106
    %s2112 = scalar_lea.vmem %s4, 192
    %v2113 = vld [vmem:[%s2112] sm:$0xf]
    %v2114 = vld [vmem:[%s2112 + $0x4] sm:$0xf]
    %v2115 = vld [vmem:[%s2112 + $0x8] sm:$0xf]
    %v2116 = vld [vmem:[%s2112 + $0xc] sm:$0xf]
    %v2117 = vld [vmem:[%s2112 + $0x10] sm:$0xf]
    %v2118 = vld [vmem:[%s2112 + $0x14] sm:$0xf]
    %v2119 = vld [vmem:[%s2112 + $0x18] sm:$0xf]
    %v2120 = vld [vmem:[%s2112 + $0x1c] sm:$0xf]
    %v2129 = vunpack.c.l.b16 %v2113
    %v2130 = vunpack.c.l.b16 %v2114
    %v2131 = vunpack.c.l.b16 %v2115
    %v2132 = vunpack.c.l.b16 %v2116
    %v2133 = vunpack.c.l.b16 %v2117
    %v2134 = vunpack.c.l.b16 %v2118
    %v2135 = vunpack.c.l.b16 %v2119
    %v2136 = vunpack.c.l.b16 %v2120
    %v2137 = vpack.c.b16 %v2130, %v2129
    %v2138 = vpack.c.b16 %v2132, %v2131
    %v2139 = vpack.c.b16 %v2134, %v2133
    %v2140 = vpack.c.b16 %v2136, %v2135
    %2145 = vmatprep.subr.bf16.mxu0 0
    %2146 = vmatpush1.bf16.msra.mxu0 %v2137
    %2147 = vmatprep.subr.bf16.mxu0 0
    %2148 = vmatpush1.bf16.msra.mxu0 %v2138
    %2149 = vmatprep.subr.bf16.mxu0 0
    %2150 = vmatpush1.bf16.msra.mxu0 %v2139
    %2151 = vmatprep.subr.bf16.mxu0 0
    %2152 = vmatpush1.bf16.msra.mxu0 %v2140
    %2153 = vmatprep.subr.bf16.mxu0 0
    %2154 = vmatpush1.bf16.msra.mxu0 0
    %2155 = vmatprep.subr.bf16.mxu0 0
    %2156 = vmatpush1.bf16.msra.mxu0 0
    %2157 = vmatprep.subr.bf16.mxu0 0
    %2158 = vmatpush1.bf16.msra.mxu0 0
    %2159 = vmatprep.subr.bf16.mxu0 0
    %2160 = vmatpush1.bf16.msra.mxu0 0
    %2161 = vmatprep.subr.bf16.mxu0 0
    %2162 = vmatpush1.bf16.msra.mxu0 0
    %2163 = vmatprep.subr.bf16.mxu0 0
    %2164 = vmatpush1.bf16.msra.mxu0 0
    %2165 = vmatprep.subr.bf16.mxu0 0
    %2166 = vmatpush1.bf16.msra.mxu0 0
    %2167 = vmatprep.subr.bf16.mxu0 0
    %2168 = vmatpush1.bf16.msra.mxu0 0
    %2169 = vmatprep.subr.bf16.mxu0 0
    %2170 = vmatpush1.bf16.msra.mxu0 0
    %2171 = vmatprep.subr.bf16.mxu0 0
    %2172 = vmatpush1.bf16.msra.mxu0 0
    %2173 = vmatprep.subr.bf16.mxu0 0
    %2174 = vmatpush1.bf16.msra.mxu0 0
    %2175 = vmatprep.subr.bf16.mxu0 0
    %2176 = vmatpush1.bf16.msra.mxu0 0
    %2177 = vmatprep.mubr.bf16.mxu0 0
    %2178 = vmatmul.mubr.bf16.gmra.mrb[0].mxu0 %v1698
    %v2179 = vpop.f32.mrb[0].mxu0
    %v2180 = vadd.f32 0.0, %v2179
    %v2181 = vpop.f32.mrb[0].mxu0
    %v2182 = vpop.f32.mrb[0].mxu0
    %v2183 = vpop.f32.mrb[0].mxu0
    %2184 = vdwg.mxu0
    %2185 = vst.msk [vmem:[#allocation2 + $0x30] sm:$0xff] %vm1740, %v2180
    %s2186 = scalar_lea.vmem %s4, 224
    %v2187 = vld [vmem:[%s2186] sm:$0xf]
    %v2188 = vld [vmem:[%s2186 + $0x4] sm:$0xf]
    %v2189 = vld [vmem:[%s2186 + $0x8] sm:$0xf]
    %v2190 = vld [vmem:[%s2186 + $0xc] sm:$0xf]
    %v2191 = vld [vmem:[%s2186 + $0x10] sm:$0xf]
    %v2192 = vld [vmem:[%s2186 + $0x14] sm:$0xf]
    %v2193 = vld [vmem:[%s2186 + $0x18] sm:$0xf]
    %v2194 = vld [vmem:[%s2186 + $0x1c] sm:$0xf]
    %v2203 = vunpack.c.l.b16 %v2187
    %v2204 = vunpack.c.l.b16 %v2188
    %v2205 = vunpack.c.l.b16 %v2189
    %v2206 = vunpack.c.l.b16 %v2190
    %v2207 = vunpack.c.l.b16 %v2191
    %v2208 = vunpack.c.l.b16 %v2192
    %v2209 = vunpack.c.l.b16 %v2193
    %v2210 = vunpack.c.l.b16 %v2194
    %v2211 = vpack.c.b16 %v2204, %v2203
    %v2212 = vpack.c.b16 %v2206, %v2205
    %v2213 = vpack.c.b16 %v2208, %v2207
    %v2214 = vpack.c.b16 %v2210, %v2209
    %2219 = vmatprep.subr.bf16.mxu0 0
    %2220 = vmatpush1.bf16.msra.mxu0 %v2211
    %2221 = vmatprep.subr.bf16.mxu0 0
    %2222 = vmatpush1.bf16.msra.mxu0 %v2212
    %2223 = vmatprep.subr.bf16.mxu0 0
    %2224 = vmatpush1.bf16.msra.mxu0 %v2213
    %2225 = vmatprep.subr.bf16.mxu0 0
    %2226 = vmatpush1.bf16.msra.mxu0 %v2214
    %2227 = vmatprep.subr.bf16.mxu0 0
    %2228 = vmatpush1.bf16.msra.mxu0 0
    %2229 = vmatprep.subr.bf16.mxu0 0
    %2230 = vmatpush1.bf16.msra.mxu0 0
    %2231 = vmatprep.subr.bf16.mxu0 0
    %2232 = vmatpush1.bf16.msra.mxu0 0
    %2233 = vmatprep.subr.bf16.mxu0 0
    %2234 = vmatpush1.bf16.msra.mxu0 0
    %2235 = vmatprep.subr.bf16.mxu0 0
    %2236 = vmatpush1.bf16.msra.mxu0 0
    %2237 = vmatprep.subr.bf16.mxu0 0
    %2238 = vmatpush1.bf16.msra.mxu0 0
    %2239 = vmatprep.subr.bf16.mxu0 0
    %2240 = vmatpush1.bf16.msra.mxu0 0
    %2241 = vmatprep.subr.bf16.mxu0 0
    %2242 = vmatpush1.bf16.msra.mxu0 0
    %2243 = vmatprep.subr.bf16.mxu0 0
    %2244 = vmatpush1.bf16.msra.mxu0 0
    %2245 = vmatprep.subr.bf16.mxu0 0
    %2246 = vmatpush1.bf16.msra.mxu0 0
    %2247 = vmatprep.subr.bf16.mxu0 0
    %2248 = vmatpush1.bf16.msra.mxu0 0
    %2249 = vmatprep.subr.bf16.mxu0 0
    %2250 = vmatpush1.bf16.msra.mxu0 0
    %2251 = vmatprep.mubr.bf16.mxu0 0
    %2252 = vmatmul.mubr.bf16.gmra.mrb[0].mxu0 %v1698
    %v2253 = vpop.f32.mrb[0].mxu0
    %v2254 = vadd.f32 0.0, %v2253
    %v2255 = vpop.f32.mrb[0].mxu0
    %v2256 = vpop.f32.mrb[0].mxu0
    %v2257 = vpop.f32.mrb[0].mxu0
    %2258 = vdwg.mxu0
    %2259 = vst.msk [vmem:[#allocation2 + $0x38] sm:$0xff] %vm1740, %v2254
    %s2260 = scalar_lea.vmem %s4, 256
    %v2261 = vld [vmem:[%s2260] sm:$0xf]
    %v2262 = vld [vmem:[%s2260 + $0x4] sm:$0xf]
    %v2263 = vld [vmem:[%s2260 + $0x8] sm:$0xf]
    %v2264 = vld [vmem:[%s2260 + $0xc] sm:$0xf]
    %v2265 = vld [vmem:[%s2260 + $0x10] sm:$0xf]
    %v2266 = vld [vmem:[%s2260 + $0x14] sm:$0xf]
    %v2267 = vld [vmem:[%s2260 + $0x18] sm:$0xf]
    %v2268 = vld [vmem:[%s2260 + $0x1c] sm:$0xf]
    %v2277 = vunpack.c.l.b16 %v2261
    %v2278 = vunpack.c.l.b16 %v2262
    %v2279 = vunpack.c.l.b16 %v2263
    %v2280 = vunpack.c.l.b16 %v2264
    %v2281 = vunpack.c.l.b16 %v2265
    %v2282 = vunpack.c.l.b16 %v2266
    %v2283 = vunpack.c.l.b16 %v2267
    %v2284 = vunpack.c.l.b16 %v2268
    %v2285 = vpack.c.b16 %v2278, %v2277
    %v2286 = vpack.c.b16 %v2280, %v2279
    %v2287 = vpack.c.b16 %v2282, %v2281
    %v2288 = vpack.c.b16 %v2284, %v2283
    %2293 = vmatprep.subr.bf16.mxu0 0
    %2294 = vmatpush1.bf16.msra.mxu0 %v2285
    %2295 = vmatprep.subr.bf16.mxu0 0
    %2296 = vmatpush1.bf16.msra.mxu0 %v2286
    %2297 = vmatprep.subr.bf16.mxu0 0
    %2298 = vmatpush1.bf16.msra.mxu0 %v2287
    %2299 = vmatprep.subr.bf16.mxu0 0
    %2300 = vmatpush1.bf16.msra.mxu0 %v2288
    %2301 = vmatprep.subr.bf16.mxu0 0
    %2302 = vmatpush1.bf16.msra.mxu0 0
    %2303 = vmatprep.subr.bf16.mxu0 0
    %2304 = vmatpush1.bf16.msra.mxu0 0
    %2305 = vmatprep.subr.bf16.mxu0 0
    %2306 = vmatpush1.bf16.msra.mxu0 0
    %2307 = vmatprep.subr.bf16.mxu0 0
    %2308 = vmatpush1.bf16.msra.mxu0 0
    %2309 = vmatprep.subr.bf16.mxu0 0
    %2310 = vmatpush1.bf16.msra.mxu0 0
    %2311 = vmatprep.subr.bf16.mxu0 0
    %2312 = vmatpush1.bf16.msra.mxu0 0
    %2313 = vmatprep.subr.bf16.mxu0 0
    %2314 = vmatpush1.bf16.msra.mxu0 0
    %2315 = vmatprep.subr.bf16.mxu0 0
    %2316 = vmatpush1.bf16.msra.mxu0 0
    %2317 = vmatprep.subr.bf16.mxu0 0
    %2318 = vmatpush1.bf16.msra.mxu0 0
    %2319 = vmatprep.subr.bf16.mxu0 0
    %2320 = vmatpush1.bf16.msra.mxu0 0
    %2321 = vmatprep.subr.bf16.mxu0 0
    %2322 = vmatpush1.bf16.msra.mxu0 0
    %2323 = vmatprep.subr.bf16.mxu0 0
    %2324 = vmatpush1.bf16.msra.mxu0 0
    %2325 = vmatprep.mubr.bf16.mxu0 0
    %2326 = vmatmul.mubr.bf16.gmra.mrb[0].mxu0 %v1698
    %v2327 = vpop.f32.mrb[0].mxu0
    %v2328 = vadd.f32 0.0, %v2327
    %v2329 = vpop.f32.mrb[0].mxu0
    %v2330 = vpop.f32.mrb[0].mxu0
    %v2331 = vpop.f32.mrb[0].mxu0
    %2332 = vdwg.mxu0
    %2333 = vst.msk [vmem:[#allocation2 + $0x40] sm:$0xff] %vm1740, %v2328
    %v2334 = vld [vmem:[#allocation2] sm:$0xff]
    %v2335 = vld [vmem:[#allocation2 + $0x8] sm:$0xff]
    %v2336 = vld [vmem:[#allocation2 + $0x10] sm:$0xff]
    %v2337 = vld [vmem:[#allocation2 + $0x18] sm:$0xff]
    %v2338 = vld [vmem:[#allocation2 + $0x20] sm:$0xff]
    %v2339 = vld [vmem:[#allocation2 + $0x28] sm:$0xff]
    %v2340 = vld [vmem:[#allocation2 + $0x30] sm:$0xff]
    %v2341 = vld [vmem:[#allocation2 + $0x38] sm:$0xff]
    %v2342 = vld [vmem:[#allocation2 + $0x40] sm:$0xff]
    %v2343 = vpack.c.bf16 %v2335, %v2334
    %v2344 = vpack.c.bf16 %v2337, %v2336
    %v2345 = vpack.c.bf16 %v2339, %v2338
    %v2346 = vpack.c.bf16 %v2341, %v2340
    %v2347 = vpack.c.bf16 %v2342, %v2342
    %v2348 = vld [vmem:[%s5] sm:$0xf]
    %v2349 = vld [vmem:[%s6] sm:$0xff]
    %2351 = vset.pattern.permute.xlu0 0
    %2352 = vperm.xlu0 %2351, %v2349
    %v2353 = vpop.permute.xlu0 %2352
    %vm2355 = vcmask 588800
    %v2357 = vsel %vm2355, %v2348, 0
    %vm2359 = vcmask 1043456
    %v2361 = vsel %vm2359, %v2347, 0
    %2363 = vmatprep.subr.bf16.mxu0 0
    %2364 = vmatpush1.bf16.msra.mxu0 %v2343
    %2365 = vmatprep.subr.bf16.mxu0 0
    %2366 = vmatpush1.bf16.msra.mxu0 %v2344
    %2367 = vmatprep.subr.bf16.mxu0 0
    %2368 = vmatpush1.bf16.msra.mxu0 %v2345
    %2369 = vmatprep.subr.bf16.mxu0 0
    %2370 = vmatpush1.bf16.msra.mxu0 %v2346
    %2371 = vmatprep.subr.bf16.mxu0 0
    %2372 = vmatpush1.bf16.msra.mxu0 %v2361
    %2373 = vmatprep.subr.bf16.mxu0 0
    %2374 = vmatpush1.bf16.msra.mxu0 0
    %2375 = vmatprep.subr.bf16.mxu0 0
    %2376 = vmatpush1.bf16.msra.mxu0 0
    %2377 = vmatprep.subr.bf16.mxu0 0
    %2378 = vmatpush1.bf16.msra.mxu0 0
    %2379 = vmatprep.subr.bf16.mxu0 0
    %2380 = vmatpush1.bf16.msra.mxu0 0
    %2381 = vmatprep.subr.bf16.mxu0 0
    %2382 = vmatpush1.bf16.msra.mxu0 0
    %2383 = vmatprep.subr.bf16.mxu0 0
    %2384 = vmatpush1.bf16.msra.mxu0 0
    %2385 = vmatprep.subr.bf16.mxu0 0
    %2386 = vmatpush1.bf16.msra.mxu0 0
    %2387 = vmatprep.subr.bf16.mxu0 0
    %2388 = vmatpush1.bf16.msra.mxu0 0
    %2389 = vmatprep.subr.bf16.mxu0 0
    %2390 = vmatpush1.bf16.msra.mxu0 0
    %2391 = vmatprep.subr.bf16.mxu0 0
    %2392 = vmatpush1.bf16.msra.mxu0 0
    %2393 = vmatprep.subr.bf16.mxu0 0
    %2394 = vmatpush1.bf16.msra.mxu0 0
    %2395 = vmatprep.mubr.bf16.mxu0 0
    %2396 = vmatmul.mubr.bf16.gmra.mrb[0].mxu0 %v2357
    %v2397 = vpop.f32.mrb[0].mxu0
    %v2398 = vadd.f32 %v2353, %v2397
    %v2399 = vpop.f32.mrb[0].mxu0
    %v2400 = vpop.f32.mrb[0].mxu0
    %v2401 = vpop.f32.mrb[0].mxu0
    %2402 = vdwg.mxu0
    %v2403 = vmul.f32 %v2398, 0.01
    %v2404 = vmax.f32 %v2398, %v2403
    %v2405 = vpack.c.bf16 %v2404, %v2404
    %v2406 = vld [vmem:[%s7] sm:$0xf]
    %v2407 = vld [vmem:[%s7 + $0x4] sm:$0xf]
    %v2410 = vunpack.c.l.b16 %v2406
    %v2411 = vunpack.c.l.b16 %v2407
    %v2412 = vpack.c.b16 %v2411, %v2410
    %v2415 = vsel %vm1740, %v2405, 0
    %2417 = vmatprep.subr.bf16.mxu0 0
    %2418 = vmatpush1.bf16.msra.mxu0 %v2412
    %2419 = vmatprep.subr.bf16.mxu0 0
    %2420 = vmatpush1.bf16.msra.mxu0 0
    %2421 = vmatprep.subr.bf16.mxu0 0
    %2422 = vmatpush1.bf16.msra.mxu0 0
    %2423 = vmatprep.subr.bf16.mxu0 0
    %2424 = vmatpush1.bf16.msra.mxu0 0
    %2425 = vmatprep.subr.bf16.mxu0 0
    %2426 = vmatpush1.bf16.msra.mxu0 0
    %2427 = vmatprep.subr.bf16.mxu0 0
    %2428 = vmatpush1.bf16.msra.mxu0 0
    %2429 = vmatprep.subr.bf16.mxu0 0
    %2430 = vmatpush1.bf16.msra.mxu0 0
    %2431 = vmatprep.subr.bf16.mxu0 0
    %2432 = vmatpush1.bf16.msra.mxu0 0
    %2433 = vmatprep.subr.bf16.mxu0 0
    %2434 = vmatpush1.bf16.msra.mxu0 0
    %2435 = vmatprep.subr.bf16.mxu0 0
    %2436 = vmatpush1.bf16.msra.mxu0 0
    %2437 = vmatprep.subr.bf16.mxu0 0
    %2438 = vmatpush1.bf16.msra.mxu0 0
    %2439 = vmatprep.subr.bf16.mxu0 0
    %2440 = vmatpush1.bf16.msra.mxu0 0
    %2441 = vmatprep.subr.bf16.mxu0 0
    %2442 = vmatpush1.bf16.msra.mxu0 0
    %2443 = vmatprep.subr.bf16.mxu0 0
    %2444 = vmatpush1.bf16.msra.mxu0 0
    %2445 = vmatprep.subr.bf16.mxu0 0
    %2446 = vmatpush1.bf16.msra.mxu0 0
    %2447 = vmatprep.subr.bf16.mxu0 0
    %2448 = vmatpush1.bf16.msra.mxu0 0
    %2449 = vmatprep.mubr.bf16.mxu0 0
    %2450 = vmatmul.mubr.bf16.gmra.mrb[0].mxu0 %v2415
    %v2451 = vpop.f32.mrb[0].mxu0
    %v2452 = vadd.f32 0.0, %v2451
    %v2453 = vpop.f32.mrb[0].mxu0
    %v2454 = vpop.f32.mrb[0].mxu0
    %v2455 = vpop.f32.mrb[0].mxu0
    %2456 = vdwg.mxu0
    %vm2457 = vcmask 31744
    %2458 = vst.msk [vmem:[#allocation2] sm:$0xff] %vm2457, %v2452
    %s2459 = scalar_lea.vmem %s7, 8
    %v2460 = vld [vmem:[%s2459] sm:$0xf]
    %v2461 = vld [vmem:[%s2459 + $0x4] sm:$0xf]
    %v2464 = vunpack.c.l.b16 %v2460
    %v2465 = vunpack.c.l.b16 %v2461
    %v2466 = vpack.c.b16 %v2465, %v2464
    %2468 = vmatprep.subr.bf16.mxu0 0
    %2469 = vmatpush1.bf16.msra.mxu0 %v2466
    %2470 = vmatprep.subr.bf16.mxu0 0
    %2471 = vmatpush1.bf16.msra.mxu0 0
    %2472 = vmatprep.subr.bf16.mxu0 0
    %2473 = vmatpush1.bf16.msra.mxu0 0
    %2474 = vmatprep.subr.bf16.mxu0 0
    %2475 = vmatpush1.bf16.msra.mxu0 0
    %2476 = vmatprep.subr.bf16.mxu0 0
    %2477 = vmatpush1.bf16.msra.mxu0 0
    %2478 = vmatprep.subr.bf16.mxu0 0
    %2479 = vmatpush1.bf16.msra.mxu0 0
    %2480 = vmatprep.subr.bf16.mxu0 0
    %2481 = vmatpush1.bf16.msra.mxu0 0
    %2482 = vmatprep.subr.bf16.mxu0 0
    %2483 = vmatpush1.bf16.msra.mxu0 0
    %2484 = vmatprep.subr.bf16.mxu0 0
    %2485 = vmatpush1.bf16.msra.mxu0 0
    %2486 = vmatprep.subr.bf16.mxu0 0
    %2487 = vmatpush1.bf16.msra.mxu0 0
    %2488 = vmatprep.subr.bf16.mxu0 0
    %2489 = vmatpush1.bf16.msra.mxu0 0
    %2490 = vmatprep.subr.bf16.mxu0 0
    %2491 = vmatpush1.bf16.msra.mxu0 0
    %2492 = vmatprep.subr.bf16.mxu0 0
    %2493 = vmatpush1.bf16.msra.mxu0 0
    %2494 = vmatprep.subr.bf16.mxu0 0
    %2495 = vmatpush1.bf16.msra.mxu0 0
    %2496 = vmatprep.subr.bf16.mxu0 0
    %2497 = vmatpush1.bf16.msra.mxu0 0
    %2498 = vmatprep.subr.bf16.mxu0 0
    %2499 = vmatpush1.bf16.msra.mxu0 0
    %2500 = vmatprep.mubr.bf16.mxu0 0
    %2501 = vmatmul.mubr.bf16.gmra.mrb[0].mxu0 %v2415
    %v2502 = vpop.f32.mrb[0].mxu0
    %v2503 = vadd.f32 0.0, %v2502
    %v2504 = vpop.f32.mrb[0].mxu0
    %v2505 = vpop.f32.mrb[0].mxu0
    %v2506 = vpop.f32.mrb[0].mxu0
    %2507 = vdwg.mxu0
    %2508 = vst.msk [vmem:[#allocation2 + $0x8] sm:$0xff] %vm2457, %v2503
    %s2509 = scalar_lea.vmem %s7, 16
    %v2510 = vld [vmem:[%s2509] sm:$0xf]
    %v2511 = vld [vmem:[%s2509 + $0x4] sm:$0xf]
    %v2514 = vunpack.c.l.b16 %v2510
    %v2515 = vunpack.c.l.b16 %v2511
    %v2516 = vpack.c.b16 %v2515, %v2514
    %2518 = vmatprep.subr.bf16.mxu0 0
    %2519 = vmatpush1.bf16.msra.mxu0 %v2516
    %2520 = vmatprep.subr.bf16.mxu0 0
    %2521 = vmatpush1.bf16.msra.mxu0 0
    %2522 = vmatprep.subr.bf16.mxu0 0
    %2523 = vmatpush1.bf16.msra.mxu0 0
    %2524 = vmatprep.subr.bf16.mxu0 0
    %2525 = vmatpush1.bf16.msra.mxu0 0
    %2526 = vmatprep.subr.bf16.mxu0 0
    %2527 = vmatpush1.bf16.msra.mxu0 0
    %2528 = vmatprep.subr.bf16.mxu0 0
    %2529 = vmatpush1.bf16.msra.mxu0 0
    %2530 = vmatprep.subr.bf16.mxu0 0
    %2531 = vmatpush1.bf16.msra.mxu0 0
    %2532 = vmatprep.subr.bf16.mxu0 0
    %2533 = vmatpush1.bf16.msra.mxu0 0
    %2534 = vmatprep.subr.bf16.mxu0 0
    %2535 = vmatpush1.bf16.msra.mxu0 0
    %2536 = vmatprep.subr.bf16.mxu0 0
    %2537 = vmatpush1.bf16.msra.mxu0 0
    %2538 = vmatprep.subr.bf16.mxu0 0
    %2539 = vmatpush1.bf16.msra.mxu0 0
    %2540 = vmatprep.subr.bf16.mxu0 0
    %2541 = vmatpush1.bf16.msra.mxu0 0
    %2542 = vmatprep.subr.bf16.mxu0 0
    %2543 = vmatpush1.bf16.msra.mxu0 0
    %2544 = vmatprep.subr.bf16.mxu0 0
    %2545 = vmatpush1.bf16.msra.mxu0 0
    %2546 = vmatprep.subr.bf16.mxu0 0
    %2547 = vmatpush1.bf16.msra.mxu0 0
    %2548 = vmatprep.subr.bf16.mxu0 0
    %2549 = vmatpush1.bf16.msra.mxu0 0
    %2550 = vmatprep.mubr.bf16.mxu0 0
    %2551 = vmatmul.mubr.bf16.gmra.mrb[0].mxu0 %v2415
    %v2552 = vpop.f32.mrb[0].mxu0
    %v2553 = vadd.f32 0.0, %v2552
    %v2554 = vpop.f32.mrb[0].mxu0
    %v2555 = vpop.f32.mrb[0].mxu0
    %v2556 = vpop.f32.mrb[0].mxu0
    %2557 = vdwg.mxu0
    %2558 = vst.msk [vmem:[#allocation2 + $0x10] sm:$0xff] %vm2457, %v2553
    %s2559 = scalar_lea.vmem %s7, 24
    %v2560 = vld [vmem:[%s2559] sm:$0xf]
    %v2561 = vld [vmem:[%s2559 + $0x4] sm:$0xf]
    %v2564 = vunpack.c.l.b16 %v2560
    %v2565 = vunpack.c.l.b16 %v2561
    %v2566 = vpack.c.b16 %v2565, %v2564
    %2568 = vmatprep.subr.bf16.mxu0 0
    %2569 = vmatpush1.bf16.msra.mxu0 %v2566
    %2570 = vmatprep.subr.bf16.mxu0 0
    %2571 = vmatpush1.bf16.msra.mxu0 0
    %2572 = vmatprep.subr.bf16.mxu0 0
    %2573 = vmatpush1.bf16.msra.mxu0 0
    %2574 = vmatprep.subr.bf16.mxu0 0
    %2575 = vmatpush1.bf16.msra.mxu0 0
    %2576 = vmatprep.subr.bf16.mxu0 0
    %2577 = vmatpush1.bf16.msra.mxu0 0
    %2578 = vmatprep.subr.bf16.mxu0 0
    %2579 = vmatpush1.bf16.msra.mxu0 0
    %2580 = vmatprep.subr.bf16.mxu0 0
    %2581 = vmatpush1.bf16.msra.mxu0 0
    %2582 = vmatprep.subr.bf16.mxu0 0
    %2583 = vmatpush1.bf16.msra.mxu0 0
    %2584 = vmatprep.subr.bf16.mxu0 0
    %2585 = vmatpush1.bf16.msra.mxu0 0
    %2586 = vmatprep.subr.bf16.mxu0 0
    %2587 = vmatpush1.bf16.msra.mxu0 0
    %2588 = vmatprep.subr.bf16.mxu0 0
    %2589 = vmatpush1.bf16.msra.mxu0 0
    %2590 = vmatprep.subr.bf16.mxu0 0
    %2591 = vmatpush1.bf16.msra.mxu0 0
    %2592 = vmatprep.subr.bf16.mxu0 0
    %2593 = vmatpush1.bf16.msra.mxu0 0
    %2594 = vmatprep.subr.bf16.mxu0 0
    %2595 = vmatpush1.bf16.msra.mxu0 0
    %2596 = vmatprep.subr.bf16.mxu0 0
    %2597 = vmatpush1.bf16.msra.mxu0 0
    %2598 = vmatprep.subr.bf16.mxu0 0
    %2599 = vmatpush1.bf16.msra.mxu0 0
    %2600 = vmatprep.mubr.bf16.mxu0 0
    %2601 = vmatmul.mubr.bf16.gmra.mrb[0].mxu0 %v2415
    %v2602 = vpop.f32.mrb[0].mxu0
    %v2603 = vadd.f32 0.0, %v2602
    %v2604 = vpop.f32.mrb[0].mxu0
    %v2605 = vpop.f32.mrb[0].mxu0
    %v2606 = vpop.f32.mrb[0].mxu0
    %2607 = vdwg.mxu0
    %2608 = vst.msk [vmem:[#allocation2 + $0x18] sm:$0xff] %vm2457, %v2603
    %s2609 = scalar_lea.vmem %s7, 32
    %v2610 = vld [vmem:[%s2609] sm:$0xf]
    %v2611 = vld [vmem:[%s2609 + $0x4] sm:$0xf]
    %v2614 = vunpack.c.l.b16 %v2610
    %v2615 = vunpack.c.l.b16 %v2611
    %v2616 = vpack.c.b16 %v2615, %v2614
    %2618 = vmatprep.subr.bf16.mxu0 0
    %2619 = vmatpush1.bf16.msra.mxu0 %v2616
    %2620 = vmatprep.subr.bf16.mxu0 0
    %2621 = vmatpush1.bf16.msra.mxu0 0
    %2622 = vmatprep.subr.bf16.mxu0 0
    %2623 = vmatpush1.bf16.msra.mxu0 0
    %2624 = vmatprep.subr.bf16.mxu0 0
    %2625 = vmatpush1.bf16.msra.mxu0 0
    %2626 = vmatprep.subr.bf16.mxu0 0
    %2627 = vmatpush1.bf16.msra.mxu0 0
    %2628 = vmatprep.subr.bf16.mxu0 0
    %2629 = vmatpush1.bf16.msra.mxu0 0
    %2630 = vmatprep.subr.bf16.mxu0 0
    %2631 = vmatpush1.bf16.msra.mxu0 0
    %2632 = vmatprep.subr.bf16.mxu0 0
    %2633 = vmatpush1.bf16.msra.mxu0 0
    %2634 = vmatprep.subr.bf16.mxu0 0
    %2635 = vmatpush1.bf16.msra.mxu0 0
    %2636 = vmatprep.subr.bf16.mxu0 0
    %2637 = vmatpush1.bf16.msra.mxu0 0
    %2638 = vmatprep.subr.bf16.mxu0 0
    %2639 = vmatpush1.bf16.msra.mxu0 0
    %2640 = vmatprep.subr.bf16.mxu0 0
    %2641 = vmatpush1.bf16.msra.mxu0 0
    %2642 = vmatprep.subr.bf16.mxu0 0
    %2643 = vmatpush1.bf16.msra.mxu0 0
    %2644 = vmatprep.subr.bf16.mxu0 0
    %2645 = vmatpush1.bf16.msra.mxu0 0
    %2646 = vmatprep.subr.bf16.mxu0 0
    %2647 = vmatpush1.bf16.msra.mxu0 0
    %2648 = vmatprep.subr.bf16.mxu0 0
    %2649 = vmatpush1.bf16.msra.mxu0 0
    %2650 = vmatprep.mubr.bf16.mxu0 0
    %2651 = vmatmul.mubr.bf16.gmra.mrb[0].mxu0 %v2415
    %v2652 = vpop.f32.mrb[0].mxu0
    %v2653 = vadd.f32 0.0, %v2652
    %v2654 = vpop.f32.mrb[0].mxu0
    %v2655 = vpop.f32.mrb[0].mxu0
    %v2656 = vpop.f32.mrb[0].mxu0
    %2657 = vdwg.mxu0
    %2658 = vst.msk [vmem:[#allocation2 + $0x20] sm:$0xff] %vm2457, %v2653
    %s2659 = scalar_lea.vmem %s7, 40
    %v2660 = vld [vmem:[%s2659] sm:$0xf]
    %v2661 = vld [vmem:[%s2659 + $0x4] sm:$0xf]
    %v2664 = vunpack.c.l.b16 %v2660
    %v2665 = vunpack.c.l.b16 %v2661
    %v2666 = vpack.c.b16 %v2665, %v2664
    %2668 = vmatprep.subr.bf16.mxu0 0
    %2669 = vmatpush1.bf16.msra.mxu0 %v2666
    %2670 = vmatprep.subr.bf16.mxu0 0
    %2671 = vmatpush1.bf16.msra.mxu0 0
    %2672 = vmatprep.subr.bf16.mxu0 0
    %2673 = vmatpush1.bf16.msra.mxu0 0
    %2674 = vmatprep.subr.bf16.mxu0 0
    %2675 = vmatpush1.bf16.msra.mxu0 0
    %2676 = vmatprep.subr.bf16.mxu0 0
    %2677 = vmatpush1.bf16.msra.mxu0 0
    %2678 = vmatprep.subr.bf16.mxu0 0
    %2679 = vmatpush1.bf16.msra.mxu0 0
    %2680 = vmatprep.subr.bf16.mxu0 0
    %2681 = vmatpush1.bf16.msra.mxu0 0
    %2682 = vmatprep.subr.bf16.mxu0 0
    %2683 = vmatpush1.bf16.msra.mxu0 0
    %2684 = vmatprep.subr.bf16.mxu0 0
    %2685 = vmatpush1.bf16.msra.mxu0 0
    %2686 = vmatprep.subr.bf16.mxu0 0
    %2687 = vmatpush1.bf16.msra.mxu0 0
    %2688 = vmatprep.subr.bf16.mxu0 0
    %2689 = vmatpush1.bf16.msra.mxu0 0
    %2690 = vmatprep.subr.bf16.mxu0 0
    %2691 = vmatpush1.bf16.msra.mxu0 0
    %2692 = vmatprep.subr.bf16.mxu0 0
    %2693 = vmatpush1.bf16.msra.mxu0 0
    %2694 = vmatprep.subr.bf16.mxu0 0
    %2695 = vmatpush1.bf16.msra.mxu0 0
    %2696 = vmatprep.subr.bf16.mxu0 0
    %2697 = vmatpush1.bf16.msra.mxu0 0
    %2698 = vmatprep.subr.bf16.mxu0 0
    %2699 = vmatpush1.bf16.msra.mxu0 0
    %2700 = vmatprep.mubr.bf16.mxu0 0
    %2701 = vmatmul.mubr.bf16.gmra.mrb[0].mxu0 %v2415
    %v2702 = vpop.f32.mrb[0].mxu0
    %v2703 = vadd.f32 0.0, %v2702
    %v2704 = vpop.f32.mrb[0].mxu0
    %v2705 = vpop.f32.mrb[0].mxu0
    %v2706 = vpop.f32.mrb[0].mxu0
    %2707 = vdwg.mxu0
    %2708 = vst.msk [vmem:[#allocation2 + $0x28] sm:$0xff] %vm2457, %v2703
    %s2709 = scalar_lea.vmem %s7, 48
    %v2710 = vld [vmem:[%s2709] sm:$0xf]
    %v2711 = vld [vmem:[%s2709 + $0x4] sm:$0xf]
    %v2714 = vunpack.c.l.b16 %v2710
    %v2715 = vunpack.c.l.b16 %v2711
    %v2716 = vpack.c.b16 %v2715, %v2714
    %2718 = vmatprep.subr.bf16.mxu0 0
    %2719 = vmatpush1.bf16.msra.mxu0 %v2716
    %2720 = vmatprep.subr.bf16.mxu0 0
    %2721 = vmatpush1.bf16.msra.mxu0 0
    %2722 = vmatprep.subr.bf16.mxu0 0
    %2723 = vmatpush1.bf16.msra.mxu0 0
    %2724 = vmatprep.subr.bf16.mxu0 0
    %2725 = vmatpush1.bf16.msra.mxu0 0
    %2726 = vmatprep.subr.bf16.mxu0 0
    %2727 = vmatpush1.bf16.msra.mxu0 0
    %2728 = vmatprep.subr.bf16.mxu0 0
    %2729 = vmatpush1.bf16.msra.mxu0 0
    %2730 = vmatprep.subr.bf16.mxu0 0
    %2731 = vmatpush1.bf16.msra.mxu0 0
    %2732 = vmatprep.subr.bf16.mxu0 0
    %2733 = vmatpush1.bf16.msra.mxu0 0
    %2734 = vmatprep.subr.bf16.mxu0 0
    %2735 = vmatpush1.bf16.msra.mxu0 0
    %2736 = vmatprep.subr.bf16.mxu0 0
    %2737 = vmatpush1.bf16.msra.mxu0 0
    %2738 = vmatprep.subr.bf16.mxu0 0
    %2739 = vmatpush1.bf16.msra.mxu0 0
    %2740 = vmatprep.subr.bf16.mxu0 0
    %2741 = vmatpush1.bf16.msra.mxu0 0
    %2742 = vmatprep.subr.bf16.mxu0 0
    %2743 = vmatpush1.bf16.msra.mxu0 0
    %2744 = vmatprep.subr.bf16.mxu0 0
    %2745 = vmatpush1.bf16.msra.mxu0 0
    %2746 = vmatprep.subr.bf16.mxu0 0
    %2747 = vmatpush1.bf16.msra.mxu0 0
    %2748 = vmatprep.subr.bf16.mxu0 0
    %2749 = vmatpush1.bf16.msra.mxu0 0
    %2750 = vmatprep.mubr.bf16.mxu0 0
    %2751 = vmatmul.mubr.bf16.gmra.mrb[0].mxu0 %v2415
    %v2752 = vpop.f32.mrb[0].mxu0
    %v2753 = vadd.f32 0.0, %v2752
    %v2754 = vpop.f32.mrb[0].mxu0
    %v2755 = vpop.f32.mrb[0].mxu0
    %v2756 = vpop.f32.mrb[0].mxu0
    %2757 = vdwg.mxu0
    %2758 = vst.msk [vmem:[#allocation2 + $0x30] sm:$0xff] %vm2457, %v2753
    %s2759 = scalar_lea.vmem %s7, 56
    %v2760 = vld [vmem:[%s2759] sm:$0xf]
    %v2761 = vld [vmem:[%s2759 + $0x4] sm:$0xf]
    %v2764 = vunpack.c.l.b16 %v2760
    %v2765 = vunpack.c.l.b16 %v2761
    %v2766 = vpack.c.b16 %v2765, %v2764
    %2768 = vmatprep.subr.bf16.mxu0 0
    %2769 = vmatpush1.bf16.msra.mxu0 %v2766
    %2770 = vmatprep.subr.bf16.mxu0 0
    %2771 = vmatpush1.bf16.msra.mxu0 0
    %2772 = vmatprep.subr.bf16.mxu0 0
    %2773 = vmatpush1.bf16.msra.mxu0 0
    %2774 = vmatprep.subr.bf16.mxu0 0
    %2775 = vmatpush1.bf16.msra.mxu0 0
    %2776 = vmatprep.subr.bf16.mxu0 0
    %2777 = vmatpush1.bf16.msra.mxu0 0
    %2778 = vmatprep.subr.bf16.mxu0 0
    %2779 = vmatpush1.bf16.msra.mxu0 0
    %2780 = vmatprep.subr.bf16.mxu0 0
    %2781 = vmatpush1.bf16.msra.mxu0 0
    %2782 = vmatprep.subr.bf16.mxu0 0
    %2783 = vmatpush1.bf16.msra.mxu0 0
    %2784 = vmatprep.subr.bf16.mxu0 0
    %2785 = vmatpush1.bf16.msra.mxu0 0
    %2786 = vmatprep.subr.bf16.mxu0 0
    %2787 = vmatpush1.bf16.msra.mxu0 0
    %2788 = vmatprep.subr.bf16.mxu0 0
    %2789 = vmatpush1.bf16.msra.mxu0 0
    %2790 = vmatprep.subr.bf16.mxu0 0
    %2791 = vmatpush1.bf16.msra.mxu0 0
    %2792 = vmatprep.subr.bf16.mxu0 0
    %2793 = vmatpush1.bf16.msra.mxu0 0
    %2794 = vmatprep.subr.bf16.mxu0 0
    %2795 = vmatpush1.bf16.msra.mxu0 0
    %2796 = vmatprep.subr.bf16.mxu0 0
    %2797 = vmatpush1.bf16.msra.mxu0 0
    %2798 = vmatprep.subr.bf16.mxu0 0
    %2799 = vmatpush1.bf16.msra.mxu0 0
    %2800 = vmatprep.mubr.bf16.mxu0 0
    %2801 = vmatmul.mubr.bf16.gmra.mrb[0].mxu0 %v2415
    %v2802 = vpop.f32.mrb[0].mxu0
    %v2803 = vadd.f32 0.0, %v2802
    %v2804 = vpop.f32.mrb[0].mxu0
    %v2805 = vpop.f32.mrb[0].mxu0
    %v2806 = vpop.f32.mrb[0].mxu0
    %2807 = vdwg.mxu0
    %2808 = vst.msk [vmem:[#allocation2 + $0x38] sm:$0xff] %vm2457, %v2803
    %s2809 = scalar_lea.vmem %s7, 64
    %v2810 = vld [vmem:[%s2809] sm:$0xf]
    %v2811 = vld [vmem:[%s2809 + $0x4] sm:$0xf]
    %v2814 = vunpack.c.l.b16 %v2810
    %v2815 = vunpack.c.l.b16 %v2811
    %v2816 = vpack.c.b16 %v2815, %v2814
    %2818 = vmatprep.subr.bf16.mxu0 0
    %2819 = vmatpush1.bf16.msra.mxu0 %v2816
    %2820 = vmatprep.subr.bf16.mxu0 0
    %2821 = vmatpush1.bf16.msra.mxu0 0
    %2822 = vmatprep.subr.bf16.mxu0 0
    %2823 = vmatpush1.bf16.msra.mxu0 0
    %2824 = vmatprep.subr.bf16.mxu0 0
    %2825 = vmatpush1.bf16.msra.mxu0 0
    %2826 = vmatprep.subr.bf16.mxu0 0
    %2827 = vmatpush1.bf16.msra.mxu0 0
    %2828 = vmatprep.subr.bf16.mxu0 0
    %2829 = vmatpush1.bf16.msra.mxu0 0
    %2830 = vmatprep.subr.bf16.mxu0 0
    %2831 = vmatpush1.bf16.msra.mxu0 0
    %2832 = vmatprep.subr.bf16.mxu0 0
    %2833 = vmatpush1.bf16.msra.mxu0 0
    %2834 = vmatprep.subr.bf16.mxu0 0
    %2835 = vmatpush1.bf16.msra.mxu0 0
    %2836 = vmatprep.subr.bf16.mxu0 0
    %2837 = vmatpush1.bf16.msra.mxu0 0
    %2838 = vmatprep.subr.bf16.mxu0 0
    %2839 = vmatpush1.bf16.msra.mxu0 0
    %2840 = vmatprep.subr.bf16.mxu0 0
    %2841 = vmatpush1.bf16.msra.mxu0 0
    %2842 = vmatprep.subr.bf16.mxu0 0
    %2843 = vmatpush1.bf16.msra.mxu0 0
    %2844 = vmatprep.subr.bf16.mxu0 0
    %2845 = vmatpush1.bf16.msra.mxu0 0
    %2846 = vmatprep.subr.bf16.mxu0 0
    %2847 = vmatpush1.bf16.msra.mxu0 0
    %2848 = vmatprep.subr.bf16.mxu0 0
    %2849 = vmatpush1.bf16.msra.mxu0 0
    %2850 = vmatprep.mubr.bf16.mxu0 0
    %2851 = vmatmul.mubr.bf16.gmra.mrb[0].mxu0 %v2415
    %v2852 = vpop.f32.mrb[0].mxu0
    %v2853 = vadd.f32 0.0, %v2852
    %v2854 = vpop.f32.mrb[0].mxu0
    %v2855 = vpop.f32.mrb[0].mxu0
    %v2856 = vpop.f32.mrb[0].mxu0
    %2857 = vdwg.mxu0
    %2858 = vst.msk [vmem:[#allocation2 + $0x40] sm:$0xff] %vm2457, %v2853
    %v2859 = vld [vmem:[#allocation2] sm:$0xff]
    %v2860 = vld [vmem:[#allocation2 + $0x8] sm:$0xff]
    %v2861 = vld [vmem:[#allocation2 + $0x10] sm:$0xff]
    %v2862 = vld [vmem:[#allocation2 + $0x18] sm:$0xff]
    %v2863 = vld [vmem:[#allocation2 + $0x20] sm:$0xff]
    %v2864 = vld [vmem:[#allocation2 + $0x28] sm:$0xff]
    %v2865 = vld [vmem:[#allocation2 + $0x30] sm:$0xff]
    %v2866 = vld [vmem:[#allocation2 + $0x38] sm:$0xff]
    %v2867 = vld [vmem:[#allocation2 + $0x40] sm:$0xff]
    %v2868 = vpack.c.bf16 %v2860, %v2859
    %v2869 = vpack.c.bf16 %v2862, %v2861
    %v2870 = vpack.c.bf16 %v2864, %v2863
    %v2871 = vpack.c.bf16 %v2866, %v2865
    %v2872 = vpack.c.bf16 %v2867, %v2867
    %v2873 = vld [vmem:[%s8] sm:$0xf]
    %v2874 = vld [vmem:[%s9] sm:$0xff]
    %2876 = vset.pattern.permute.xlu0 0
    %2877 = vperm.xlu0 %2876, %v2874
    %v2878 = vpop.permute.xlu0 %2877
    %v2881 = vsel %vm2355, %v2873, 0
    %v2884 = vsel %vm2359, %v2872, 0
    %2886 = vmatprep.subr.bf16.mxu0 0
    %2887 = vmatpush1.bf16.msra.mxu0 %v2868
    %2888 = vmatprep.subr.bf16.mxu0 0
    %2889 = vmatpush1.bf16.msra.mxu0 %v2869
    %2890 = vmatprep.subr.bf16.mxu0 0
    %2891 = vmatpush1.bf16.msra.mxu0 %v2870
    %2892 = vmatprep.subr.bf16.mxu0 0
    %2893 = vmatpush1.bf16.msra.mxu0 %v2871
    %2894 = vmatprep.subr.bf16.mxu0 0
    %2895 = vmatpush1.bf16.msra.mxu0 %v2884
    %2896 = vmatprep.subr.bf16.mxu0 0
    %2897 = vmatpush1.bf16.msra.mxu0 0
    %2898 = vmatprep.subr.bf16.mxu0 0
    %2899 = vmatpush1.bf16.msra.mxu0 0
    %2900 = vmatprep.subr.bf16.mxu0 0
    %2901 = vmatpush1.bf16.msra.mxu0 0
    %2902 = vmatprep.subr.bf16.mxu0 0
    %2903 = vmatpush1.bf16.msra.mxu0 0
    %2904 = vmatprep.subr.bf16.mxu0 0
    %2905 = vmatpush1.bf16.msra.mxu0 0
    %2906 = vmatprep.subr.bf16.mxu0 0
    %2907 = vmatpush1.bf16.msra.mxu0 0
    %2908 = vmatprep.subr.bf16.mxu0 0
    %2909 = vmatpush1.bf16.msra.mxu0 0
    %2910 = vmatprep.subr.bf16.mxu0 0
    %2911 = vmatpush1.bf16.msra.mxu0 0
    %2912 = vmatprep.subr.bf16.mxu0 0
    %2913 = vmatpush1.bf16.msra.mxu0 0
    %2914 = vmatprep.subr.bf16.mxu0 0
    %2915 = vmatpush1.bf16.msra.mxu0 0
    %2916 = vmatprep.subr.bf16.mxu0 0
    %2917 = vmatpush1.bf16.msra.mxu0 0
    %2918 = vmatprep.mubr.bf16.mxu0 0
    %2919 = vmatmul.mubr.bf16.gmra.mrb[0].mxu0 %v2881
    %v2920 = vpop.f32.mrb[0].mxu0
    %v2921 = vadd.f32 %v2878, %v2920
    %v2922 = vpop.f32.mrb[0].mxu0
    %v2923 = vpop.f32.mrb[0].mxu0
    %v2924 = vpop.f32.mrb[0].mxu0
    %2925 = vdwg.mxu0
    %v2926 = vmul.f32 %v2921, 0.01
    %v2927 = vmax.f32 %v2921, %v2926
    %v2928 = vpack.c.bf16 %v2927, %v2927
    %v2929 = vld [vmem:[%s10] sm:$0x3]
    %s2930 = scalar_lea.vmem %s10, 2
    %v2931 = vld [vmem:[%s2930] sm:$0x3]
    %v2933 = vrot.slane %v2928, 1
    %v2935 = vsel %vm2457, %v2933, 0
    %vm2937 = vcmask 1041408
    %v2939 = vsel %vm2937, %v2931, 0
    %2941 = vmatprep.subr.bf16.mxu0 0
    %2942 = vmatpush1.bf16.msra.mxu0 %v2939
    %2943 = vmatprep.subr.bf16.mxu0 0
    %2944 = vmatpush1.bf16.msra.mxu0 0
    %2945 = vmatprep.subr.bf16.mxu0 0
    %2946 = vmatpush1.bf16.msra.mxu0 0
    %2947 = vmatprep.subr.bf16.mxu0 0
    %2948 = vmatpush1.bf16.msra.mxu0 0
    %2949 = vmatprep.subr.bf16.mxu0 0
    %2950 = vmatpush1.bf16.msra.mxu0 0
    %2951 = vmatprep.subr.bf16.mxu0 0
    %2952 = vmatpush1.bf16.msra.mxu0 0
    %2953 = vmatprep.subr.bf16.mxu0 0
    %2954 = vmatpush1.bf16.msra.mxu0 0
    %2955 = vmatprep.subr.bf16.mxu0 0
    %2956 = vmatpush1.bf16.msra.mxu0 0
    %2957 = vmatprep.subr.bf16.mxu0 0
    %2958 = vmatpush1.bf16.msra.mxu0 0
    %2959 = vmatprep.subr.bf16.mxu0 0
    %2960 = vmatpush1.bf16.msra.mxu0 0
    %2961 = vmatprep.subr.bf16.mxu0 0
    %2962 = vmatpush1.bf16.msra.mxu0 0
    %2963 = vmatprep.subr.bf16.mxu0 0
    %2964 = vmatpush1.bf16.msra.mxu0 0
    %2965 = vmatprep.subr.bf16.mxu0 0
    %2966 = vmatpush1.bf16.msra.mxu0 0
    %2967 = vmatprep.subr.bf16.mxu0 0
    %2968 = vmatpush1.bf16.msra.mxu0 0
    %2969 = vmatprep.subr.bf16.mxu0 0
    %2970 = vmatpush1.bf16.msra.mxu0 0
    %2971 = vmatprep.subr.bf16.mxu0 0
    %2972 = vmatpush1.bf16.msra.mxu0 0
    %2973 = vmatprep.mubr.bf16.mxu0 0
    %2974 = vmatmul.mubr.bf16.gmra.mrb[0].mxu0 %v2935
    %v2975 = vpop.f32.mrb[0].mxu0
    %v2976 = vadd.f32 0.0, %v2975
    %v2977 = vpop.f32.mrb[0].mxu0
    %v2978 = vpop.f32.mrb[0].mxu0
    %v2979 = vpop.f32.mrb[0].mxu0
    %2980 = vdwg.mxu0
    %v2982 = vsel %vm2457, %v2928, 0
    %v2985 = vsel %vm2937, %v2929, 0
    %2987 = vmatprep.subr.bf16.mxu0 0
    %2988 = vmatpush1.bf16.msra.mxu0 %v2985
    %2989 = vmatprep.subr.bf16.mxu0 0
    %2990 = vmatpush1.bf16.msra.mxu0 0
    %2991 = vmatprep.subr.bf16.mxu0 0
    %2992 = vmatpush1.bf16.msra.mxu0 0
    %2993 = vmatprep.subr.bf16.mxu0 0
    %2994 = vmatpush1.bf16.msra.mxu0 0
    %2995 = vmatprep.subr.bf16.mxu0 0
    %2996 = vmatpush1.bf16.msra.mxu0 0
    %2997 = vmatprep.subr.bf16.mxu0 0
    %2998 = vmatpush1.bf16.msra.mxu0 0
    %2999 = vmatprep.subr.bf16.mxu0 0
    %3000 = vmatpush1.bf16.msra.mxu0 0
    %3001 = vmatprep.subr.bf16.mxu0 0
    %3002 = vmatpush1.bf16.msra.mxu0 0
    %3003 = vmatprep.subr.bf16.mxu0 0
    %3004 = vmatpush1.bf16.msra.mxu0 0
    %3005 = vmatprep.subr.bf16.mxu0 0
    %3006 = vmatpush1.bf16.msra.mxu0 0
    %3007 = vmatprep.subr.bf16.mxu0 0
    %3008 = vmatpush1.bf16.msra.mxu0 0
    %3009 = vmatprep.subr.bf16.mxu0 0
    %3010 = vmatpush1.bf16.msra.mxu0 0
    %3011 = vmatprep.subr.bf16.mxu0 0
    %3012 = vmatpush1.bf16.msra.mxu0 0
    %3013 = vmatprep.subr.bf16.mxu0 0
    %3014 = vmatpush1.bf16.msra.mxu0 0
    %3015 = vmatprep.subr.bf16.mxu0 0
    %3016 = vmatpush1.bf16.msra.mxu0 0
    %3017 = vmatprep.subr.bf16.mxu0 0
    %3018 = vmatpush1.bf16.msra.mxu0 0
    %3019 = vmatprep.mubr.bf16.mxu0 0
    %3020 = vmatmul.mubr.bf16.gmra.mrb[0].mxu0 %v2982
    %v3021 = vpop.f32.mrb[0].mxu0
    %v3022 = vadd.f32 %v2976, %v3021
    %v3023 = vpop.f32.mrb[0].mxu0
    %v3024 = vpop.f32.mrb[0].mxu0
    %v3025 = vpop.f32.mrb[0].mxu0
    %3026 = vdwg.mxu0
    %s3027 = scalar_lea.vmem %s10, 4
    %v3028 = vld [vmem:[%s3027] sm:$0x3]
    %v3029 = vrot.slane %v2928, 2
    %v3031 = vsel %vm2457, %v3029, 0
    %v3034 = vsel %vm2937, %v3028, 0
    %3036 = vmatprep.subr.bf16.mxu0 0
    %3037 = vmatpush1.bf16.msra.mxu0 %v3034
    %3038 = vmatprep.subr.bf16.mxu0 0
    %3039 = vmatpush1.bf16.msra.mxu0 0
    %3040 = vmatprep.subr.bf16.mxu0 0
    %3041 = vmatpush1.bf16.msra.mxu0 0
    %3042 = vmatprep.subr.bf16.mxu0 0
    %3043 = vmatpush1.bf16.msra.mxu0 0
    %3044 = vmatprep.subr.bf16.mxu0 0
    %3045 = vmatpush1.bf16.msra.mxu0 0
    %3046 = vmatprep.subr.bf16.mxu0 0
    %3047 = vmatpush1.bf16.msra.mxu0 0
    %3048 = vmatprep.subr.bf16.mxu0 0
    %3049 = vmatpush1.bf16.msra.mxu0 0
    %3050 = vmatprep.subr.bf16.mxu0 0
    %3051 = vmatpush1.bf16.msra.mxu0 0
    %3052 = vmatprep.subr.bf16.mxu0 0
    %3053 = vmatpush1.bf16.msra.mxu0 0
    %3054 = vmatprep.subr.bf16.mxu0 0
    %3055 = vmatpush1.bf16.msra.mxu0 0
    %3056 = vmatprep.subr.bf16.mxu0 0
    %3057 = vmatpush1.bf16.msra.mxu0 0
    %3058 = vmatprep.subr.bf16.mxu0 0
    %3059 = vmatpush1.bf16.msra.mxu0 0
    %3060 = vmatprep.subr.bf16.mxu0 0
    %3061 = vmatpush1.bf16.msra.mxu0 0
    %3062 = vmatprep.subr.bf16.mxu0 0
    %3063 = vmatpush1.bf16.msra.mxu0 0
    %3064 = vmatprep.subr.bf16.mxu0 0
    %3065 = vmatpush1.bf16.msra.mxu0 0
    %3066 = vmatprep.subr.bf16.mxu0 0
    %3067 = vmatpush1.bf16.msra.mxu0 0
    %3068 = vmatprep.mubr.bf16.mxu0 0
    %3069 = vmatmul.mubr.bf16.gmra.mrb[0].mxu0 %v3031
    %v3070 = vpop.f32.mrb[0].mxu0
    %v3071 = vadd.f32 0.0, %v3070
    %v3072 = vpop.f32.mrb[0].mxu0
    %v3073 = vpop.f32.mrb[0].mxu0
    %v3074 = vpop.f32.mrb[0].mxu0
    %3075 = vdwg.mxu0
    %v3076 = vadd.f32 %v3022, %v3071
    %s3077 = scalar_lea.vmem %s10, 6
    %v3078 = vld [vmem:[%s3077] sm:$0x3]
    %v3079 = vrot.slane %v2928, 3
    %v3081 = vsel %vm2457, %v3079, 0
    %v3084 = vsel %vm2937, %v3078, 0
    %3086 = vmatprep.subr.bf16.mxu0 0
    %3087 = vmatpush1.bf16.msra.mxu0 %v3084
    %3088 = vmatprep.subr.bf16.mxu0 0
    %3089 = vmatpush1.bf16.msra.mxu0 0
    %3090 = vmatprep.subr.bf16.mxu0 0
    %3091 = vmatpush1.bf16.msra.mxu0 0
    %3092 = vmatprep.subr.bf16.mxu0 0
    %3093 = vmatpush1.bf16.msra.mxu0 0
    %3094 = vmatprep.subr.bf16.mxu0 0
    %3095 = vmatpush1.bf16.msra.mxu0 0
    %3096 = vmatprep.subr.bf16.mxu0 0
    %3097 = vmatpush1.bf16.msra.mxu0 0
    %3098 = vmatprep.subr.bf16.mxu0 0
    %3099 = vmatpush1.bf16.msra.mxu0 0
    %3100 = vmatprep.subr.bf16.mxu0 0
    %3101 = vmatpush1.bf16.msra.mxu0 0
    %3102 = vmatprep.subr.bf16.mxu0 0
    %3103 = vmatpush1.bf16.msra.mxu0 0
    %3104 = vmatprep.subr.bf16.mxu0 0
    %3105 = vmatpush1.bf16.msra.mxu0 0
    %3106 = vmatprep.subr.bf16.mxu0 0
    %3107 = vmatpush1.bf16.msra.mxu0 0
    %3108 = vmatprep.subr.bf16.mxu0 0
    %3109 = vmatpush1.bf16.msra.mxu0 0
    %3110 = vmatprep.subr.bf16.mxu0 0
    %3111 = vmatpush1.bf16.msra.mxu0 0
    %3112 = vmatprep.subr.bf16.mxu0 0
    %3113 = vmatpush1.bf16.msra.mxu0 0
    %3114 = vmatprep.subr.bf16.mxu0 0
    %3115 = vmatpush1.bf16.msra.mxu0 0
    %3116 = vmatprep.subr.bf16.mxu0 0
    %3117 = vmatpush1.bf16.msra.mxu0 0
    %3118 = vmatprep.mubr.bf16.mxu0 0
    %3119 = vmatmul.mubr.bf16.gmra.mrb[0].mxu0 %v3081
    %v3120 = vpop.f32.mrb[0].mxu0
    %v3121 = vadd.f32 0.0, %v3120
    %v3122 = vpop.f32.mrb[0].mxu0
    %v3123 = vpop.f32.mrb[0].mxu0
    %v3124 = vpop.f32.mrb[0].mxu0
    %3125 = vdwg.mxu0
    %v3126 = vadd.f32 %v3076, %v3121
    %v3127 = vld [vmem:[%s11] sm:$0x1]
    %v3129 = vlaneseq
    %v3130 = vshrl.u32 %v3129, 7
    %v3131 = vsub.s32 0, %v3130
    %v3132 = vrot.slane %v3127, %v3131
    %v3134 = vadd.f32 %v3126, %v3132
    %vm3135 = vcmask 74752
    %3136 = vst.msk [vmem:[#allocation6] sm:$0x3] %vm3135, %v3134
    // Predicated region
    $region54: #{_lambda_.1} parent=1 // pred_check
      _
    $region55: #{_lambda_.1} parent=1 // pred_check_branch
      %3138 = sbr.rel (0) target = $region57
    $region56: #{_lambda_.1} parent=1 // pred_region
      %s3140 = ssub.s32 32, 32
      %3141 = vsyncadd [#allocation5], %s3140
      %s3143 = sshll.u32 [#allocation6], 4
      %s3144 = int_to_ptr.vmem [resolvable:$true] %s3143
      %3146 = dma.vmem_to_hbm [thread:$0]  %s3144, 32, %s12, [#allocation5]
    $region57: #{_lambda_.1} parent=1 // pred_fallthru
      _
    // Predicated region
    $region58: #{_lambda_.1} parent=1 // pred_check
      _
    $region59: #{_lambda_.1} parent=1 // pred_check_branch
      %3148 = sbr.rel (0) target = $region61
    $region60: #{_lambda_.1} parent=1 // pred_region
      %3149 = dma.done [#allocation5], 32
    $region61: #{_lambda_.1} parent=1 // pred_fallthru
      _
    %3150 = vsyncpa [#allocation4], 1
    %3151 = vsyncpa [#allocation5], 1

</llo_original>
